<compile_context>
chip_gen: v7x
topology: tpu7x:2x2x1
jax: 0.10.0
libtpu: 0.0.40
codegen_flags: <defaults>
</compile_context>

<pallas_src>
import jax
import jax.numpy as jnp
import numpy as np
from jax.experimental import pallas as pl
from jax.experimental.pallas import tpu as pltpu


def attention_pool_kernel(x_ref, batch_ref, w1_ref, b1_ref, w2_ref, b2_ref,
                          nv_ref, acc_ref, m_ref, l_ref):
    p = pl.program_id(0)          # node-range split ("parallel": one per TC)
    k = pl.program_id(1)          # node tiles within the split ("arbitrary")
    nk = pl.num_programs(1)
    tn = x_ref.shape[0]

    @pl.when(k == 0)
    def _init():
        acc_ref[...] = jnp.zeros_like(acc_ref)
        m_ref[...] = jnp.full_like(m_ref, -jnp.inf)
        l_ref[...] = jnp.zeros_like(l_ref)

    # Global row index of each row in this tile.  x is NOT padded in the
    # wrapper, so ragged / out-of-range tiles contain garbage: zero those
    # rows (NaN-safe) and exclude them from the softmax.
    row = (p * nk + k) * tn + jax.lax.broadcasted_iota(jnp.int32, (tn, 1), 0)
    valid = row < nv_ref[0]                                   # [tN, 1] bool

    x_f32 = jnp.where(valid, x_ref[...], 0.0)                 # [tN, H] f32
    x_mxu = x_f32.astype(jnp.bfloat16)                        # MXU feed

    # --- attention MLP scores (Linear -> ReLU -> Linear(.,1)) -------------
    h = jnp.dot(x_mxu, w1_ref[...],
                preferred_element_type=jnp.float32)           # MXU, f32 acc
    h = jnp.maximum(h + b1_ref[...], 0.0)                     # [tN, H2] f32
    # Linear(H2, 1) as a VPU multiply + XLU row-reduction (a 1-wide MXU
    # matmul would waste the whole MXU output path).
    logits = (jnp.sum(h * w2_ref[...], axis=-1, keepdims=True)
              + b2_ref[0])                                    # [tN, 1] f32
    logits = jnp.where(valid, logits, -jnp.inf)

    # --- online softmax over dim 0 (all nodes), deferred normalization ----
    m_prev = m_ref[...]                                       # [1, 1]
    m_new = jnp.maximum(m_prev, jnp.max(logits, axis=0, keepdims=True))
    # Guard fully-masked tiles / empty splits: never exp(-inf - (-inf)).
    m_safe = jnp.where(m_new == -jnp.inf, 0.0, m_new)
    alpha = jnp.exp(m_prev - m_safe)                          # [1, 1]
    p_un = jnp.exp(logits - m_safe)                           # [tN,1]; 0 on invalid
    l_ref[...] = alpha * l_ref[...] + jnp.sum(p_un, axis=0, keepdims=True)
    m_ref[...] = m_new

    # --- weighted features + segment-sum; both MXU operands bf16 ----------
    g = acc_ref.shape[0]
    gid = jax.lax.broadcasted_iota(jnp.int32, (g, tn), 0)     # [G, tN]
    onehot = (gid == batch_ref[...]).astype(jnp.bfloat16)     # [G, tN] (0/1 exact)
    weighted = (x_f32 * p_un).astype(jnp.bfloat16)            # [tN, H]
    acc_ref[...] = alpha * acc_ref[...] + jnp.dot(
        onehot, weighted, preferred_element_type=jnp.float32)


def attention_pooling(x, batch, num_graphs, w1, b1, w2, b2, *,
                      tile_n=512, num_splits=2):
    n, hdim = x.shape
    h2 = w1.shape[1]

    total_tiles = pl.cdiv(n, tile_n)
    num_splits = max(1, min(num_splits, total_tiles))
    tiles_per_split = pl.cdiv(total_tiles, num_splits)
    tps = tiles_per_split

    # No padded copy of x (it is streamed as-is); only tiny params are prepped.
    batch2d = batch.astype(jnp.int32).reshape(1, n)
    w1_c = w1.astype(jnp.bfloat16)
    b1_2d = b1.reshape(1, h2).astype(jnp.float32)
    w2row = w2.reshape(1, h2).astype(jnp.float32)          # [H2,1] -> [1,H2]
    b2_s = b2.reshape(1).astype(jnp.float32)               # scalar -> SMEM
    nv = jnp.asarray([n], dtype=jnp.int32)                 # n_valid  -> SMEM

    grid_spec = pltpu.PrefetchScalarGridSpec(
        num_scalar_prefetch=0,
        grid=(num_splits, tiles_per_split),
        in_specs=[
            pl.BlockSpec((tile_n, hdim), lambda p, k: (p * tps + k, 0)),  # x
            pl.BlockSpec((1, tile_n), lambda p, k: (0, p * tps + k)),     # ids
            pl.BlockSpec((hdim, h2), lambda p, k: (0, 0)),                # w1
            pl.BlockSpec((1, h2), lambda p, k: (0, 0)),                   # b1
            pl.BlockSpec((1, h2), lambda p, k: (0, 0)),                   # w2 row
            pl.BlockSpec(memory_space=pltpu.MemorySpace.SMEM),            # b2
            pl.BlockSpec(memory_space=pltpu.MemorySpace.SMEM),            # n_valid
        ],
        out_specs=[
            # Per-split partials, resident across the k (reduction) axis.
            pl.BlockSpec((None, num_graphs, hdim), lambda p, k: (p, 0, 0)),
            pl.BlockSpec((None, 1, 1), lambda p, k: (p, 0, 0)),
            pl.BlockSpec((None, 1, 1), lambda p, k: (p, 0, 0)),
        ],
    )

    acc, m, l = pl.pallas_call(
        attention_pool_kernel,
        out_shape=(
            jax.ShapeDtypeStruct((num_splits, num_graphs, hdim), jnp.float32),
            jax.ShapeDtypeStruct((num_splits, 1, 1), jnp.float32),
            jax.ShapeDtypeStruct((num_splits, 1, 1), jnp.float32),
        ),
        grid_spec=grid_spec,
        compiler_params=pltpu.CompilerParams(
            dimension_semantics=("parallel", "arbitrary"),
            vmem_limit_bytes=32 * 1024 * 1024,
        ),
    )(x.astype(jnp.float32), batch2d, w1_c, b1_2d, w2row, b2_s, nv)

    # Epilogue: merge per-split online-softmax partials, exact normalization.
    m_glob = jnp.max(m, axis=0)                               # [1, 1]
    m_glob = jnp.where(jnp.isfinite(m_glob), m_glob, 0.0)     # N==0 guard
    scale = jnp.exp(m - m_glob)                               # [S,1,1]; 0 if empty
    l_tot = jnp.sum(l * scale, axis=0)                        # [1, 1]
    acc_tot = jnp.sum(acc * scale, axis=0)                    # [G, H]
    return jnp.where(l_tot > 0, acc_tot / l_tot, 0.0)


if __name__ == "__main__":
    key = jax.random.PRNGKey(0)
    N, H, G = 2000, 256, 4          # nodes, hidden_dim, number of graphs
    H2 = H // 2

    k0, k1, k2, k3, k4 = jax.random.split(key, 5)
    x = jax.random.normal(k0, (N, H), jnp.float32)
    batch = (jnp.arange(N, dtype=jnp.int32) * G) // N   # contiguous graph ids

    # Deterministic synthetic parameters (same shapes as the nn.Sequential MLP)
    w1 = jax.random.normal(k1, (H, H2), jnp.float32) * 0.1
    b1 = jax.random.normal(k2, (H2,), jnp.float32) * 0.1
    w2 = jax.random.normal(k3, (H2, 1), jnp.float32) * 0.1
    b2 = jax.random.normal(k4, (1,), jnp.float32) * 0.1

    out = attention_pooling(x, batch, G, w1, b1, w2, b2)
    out = jax.block_until_ready(out)

    # Pure-JAX reference of the PyTorch forward (x / w1 quantized to bf16 to
    # mirror the kernel's MXU feed; softmax and pooling in f32).
    xq = x.astype(jnp.bfloat16).astype(jnp.float32)
    w1q = w1.astype(jnp.bfloat16).astype(jnp.float32)
    h_ref = jnp.maximum(
        jnp.dot(xq, w1q, precision=jax.lax.Precision.HIGHEST) + b1, 0.0)
    logits_ref = jnp.sum(h_ref * w2.reshape(1, H2), axis=-1, keepdims=True) + b2
    attn_ref = jax.nn.softmax(logits_ref, axis=0)
    pooled_ref = jax.ops.segment_sum(xq * attn_ref, batch, num_segments=G)

    np.testing.assert_allclose(np.asarray(out), np.asarray(pooled_ref),
                               rtol=5e-3, atol=1e-3)
    print("KERNEL_OK")
</pallas_src>

<mosaic_0001>
module attributes {stable_mosaic.version = 11 : i64} {
  func.func @attention_pool_kernel(%arg0: i32, %arg1: i32, %arg2: memref<512x256xf32, #tpu.memory_space<vmem>>, %arg3: memref<1x512xi32, #tpu.memory_space<vmem>>, %arg4: memref<256x128xbf16, #tpu.memory_space<vmem>>, %arg5: memref<1x128xf32, #tpu.memory_space<vmem>>, %arg6: memref<1x128xf32, #tpu.memory_space<vmem>>, %arg7: memref<1xf32, #tpu.memory_space<smem>>, %arg8: memref<1xi32, #tpu.memory_space<smem>>, %arg9: memref<1x4x256xf32, #tpu.memory_space<vmem>>, %arg10: memref<1x1x1xf32, #tpu.memory_space<vmem>>, %arg11: memref<1x1x1xf32, #tpu.memory_space<vmem>>) attributes {dimension_semantics = [#tpu.dimension_semantics<parallel>, #tpu.dimension_semantics<arbitrary>], iteration_bounds = array<i64: 2, 2>, scalar_prefetch = 0 : i64, scratch_operands = 0 : i64, tpu.core_type = #tpu.core_type<tc>, window_params = [{transform_indices = @transform_0, window_bounds = array<i64: 512, 256>}, {transform_indices = @transform_1, window_bounds = array<i64: 1, 512>}, {pipeline_mode = #tpu.pipeline_mode<synchronous>, transform_indices = @transform_2, window_bounds = array<i64: 256, 128>}, {pipeline_mode = #tpu.pipeline_mode<synchronous>, transform_indices = @transform_3, window_bounds = array<i64: 1, 128>}, {pipeline_mode = #tpu.pipeline_mode<synchronous>, transform_indices = @transform_4, window_bounds = array<i64: 1, 128>}, {transform_indices = @transform_5, window_bounds = array<i64: 1>}, {transform_indices = @transform_6, window_bounds = array<i64: 1>}, {transform_indices = @transform_7, window_bounds = array<i64: 1, 4, 256>}, {transform_indices = @transform_8, window_bounds = array<i64: 1, 1, 1>}, {transform_indices = @transform_9, window_bounds = array<i64: 1, 1, 1>}]} {
    %c0_i32 = arith.constant 0 : i32
    %0 = arith.cmpi eq, %arg1, %c0_i32 : i32
    %1 = arith.extui %0 : i1 to i32
    %c0_i32_0 = arith.constant 0 : i32
    %2 = arith.cmpi ne, %1, %c0_i32_0 : i32
    scf.if %2 {
      %cst_39 = arith.constant 0.000000e+00 : f32
      %80 = vector.broadcast %cst_39 : f32 to vector<4x256xf32>
      %c0_40 = arith.constant 0 : index
      %c0_41 = arith.constant 0 : index
      %c0_42 = arith.constant 0 : index
      %81 = vector.load %arg9[%c0_40, %c0_41, %c0_42] : memref<1x4x256xf32, #tpu.memory_space<vmem>>, vector<1x4x256xf32>
      %82 = vector.shape_cast %81 : vector<1x4x256xf32> to vector<4x256xf32>
      %83 = vector.shape_cast %80 : vector<4x256xf32> to vector<1x4x256xf32>
      tpu.vector_store %arg9[%c0_40, %c0_41, %c0_42], %83 {strides = array<i32>} : memref<1x4x256xf32, #tpu.memory_space<vmem>>, vector<1x4x256xf32>,
      %cst_43 = arith.constant 0xFF800000 : f32
      %84 = vector.broadcast %cst_43 : f32 to vector<1x1xf32>
      %c0_44 = arith.constant 0 : index
      %c0_45 = arith.constant 0 : index
      %c0_46 = arith.constant 0 : index
      %85 = vector.load %arg10[%c0_44, %c0_45, %c0_46] : memref<1x1x1xf32, #tpu.memory_space<vmem>>, vector<1x1x1xf32>
      %86 = vector.shape_cast %85 : vector<1x1x1xf32> to vector<1x1xf32>
      %87 = vector.shape_cast %84 : vector<1x1xf32> to vector<1x1x1xf32>
      tpu.vector_store %arg10[%c0_44, %c0_45, %c0_46], %87 {strides = array<i32>} : memref<1x1x1xf32, #tpu.memory_space<vmem>>, vector<1x1x1xf32>,
      %cst_47 = arith.constant 0.000000e+00 : f32
      %88 = vector.broadcast %cst_47 : f32 to vector<1x1xf32>
      %c0_48 = arith.constant 0 : index
      %c0_49 = arith.constant 0 : index
      %c0_50 = arith.constant 0 : index
      %89 = vector.load %arg11[%c0_48, %c0_49, %c0_50] : memref<1x1x1xf32, #tpu.memory_space<vmem>>, vector<1x1x1xf32>
      %90 = vector.shape_cast %89 : vector<1x1x1xf32> to vector<1x1xf32>
      %91 = vector.shape_cast %88 : vector<1x1xf32> to vector<1x1x1xf32>
      tpu.vector_store %arg11[%c0_48, %c0_49, %c0_50], %91 {strides = array<i32>} : memref<1x1x1xf32, #tpu.memory_space<vmem>>, vector<1x1x1xf32>,
    } else {
    }
    %c2_i32 = arith.constant 2 : i32
    %3 = arith.muli %arg0, %c2_i32 : i32
    %4 = arith.addi %3, %arg1 : i32
    %c512_i32 = arith.constant 512 : i32
    %5 = arith.muli %4, %c512_i32 : i32
    %6 = tpu.iota {dimensions = array<i32: 0>} : vector<512x1xi32>
    %7 = vector.broadcast %5 : i32 to vector<512x1xi32>
    %8 = arith.addi %7, %6 : vector<512x1xi32>
    %c0 = arith.constant 0 : index
    %9 = memref.load %arg8[%c0] : memref<1xi32, #tpu.memory_space<smem>>
    %10 = vector.broadcast %9 : i32 to vector<512x1xi32>
    %11 = arith.cmpi slt, %8, %10 : vector<512x1xi32>
    %c0_1 = arith.constant 0 : index
    %c0_2 = arith.constant 0 : index
    %12 = vector.load %arg2[%c0_1, %c0_2] : memref<512x256xf32, #tpu.memory_space<vmem>>, vector<512x256xf32>
    %cst = arith.constant 0.000000e+00 : f32
    %13 = vector.shape_cast %11 : vector<512x1xi1> to vector<512x1xi1>
    %14 = vector.broadcast %13 : vector<512x1xi1> to vector<512x256xi1>
    %15 = vector.broadcast %cst : f32 to vector<512x256xf32>
    %16 = arith.select %14, %12, %15 : vector<512x256xi1>, vector<512x256xf32>
    %17 = arith.truncf %16 : vector<512x256xf32> to vector<512x256xbf16>
    %c0_3 = arith.constant 0 : index
    %c0_4 = arith.constant 0 : index
    %18 = vector.load %arg4[%c0_3, %c0_4] : memref<256x128xbf16, #tpu.memory_space<vmem>>, vector<256x128xbf16>
    %cst_5 = arith.constant dense<0.000000e+00> : vector<512x128xf32>
    %19 = tpu.matmul %17, %18, %cst_5 {dimension_numbers = #tpu.dot_dimension_numbers<[1], [0], [0], [1], [0, 0, 1, 1], [], []>} : vector<512x256xbf16>, vector<256x128xbf16>, vector<512x128xf32> -> vector<512x128xf32>
    %c0_6 = arith.constant 0 : index
    %c0_7 = arith.constant 0 : index
    %20 = vector.load %arg5[%c0_6, %c0_7] : memref<1x128xf32, #tpu.memory_space<vmem>>, vector<1x128xf32>
    %21 = vector.broadcast %20 : vector<1x128xf32> to vector<512x128xf32>
    %22 = arith.addf %19, %21 : vector<512x128xf32>
    %cst_8 = arith.constant 0.000000e+00 : f32
    %23 = vector.broadcast %cst_8 : f32 to vector<512x128xf32>
    %24 = arith.maximumf %22, %23 : vector<512x128xf32>
    %c0_9 = arith.constant 0 : index
    %c0_10 = arith.constant 0 : index
    %25 = vector.load %arg6[%c0_9, %c0_10] : memref<1x128xf32, #tpu.memory_space<vmem>>, vector<1x128xf32>
    %26 = vector.broadcast %25 : vector<1x128xf32> to vector<512x128xf32>
    %27 = arith.mulf %24, %26 : vector<512x128xf32>
    %cst_11 = arith.constant dense<0.000000e+00> : vector<512xf32>
    %28 = vector.multi_reduction <add>, %27, %cst_11 [1] : vector<512x128xf32> to vector<512xf32>
    %29 = vector.shape_cast %28 : vector<512xf32> to vector<512x1xf32>
    %c0_12 = arith.constant 0 : index
    %30 = memref.load %arg7[%c0_12] : memref<1xf32, #tpu.memory_space<smem>>
    %31 = vector.broadcast %30 : f32 to vector<512x1xf32>
    %32 = arith.addf %29, %31 : vector<512x1xf32>
    %cst_13 = arith.constant 0xFF800000 : f32
    %33 = vector.broadcast %cst_13 : f32 to vector<512x1xf32>
    %34 = arith.select %11, %32, %33 : vector<512x1xi1>, vector<512x1xf32>
    %c0_14 = arith.constant 0 : index
    %c0_15 = arith.constant 0 : index
    %c0_16 = arith.constant 0 : index
    %35 = vector.load %arg10[%c0_14, %c0_15, %c0_16] : memref<1x1x1xf32, #tpu.memory_space<vmem>>, vector<1x1x1xf32>
    %36 = vector.shape_cast %35 : vector<1x1x1xf32> to vector<1x1xf32>
    %cst_17 = arith.constant dense<0xFF800000> : vector<1xf32>
    %37 = vector.multi_reduction <maximumf>, %34, %cst_17 [0] : vector<512x1xf32> to vector<1xf32>
    %38 = vector.shape_cast %37 : vector<1xf32> to vector<1x1xf32>
    %39 = arith.maximumf %36, %38 : vector<1x1xf32>
    %cst_18 = arith.constant 0xFF800000 : f32
    %40 = vector.broadcast %cst_18 : f32 to vector<1x1xf32>
    %41 = arith.cmpf oeq, %39, %40 : vector<1x1xf32>
    %cst_19 = arith.constant 0.000000e+00 : f32
    %42 = vector.broadcast %cst_19 : f32 to vector<1x1xf32>
    %43 = arith.select %41, %42, %39 : vector<1x1xi1>, vector<1x1xf32>
    %44 = arith.subf %36, %43 : vector<1x1xf32>
    %45 = math.exp %44 : vector<1x1xf32>
    %46 = vector.broadcast %43 : vector<1x1xf32> to vector<512x1xf32>
    %47 = arith.subf %34, %46 : vector<512x1xf32>
    %48 = math.exp %47 : vector<512x1xf32>
    %c0_20 = arith.constant 0 : index
    %c0_21 = arith.constant 0 : index
    %c0_22 = arith.constant 0 : index
    %49 = vector.load %arg11[%c0_20, %c0_21, %c0_22] : memref<1x1x1xf32, #tpu.memory_space<vmem>>, vector<1x1x1xf32>
    %50 = vector.shape_cast %49 : vector<1x1x1xf32> to vector<1x1xf32>
    %51 = arith.mulf %45, %50 : vector<1x1xf32>
    %cst_23 = arith.constant dense<0.000000e+00> : vector<1xf32>
    %52 = vector.multi_reduction <add>, %48, %cst_23 [0] : vector<512x1xf32> to vector<1xf32>
    %53 = vector.shape_cast %52 : vector<1xf32> to vector<1x1xf32>
    %54 = arith.addf %51, %53 : vector<1x1xf32>
    %c0_24 = arith.constant 0 : index
    %c0_25 = arith.constant 0 : index
    %c0_26 = arith.constant 0 : index
    %55 = vector.load %arg11[%c0_24, %c0_25, %c0_26] : memref<1x1x1xf32, #tpu.memory_space<vmem>>, vector<1x1x1xf32>
    %56 = vector.shape_cast %55 : vector<1x1x1xf32> to vector<1x1xf32>
    %57 = vector.shape_cast %54 : vector<1x1xf32> to vector<1x1x1xf32>
    tpu.vector_store %arg11[%c0_24, %c0_25, %c0_26], %57 {strides = array<i32>} : memref<1x1x1xf32, #tpu.memory_space<vmem>>, vector<1x1x1xf32>,
    %c0_27 = arith.constant 0 : index
    %c0_28 = arith.constant 0 : index
    %c0_29 = arith.constant 0 : index
    %58 = vector.load %arg10[%c0_27, %c0_28, %c0_29] : memref<1x1x1xf32, #tpu.memory_space<vmem>>, vector<1x1x1xf32>
    %59 = vector.shape_cast %58 : vector<1x1x1xf32> to vector<1x1xf32>
    %60 = vector.shape_cast %39 : vector<1x1xf32> to vector<1x1x1xf32>
    tpu.vector_store %arg10[%c0_27, %c0_28, %c0_29], %60 {strides = array<i32>} : memref<1x1x1xf32, #tpu.memory_space<vmem>>, vector<1x1x1xf32>,
    %61 = tpu.iota {dimensions = array<i32: 0>} : vector<4x512xi32>
    %c0_30 = arith.constant 0 : index
    %c0_31 = arith.constant 0 : index
    %62 = vector.load %arg3[%c0_30, %c0_31] : memref<1x512xi32, #tpu.memory_space<vmem>>, vector<1x512xi32>
    %63 = vector.broadcast %62 : vector<1x512xi32> to vector<4x512xi32>
    %64 = arith.cmpi eq, %61, %63 : vector<4x512xi32>
    %65 = arith.extui %64 : vector<4x512xi1> to vector<4x512xi32>
    %66 = arith.sitofp %65 : vector<4x512xi32> to vector<4x512xf32>
    %67 = arith.truncf %66 : vector<4x512xf32> to vector<4x512xbf16>
    %68 = vector.broadcast %48 : vector<512x1xf32> to vector<512x256xf32>
    %69 = arith.mulf %16, %68 : vector<512x256xf32>
    %70 = arith.truncf %69 : vector<512x256xf32> to vector<512x256xbf16>
    %c0_32 = arith.constant 0 : index
    %c0_33 = arith.constant 0 : index
    %c0_34 = arith.constant 0 : index
    %71 = vector.load %arg9[%c0_32, %c0_33, %c0_34] : memref<1x4x256xf32, #tpu.memory_space<vmem>>, vector<1x4x256xf32>
    %72 = vector.shape_cast %71 : vector<1x4x256xf32> to vector<4x256xf32>
    %73 = vector.broadcast %45 : vector<1x1xf32> to vector<4x256xf32>
    %74 = arith.mulf %73, %72 : vector<4x256xf32>
    %cst_35 = arith.constant dense<0.000000e+00> : vector<4x256xf32>
    %75 = tpu.matmul %67, %70, %cst_35 {dimension_numbers = #tpu.dot_dimension_numbers<[1], [0], [0], [1], [0, 0, 1, 1], [], []>} : vector<4x512xbf16>, vector<512x256xbf16>, vector<4x256xf32> -> vector<4x256xf32>
    %76 = arith.addf %74, %75 : vector<4x256xf32>
    %c0_36 = arith.constant 0 : index
    %c0_37 = arith.constant 0 : index
    %c0_38 = arith.constant 0 : index
    %77 = vector.load %arg9[%c0_36, %c0_37, %c0_38] : memref<1x4x256xf32, #tpu.memory_space<vmem>>, vector<1x4x256xf32>
    %78 = vector.shape_cast %77 : vector<1x4x256xf32> to vector<4x256xf32>
    %79 = vector.shape_cast %76 : vector<4x256xf32> to vector<1x4x256xf32>
    tpu.vector_store %arg9[%c0_36, %c0_37, %c0_38], %79 {strides = array<i32>} : memref<1x4x256xf32, #tpu.memory_space<vmem>>, vector<1x4x256xf32>,
    return
  }
  func.func @transform_0(%arg0: i32, %arg1: i32) -> (i32, i32) {
    %c2_i32 = arith.constant 2 : i32
    %0 = arith.muli %arg0, %c2_i32 : i32
    %1 = arith.addi %0, %arg1 : i32
    %c0_i32 = arith.constant 0 : i32
    %c0_i32_0 = arith.constant 0 : i32
    return %1, %c0_i32 : i32, i32
  }
  func.func @transform_1(%arg0: i32, %arg1: i32) -> (i32, i32) {
    %c2_i32 = arith.constant 2 : i32
    %0 = arith.muli %arg0, %c2_i32 : i32
    %1 = arith.addi %0, %arg1 : i32
    %c0_i32 = arith.constant 0 : i32
    %c0_i32_0 = arith.constant 0 : i32
    return %c0_i32, %1 : i32, i32
  }
  func.func @transform_2(%arg0: i32, %arg1: i32) -> (i32, i32) {
    %c0_i32 = arith.constant 0 : i32
    %c0_i32_0 = arith.constant 0 : i32
    %c0_i32_1 = arith.constant 0 : i32
    return %c0_i32, %c0_i32_0 : i32, i32
  }
  func.func @transform_3(%arg0: i32, %arg1: i32) -> (i32, i32) {
    %c0_i32 = arith.constant 0 : i32
    %c0_i32_0 = arith.constant 0 : i32
    %c0_i32_1 = arith.constant 0 : i32
    return %c0_i32, %c0_i32_0 : i32, i32
  }
  func.func @transform_4(%arg0: i32, %arg1: i32) -> (i32, i32) {
    %c0_i32 = arith.constant 0 : i32
    %c0_i32_0 = arith.constant 0 : i32
    %c0_i32_1 = arith.constant 0 : i32
    return %c0_i32, %c0_i32_0 : i32, i32
  }
  func.func @transform_5(%arg0: i32, %arg1: i32) -> i32 {
    %c0_i32 = arith.constant 0 : i32
    %c0_i32_0 = arith.constant 0 : i32
    return %c0_i32 : i32
  }
  func.func @transform_6(%arg0: i32, %arg1: i32) -> i32 {
    %c0_i32 = arith.constant 0 : i32
    %c0_i32_0 = arith.constant 0 : i32
    return %c0_i32 : i32
  }
  func.func @transform_7(%arg0: i32, %arg1: i32) -> (i32, i32, i32) {
    %c0_i32 = arith.constant 0 : i32
    %c0_i32_0 = arith.constant 0 : i32
    %c0_i32_1 = arith.constant 0 : i32
    return %arg0, %c0_i32, %c0_i32_0 : i32, i32, i32
  }
  func.func @transform_8(%arg0: i32, %arg1: i32) -> (i32, i32, i32) {
    %c0_i32 = arith.constant 0 : i32
    %c0_i32_0 = arith.constant 0 : i32
    %c0_i32_1 = arith.constant 0 : i32
    return %arg0, %c0_i32, %c0_i32_0 : i32, i32, i32
  }
  func.func @transform_9(%arg0: i32, %arg1: i32) -> (i32, i32, i32) {
    %c0_i32 = arith.constant 0 : i32
    %c0_i32_0 = arith.constant 0 : i32
    %c0_i32_1 = arith.constant 0 : i32
    return %arg0, %c0_i32, %c0_i32_0 : i32, i32, i32
  }
}

</mosaic_0001>

<llo_original>
// kernel: tpu_custom_call.1
$region0: #{tpu_custom_call.1}
  #allocation0 [shape = 'u32[]', space=smem, size = 0x4, offset = 0x4, fixed_abs, tag = 'smem constant byte address 0x4 - core index']
  #allocation1 [shape = 'u32[144,128]{1,0:T(1,128)}', space=vmem, size = 0x12000, scoped, tag = 'internal scratch']
  #allocation2 [shape = 'f32[1]{0:T(128)S(6)}', space=smem, size = 0x200, scoped, tag = 'scoped memory for tpu_custom_call.1']
  #allocation3 [shape = 's32[1]{0:T(128)S(6)}', space=smem, size = 0x200, scoped, tag = 'scoped memory for tpu_custom_call.1']
  %s0 = inlined_call_operand.hbm [shape: f32[2000,256], index: 0, kind: input, shape index: {}]
  %s1 = inlined_call_operand.hbm [shape: s32[1,2000], index: 1, kind: input, shape index: {}]
  %s2 = inlined_call_operand.hbm [shape: bf16[256,128], index: 2, kind: input, shape index: {}]
  %s3 = inlined_call_operand.hbm [shape: f32[1,128], index: 3, kind: input, shape index: {}]
  %s4 = inlined_call_operand.hbm [shape: f32[1,128], index: 4, kind: input, shape index: {}]
  %s5 = inlined_call_operand.<no memory space> [shape: f32[1], index: 5, kind: input, shape index: {}]
  %s6 = inlined_call_operand.<no memory space> [shape: s32[1], index: 6, kind: input, shape index: {}]
  %s7 = inlined_call_operand.hbm [shape: f32[2,4,256], index: 7, kind: output, shape index: {0}]
  %s8 = inlined_call_operand.vmem [shape: f32[2,1,1], index: 8, kind: output, shape index: {1}]
  %s9 = inlined_call_operand.vmem [shape: f32[2,1,1], index: 9, kind: output, shape index: {2}]
  %10 = xla_tuple %s7, %s8, %s9
  %s11 = sld [smem:[#allocation0]]
  $region101: #{tpu_custom_call.1} parent=0
    _
  %s13 = ssub.s32 1, %s11
  %s14 = scalar_select 0, %s13, %s11
  %15 = sst [smem:[#allocation2]] %s5
  %16 = sst [smem:[#allocation3]] %s6
  $region1: #{tpu_custom_call.1} parent=0
    #allocation4 [shape = 'u8[1048576]{0}', space=vmem, size = 0x100000, scoped, tag = 'input window, operand 0']
    #allocation5 [shape = 's32[2]{0}', space=sflag, size = 0x8, scoped, tag = 'scoped memory for tpu_custom_call.1']
    #allocation6 [shape = 's32[2]{0}', space=sflag, size = 0x8, scoped, tag = 'scoped memory for tpu_custom_call.1']
    #allocation7 [shape = 'u8[4096]{0}', space=vmem, size = 0x1000, scoped, tag = 'input window, operand 1']
    #allocation8 [shape = 's32[2]{0}', space=sflag, size = 0x8, scoped, tag = 'scoped memory for tpu_custom_call.1']
    #allocation9 [shape = 'u8[65536]{0}', space=vmem, size = 0x10000, scoped, tag = 'input window, operand 2, single buffered']
    #allocation10 [shape = 'u8[512]{0}', space=vmem, size = 0x400, scoped, tag = 'input window, operand 3, single buffered']
    #allocation11 [shape = 's32[1]{0}', space=sflag, size = 0x4, scoped, tag = 'scoped memory for tpu_custom_call.1']
    #allocation12 [shape = 'u8[512]{0}', space=vmem, size = 0x400, scoped, tag = 'input window, operand 4, single buffered']
    #allocation13 [shape = 'u8[8192]{0}', space=vmem, size = 0x2000, scoped, tag = 'output window, operand 0']
    %17 = vsyncpa [#allocation5], 0
    %s18 = scalar_lea.sflag [#allocation5], 1
    %19 = vsyncpa %s18, 0
    %20 = vsyncpa [#allocation8], 0
    %s21 = scalar_lea.sflag [#allocation8], 1
    %22 = vsyncpa %s21, 0
    %23 = vsyncpa [#allocation11], 0
    %24 = vsyncpa [#allocation6], 0
    %s25 = scalar_lea.sflag [#allocation6], 1
    %26 = vsyncpa %s25, 0
    loop: start=0, step=1, limit=6
    $region2: #{tpu_custom_call.1} parent=1 // loop_pre_header
      _
    $region3: #{tpu_custom_call.1} parent=1 // loop_header
      %s28 = sphi 0, %s32
      %p29 = scmp.ge.s32.totalorder %s28, 6
      %s35 = sphi 0, %s47
      %s36 = sphi 0, %s43
      %s37 = sphi 0, %s35
      %s38 = sphi 0, %s36
      %s39 = sphi 0, %s37
      %s40 = sphi 0, %s38
      %s54 = sphi 0, %s56
      %s57 = sphi 0, %s54
      %s58 = sphi 0, %s57
      %s74 = sphi 0, %s58
      %s84 = sphi 0, %s86
      %s87 = sphi 0, %s84
      %s88 = sphi 0, %s87
      %s104 = sphi 0, %s88
      %s108 = sphi 0, %s108
      %s110 = sphi 0, %s108
      %s111 = sphi 0, %s110
      %s125 = sphi 0, %s111
      %s129 = sphi 0, %s129
      %s131 = sphi 0, %s129
      %s132 = sphi 0, %s131
      %s146 = sphi 0, %s132
      %s150 = sphi 0, %s150
      %s152 = sphi 0, %s150
      %s153 = sphi 0, %s152
      %s167 = sphi 0, %s153
      %s171 = sphi 0, %s171
      %s173 = sphi 0, %s171
      %s174 = sphi 0, %s173
      %s188 = sphi 0, %s174
      %s192 = sphi 0, %s192
      %s194 = sphi 0, %s192
      %s195 = sphi 0, %s194
      %s209 = sphi 0, %s195
      %s215 = sphi 0, %s217
      %s218 = sphi 0, %s215
      %s219 = sphi 0, %s218
      %s235 = sphi 0, %s219
      %s241 = sphi 0, %s243
      %s244 = sphi 0, %s241
      %s245 = sphi 0, %s244
      %s261 = sphi 0, %s245
      %s267 = sphi 0, %s269
      %s270 = sphi 0, %s267
      %s271 = sphi 0, %s270
      %s287 = sphi 0, %s271
    $region4: #{tpu_custom_call.1} parent=1 // loop_header_branch
      %31 = sbr.rel (%p29) target = $region8
    $region5: #{tpu_custom_call.1} parent=1 // loop_body
      %s33 = ssub.s32 %s28, 1
      %s34 = ssub.s32 %s28, 2
      %s41 = sadd.s32 1, %s36
      %p42 = scmp.ge.s32.totalorder %s41, 2
      %s43 = scalar_select %p42, 0, %s41
      %s44 = sadd.s32 1, %s35
      %s45 = scalar_select %p42, %s44, %s35
      %p46 = scmp.ge.s32.totalorder %s45, 2
      %s47 = scalar_select %p46, 0, %s45
      %s48 = smul.u32 %s35, 2
      %s49 = sadd.s32 %s48, %s36
      %s50 = smul.u32 %s47, 2
      %s51 = sadd.s32 %s50, %s43
      %s52 = ssub.s32 %s49, %s51
      %p53 = scmp.eq.s32.totalorder %s52, 0
      %s55 = sadd.s32 %s54, 1
      %s56 = scalar_select %p53, %s54, %s55
      %p59 = pneg %p53
      %p60 = scmp.eq.s32.totalorder %s28, 3
      %p61 = por %p59, %p60
      %p62 = scmp.ne.s32.totalorder %s54, %s57
      %p63 = scmp.eq.s32.totalorder %s28, 0
      %p64 = por %p62, %p63
      %p65 = scmp.ne.s32.totalorder %s54, %s57
      %p66 = scmp.eq.s32.totalorder %s33, 3
      %p67 = por %p65, %p66
      %p68 = scmp.ne.s32.totalorder %s57, %s58
      %p69 = scmp.eq.s32.totalorder %s33, 0
      %p70 = por %p68, %p69
      %p71 = scmp.ne.s32.totalorder %s57, %s58
      %p72 = scmp.eq.s32.totalorder %s34, 3
      %p73 = por %p71, %p72
      %p75 = scmp.ne.s32.totalorder %s58, %s74
      %p76 = scmp.eq.s32.totalorder %s34, 0
      %p77 = por %p75, %p76
      %s78 = smul.u32 %s35, 2
      %s79 = sadd.s32 %s78, %s36
      %s80 = smul.u32 %s47, 2
      %s81 = sadd.s32 %s80, %s43
      %s82 = ssub.s32 %s79, %s81
      %p83 = scmp.eq.s32.totalorder %s82, 0
      %s85 = sadd.s32 %s84, 1
      %s86 = scalar_select %p83, %s84, %s85
      %p89 = pneg %p83
      %p90 = scmp.eq.s32.totalorder %s28, 3
      %p91 = por %p89, %p90
      %p92 = scmp.ne.s32.totalorder %s84, %s87
      %p93 = scmp.eq.s32.totalorder %s28, 0
      %p94 = por %p92, %p93
      %p95 = scmp.ne.s32.totalorder %s84, %s87
      %p96 = scmp.eq.s32.totalorder %s33, 3
      %p97 = por %p95, %p96
      %p98 = scmp.ne.s32.totalorder %s87, %s88
      %p99 = scmp.eq.s32.totalorder %s33, 0
      %p100 = por %p98, %p99
      %p101 = scmp.ne.s32.totalorder %s87, %s88
      %p102 = scmp.eq.s32.totalorder %s34, 3
      %p103 = por %p101, %p102
      %p105 = scmp.ne.s32.totalorder %s88, %s104
      %p106 = scmp.eq.s32.totalorder %s34, 0
      %p107 = por %p105, %p106
      %s109 = sadd.s32 %s108, 1
      %p112 = scmp.eq.s32.totalorder %s28, 3
      %p113 = scmp.ne.s32.totalorder %s108, %s110
      %p114 = scmp.eq.s32.totalorder %s28, 0
      %p115 = por %p113, %p114
      %p116 = scmp.ne.s32.totalorder %s108, %s110
      %p117 = scmp.eq.s32.totalorder %s33, 3
      %p118 = por %p116, %p117
      %p119 = scmp.ne.s32.totalorder %s110, %s111
      %p120 = scmp.eq.s32.totalorder %s33, 0
      %p121 = por %p119, %p120
      %p122 = scmp.ne.s32.totalorder %s110, %s111
      %p123 = scmp.eq.s32.totalorder %s34, 3
      %p124 = por %p122, %p123
      %p126 = scmp.ne.s32.totalorder %s111, %s125
      %p127 = scmp.eq.s32.totalorder %s34, 0
      %p128 = por %p126, %p127
      %s130 = sadd.s32 %s129, 1
      %p133 = scmp.eq.s32.totalorder %s28, 3
      %p134 = scmp.ne.s32.totalorder %s129, %s131
      %p135 = scmp.eq.s32.totalorder %s28, 0
      %p136 = por %p134, %p135
      %p137 = scmp.ne.s32.totalorder %s129, %s131
      %p138 = scmp.eq.s32.totalorder %s33, 3
      %p139 = por %p137, %p138
      %p140 = scmp.ne.s32.totalorder %s131, %s132
      %p141 = scmp.eq.s32.totalorder %s33, 0
      %p142 = por %p140, %p141
      %p143 = scmp.ne.s32.totalorder %s131, %s132
      %p144 = scmp.eq.s32.totalorder %s34, 3
      %p145 = por %p143, %p144
      %p147 = scmp.ne.s32.totalorder %s132, %s146
      %p148 = scmp.eq.s32.totalorder %s34, 0
      %p149 = por %p147, %p148
      %s151 = sadd.s32 %s150, 1
      %p154 = scmp.eq.s32.totalorder %s28, 3
      %p155 = scmp.ne.s32.totalorder %s150, %s152
      %p156 = scmp.eq.s32.totalorder %s28, 0
      %p157 = por %p155, %p156
      %p158 = scmp.ne.s32.totalorder %s150, %s152
      %p159 = scmp.eq.s32.totalorder %s33, 3
      %p160 = por %p158, %p159
      %p161 = scmp.ne.s32.totalorder %s152, %s153
      %p162 = scmp.eq.s32.totalorder %s33, 0
      %p163 = por %p161, %p162
      %p164 = scmp.ne.s32.totalorder %s152, %s153
      %p165 = scmp.eq.s32.totalorder %s34, 3
      %p166 = por %p164, %p165
      %p168 = scmp.ne.s32.totalorder %s153, %s167
      %p169 = scmp.eq.s32.totalorder %s34, 0
      %p170 = por %p168, %p169
      %s172 = sadd.s32 %s171, 1
      %p175 = scmp.eq.s32.totalorder %s28, 3
      %p176 = scmp.ne.s32.totalorder %s171, %s173
      %p177 = scmp.eq.s32.totalorder %s28, 0
      %p178 = por %p176, %p177
      %p179 = scmp.ne.s32.totalorder %s171, %s173
      %p180 = scmp.eq.s32.totalorder %s33, 3
      %p181 = por %p179, %p180
      %p182 = scmp.ne.s32.totalorder %s173, %s174
      %p183 = scmp.eq.s32.totalorder %s33, 0
      %p184 = por %p182, %p183
      %p185 = scmp.ne.s32.totalorder %s173, %s174
      %p186 = scmp.eq.s32.totalorder %s34, 3
      %p187 = por %p185, %p186
      %p189 = scmp.ne.s32.totalorder %s174, %s188
      %p190 = scmp.eq.s32.totalorder %s34, 0
      %p191 = por %p189, %p190
      %s193 = sadd.s32 %s192, 1
      %p196 = scmp.eq.s32.totalorder %s28, 3
      %p197 = scmp.ne.s32.totalorder %s192, %s194
      %p198 = scmp.eq.s32.totalorder %s28, 0
      %p199 = por %p197, %p198
      %p200 = scmp.ne.s32.totalorder %s192, %s194
      %p201 = scmp.eq.s32.totalorder %s33, 3
      %p202 = por %p200, %p201
      %p203 = scmp.ne.s32.totalorder %s194, %s195
      %p204 = scmp.eq.s32.totalorder %s33, 0
      %p205 = por %p203, %p204
      %p206 = scmp.ne.s32.totalorder %s194, %s195
      %p207 = scmp.eq.s32.totalorder %s34, 3
      %p208 = por %p206, %p207
      %p210 = scmp.ne.s32.totalorder %s195, %s209
      %p211 = scmp.eq.s32.totalorder %s34, 0
      %p212 = por %p210, %p211
      %s213 = ssub.s32 %s35, %s47
      %p214 = scmp.eq.s32.totalorder %s213, 0
      %s216 = sadd.s32 %s215, 1
      %s217 = scalar_select %p214, %s215, %s216
      %p220 = pneg %p214
      %p221 = scmp.eq.s32.totalorder %s28, 3
      %p222 = por %p220, %p221
      %p223 = scmp.ne.s32.totalorder %s215, %s218
      %p224 = scmp.eq.s32.totalorder %s28, 0
      %p225 = por %p223, %p224
      %p226 = scmp.ne.s32.totalorder %s215, %s218
      %p227 = scmp.eq.s32.totalorder %s33, 3
      %p228 = por %p226, %p227
      %p229 = scmp.ne.s32.totalorder %s218, %s219
      %p230 = scmp.eq.s32.totalorder %s33, 0
      %p231 = por %p229, %p230
      %p232 = scmp.ne.s32.totalorder %s218, %s219
      %p233 = scmp.eq.s32.totalorder %s34, 3
      %p234 = por %p232, %p233
      %p236 = scmp.ne.s32.totalorder %s219, %s235
      %p237 = scmp.eq.s32.totalorder %s34, 0
      %p238 = por %p236, %p237
      %s239 = ssub.s32 %s35, %s47
      %p240 = scmp.eq.s32.totalorder %s239, 0
      %s242 = sadd.s32 %s241, 1
      %s243 = scalar_select %p240, %s241, %s242
      %p246 = pneg %p240
      %p247 = scmp.eq.s32.totalorder %s28, 3
      %p248 = por %p246, %p247
      %p249 = scmp.ne.s32.totalorder %s241, %s244
      %p250 = scmp.eq.s32.totalorder %s28, 0
      %p251 = por %p249, %p250
      %p252 = scmp.ne.s32.totalorder %s241, %s244
      %p253 = scmp.eq.s32.totalorder %s33, 3
      %p254 = por %p252, %p253
      %p255 = scmp.ne.s32.totalorder %s244, %s245
      %p256 = scmp.eq.s32.totalorder %s33, 0
      %p257 = por %p255, %p256
      %p258 = scmp.ne.s32.totalorder %s244, %s245
      %p259 = scmp.eq.s32.totalorder %s34, 3
      %p260 = por %p258, %p259
      %p262 = scmp.ne.s32.totalorder %s245, %s261
      %p263 = scmp.eq.s32.totalorder %s34, 0
      %p264 = por %p262, %p263
      %s265 = ssub.s32 %s35, %s47
      %p266 = scmp.eq.s32.totalorder %s265, 0
      %s268 = sadd.s32 %s267, 1
      %s269 = scalar_select %p266, %s267, %s268
      %p272 = pneg %p266
      %p273 = scmp.eq.s32.totalorder %s28, 3
      %p274 = por %p272, %p273
      %p275 = scmp.ne.s32.totalorder %s267, %s270
      %p276 = scmp.eq.s32.totalorder %s28, 0
      %p277 = por %p275, %p276
      %p278 = scmp.ne.s32.totalorder %s267, %s270
      %p279 = scmp.eq.s32.totalorder %s33, 3
      %p280 = por %p278, %p279
      %p281 = scmp.ne.s32.totalorder %s270, %s271
      %p282 = scmp.eq.s32.totalorder %s33, 0
      %p283 = por %p281, %p282
      %p284 = scmp.ne.s32.totalorder %s270, %s271
      %p285 = scmp.eq.s32.totalorder %s34, 3
      %p286 = por %p284, %p285
      %p288 = scmp.ne.s32.totalorder %s271, %s287
      %p289 = scmp.eq.s32.totalorder %s34, 0
      %p290 = por %p288, %p289
      %p291 = scmp.le.s32.totalorder 1, %s28
      %p292 = scmp.lt.s32.totalorder %s28, 5
      %p293 = pnand %p291, %p292
      %p294 = pneg %p293
      // Predicated region
      $region9: #{tpu_custom_call.1} parent=5 // pred_check
        _
      $region10: #{tpu_custom_call.1} parent=5 // pred_check_branch
        %296 = sbr.rel (%p293) target = $region12
      $region11: #{tpu_custom_call.1} parent=5 // pred_region
        %s297 = ssub.s32 %s28, 1
        // Predicated region
        $region13: #{tpu_custom_call.1} parent=11 // pred_check
          %p298 = pneg %p121
        $region14: #{tpu_custom_call.1} parent=11 // pred_check_branch
          %300 = sbr.rel (%p298) target = $region16
        $region15: #{tpu_custom_call.1} parent=11 // pred_region
          %s302 = ssub.s32 2048, 2048
          %303 = vsyncadd [#allocation8], %s302
          %s304 = sshll.u32 [#allocation9], 4
          %s305 = int_to_ptr.vmem [resolvable:$true] %s304
          %310 = dma.hbm_to_vmem [thread:$0]  %s2, 2048, %s305, [#allocation8], 64, 64, 4
        $region16: #{tpu_custom_call.1} parent=11 // pred_fallthru
          _
        // Predicated region
        $region17: #{tpu_custom_call.1} parent=11 // pred_check
          %p311 = pneg %p142
        $region18: #{tpu_custom_call.1} parent=11 // pred_check_branch
          %313 = sbr.rel (%p311) target = $region20
        $region19: #{tpu_custom_call.1} parent=11 // pred_region
          %s315 = ssub.s32 16, 16
          %316 = vsyncadd [#allocation11], %s315
          %s318 = sshll.u32 [#allocation10], 4
          %s319 = int_to_ptr.vmem [resolvable:$true] %s318
          %321 = dma.hbm_to_vmem [thread:$0]  %s3, 16, %s319, [#allocation11]
        $region20: #{tpu_custom_call.1} parent=11 // pred_fallthru
          _
        // Predicated region
        $region21: #{tpu_custom_call.1} parent=11 // pred_check
          %p322 = pneg %p163
        $region22: #{tpu_custom_call.1} parent=11 // pred_check_branch
          %324 = sbr.rel (%p322) target = $region24
        $region23: #{tpu_custom_call.1} parent=11 // pred_region
          %s326 = ssub.s32 16, 16
          %327 = vsyncadd [#allocation11], %s326
          %s329 = sshll.u32 [#allocation12], 4
          %s330 = int_to_ptr.vmem [resolvable:$true] %s329
          %332 = dma.hbm_to_vmem [thread:$0]  %s4, 16, %s330, [#allocation11]
        $region24: #{tpu_custom_call.1} parent=11 // pred_fallthru
          _
        // Predicated region
        $region25: #{tpu_custom_call.1} parent=11 // pred_check
          %p333 = pneg %p184
        $region26: #{tpu_custom_call.1} parent=11 // pred_check_branch
          %335 = sbr.rel (%p333) target = $region28
        $region27: #{tpu_custom_call.1} parent=11 // pred_region
          _
        $region28: #{tpu_custom_call.1} parent=11 // pred_fallthru
          _
        // Predicated region
        $region29: #{tpu_custom_call.1} parent=11 // pred_check
          %p336 = pneg %p205
        $region30: #{tpu_custom_call.1} parent=11 // pred_check_branch
          %338 = sbr.rel (%p336) target = $region32
        $region31: #{tpu_custom_call.1} parent=11 // pred_region
          _
        $region32: #{tpu_custom_call.1} parent=11 // pred_fallthru
          _
      $region12: #{tpu_custom_call.1} parent=5 // pred_fallthru
        _
      %p339 = scmp.lt.s32.totalorder %s28, 4
      // Predicated region
      $region33: #{tpu_custom_call.1} parent=5 // pred_check
        %p340 = pneg %p339
      $region34: #{tpu_custom_call.1} parent=5 // pred_check_branch
        %342 = sbr.rel (%p340) target = $region36
      $region35: #{tpu_custom_call.1} parent=5 // pred_region
        // Predicated region
        $region37: #{tpu_custom_call.1} parent=35 // pred_check
          %p343 = pneg %p64
        $region38: #{tpu_custom_call.1} parent=35 // pred_check_branch
          %345 = sbr.rel (%p343) target = $region40
        $region39: #{tpu_custom_call.1} parent=35 // pred_region
          %s346 = sand.u32 %s54, 1
          %s347 = scalar_lea.sflag [#allocation5], %s346
          %s348 = sand.u32 %s54, 1
          %s349 = smul.addr %s348, 1024
          %s350 = scalar_lea.vmem [#allocation4], %s349
          %s351 = smul.u32 %s35, 2
          %s352 = sadd.s32 %s351, %s36
          %s353 = smul.u32 64, %s352
          %s354 = ssub.s32 250, %s353
          %p355 = scmp.lt.s32.totalorder %s354, 64
          %s356 = scalar_select %p355, %s354, 64
          %s357 = smul.u32 128, %s356
          %s358 = smul.u32 %s357, 2
          %s360 = ssub.s32 16384, %s358
          %361 = vsyncadd %s347, %s360
          %p362 = scmp.ne.s32.totalorder 0, %s358
          %s363 = smul.addr %s353, 2
          %s364 = smul.addr %s363, 128
          %s365 = scalar_lea.hbm %s0, %s364
          %s366 = smul.u32 16, %s356
          %s367 = sshll.u32 %s350, 4
          %s368 = int_to_ptr.vmem [resolvable:$true] %s367
          %s369 = sshll.u32 %s366, 4
          %373 = dma.hbm_to_vmem [thread:$0]  (%p362), %s365, %s369, %s368, %s347, 256, 256, 16
        $region40: #{tpu_custom_call.1} parent=35 // pred_fallthru
          _
        // Predicated region
        $region41: #{tpu_custom_call.1} parent=35 // pred_check
          %p374 = pneg %p94
        $region42: #{tpu_custom_call.1} parent=35 // pred_check_branch
          %376 = sbr.rel (%p374) target = $region44
        $region43: #{tpu_custom_call.1} parent=35 // pred_region
          %s377 = sand.u32 %s28, 1
          %s378 = scalar_lea.sflag [#allocation8], %s377
          %s379 = sand.u32 %s84, 1
          %s380 = smul.addr %s379, 4
          %s381 = scalar_lea.vmem [#allocation7], %s380
          %s382 = smul.u32 %s35, 2
          %s383 = sadd.s32 %s382, %s36
          %s384 = smul.u32 4, %s383
          %s386 = ssub.s32 64, 64
          %387 = vsyncadd %s378, %s386
          %s388 = smul.addr %s384, 16
          %s389 = scalar_lea.hbm %s1, %s388
          %s391 = sshll.u32 %s381, 4
          %s392 = int_to_ptr.vmem [resolvable:$true] %s391
          %394 = dma.hbm_to_vmem [thread:$0]  %s389, 64, %s392, %s378
        $region44: #{tpu_custom_call.1} parent=35 // pred_fallthru
          _
      $region36: #{tpu_custom_call.1} parent=5 // pred_fallthru
        _
      %p395 = scmp.le.s32.totalorder 1, %s28
      %p396 = scmp.lt.s32.totalorder %s28, 5
      %p397 = pnand %p395, %p396
      %p398 = pneg %p397
      // Predicated region
      $region45: #{tpu_custom_call.1} parent=5 // pred_check
        _
      $region46: #{tpu_custom_call.1} parent=5 // pred_check_branch
        %400 = sbr.rel (%p397) target = $region48
      $region47: #{tpu_custom_call.1} parent=5 // pred_region
        %s401 = ssub.s32 %s28, 1
        %s402 = sand.u32 %s57, 1
        %s403 = scalar_lea.sflag [#allocation5], %s402
        %s404 = sand.u32 %s57, 1
        %s405 = smul.addr %s404, 1024
        %s406 = scalar_lea.vmem [#allocation4], %s405
        // Predicated region
        $region49: #{tpu_custom_call.1} parent=47 // pred_check
          %p407 = pneg %p70
        $region50: #{tpu_custom_call.1} parent=47 // pred_check_branch
          %409 = sbr.rel (%p407) target = $region52
        $region51: #{tpu_custom_call.1} parent=47 // pred_region
          %410 = dma.done %s403, 16384
        $region52: #{tpu_custom_call.1} parent=47 // pred_fallthru
          _
        %s411 = sand.u32 %s33, 1
        %s412 = scalar_lea.sflag [#allocation8], %s411
        %s413 = sand.u32 %s87, 1
        %s414 = smul.addr %s413, 4
        %s415 = scalar_lea.vmem [#allocation7], %s414
        // Predicated region
        $region53: #{tpu_custom_call.1} parent=47 // pred_check
          %p416 = pneg %p100
        $region54: #{tpu_custom_call.1} parent=47 // pred_check_branch
          %418 = sbr.rel (%p416) target = $region56
        $region55: #{tpu_custom_call.1} parent=47 // pred_region
          %419 = dma.done %s412, 64
        $region56: #{tpu_custom_call.1} parent=47 // pred_fallthru
          _
        // Predicated region
        $region57: #{tpu_custom_call.1} parent=47 // pred_check
          %p420 = pneg %p121
        $region58: #{tpu_custom_call.1} parent=47 // pred_check_branch
          %422 = sbr.rel (%p420) target = $region60
        $region59: #{tpu_custom_call.1} parent=47 // pred_region
          %423 = dma.done [#allocation8], 2048
        $region60: #{tpu_custom_call.1} parent=47 // pred_fallthru
          _
        // Predicated region
        $region61: #{tpu_custom_call.1} parent=47 // pred_check
          %p424 = pneg %p142
        $region62: #{tpu_custom_call.1} parent=47 // pred_check_branch
          %426 = sbr.rel (%p424) target = $region64
        $region63: #{tpu_custom_call.1} parent=47 // pred_region
          %427 = dma.done [#allocation11], 16
        $region64: #{tpu_custom_call.1} parent=47 // pred_fallthru
          _
        // Predicated region
        $region65: #{tpu_custom_call.1} parent=47 // pred_check
          %p428 = pneg %p163
        $region66: #{tpu_custom_call.1} parent=47 // pred_check_branch
          %430 = sbr.rel (%p428) target = $region68
        $region67: #{tpu_custom_call.1} parent=47 // pred_region
          %431 = dma.done [#allocation11], 16
        $region68: #{tpu_custom_call.1} parent=47 // pred_fallthru
          _
        %s432 = sand.u32 %s57, 1
        %s433 = scalar_lea.sflag [#allocation5], %s432
        %s434 = sand.u32 %s57, 1
        %s435 = smul.addr %s434, 1024
        %s436 = scalar_lea.vmem [#allocation4], %s435
        %p437 = pneg %p70
        %p438 = pneg %p67
        %s439 = sand.u32 %s33, 1
        %s440 = scalar_lea.sflag [#allocation8], %s439
        %s441 = sand.u32 %s87, 1
        %s442 = smul.addr %s441, 4
        %s443 = scalar_lea.vmem [#allocation7], %s442
        %p444 = pneg %p100
        %p445 = pneg %p97
        %p446 = pneg %p121
        %p447 = pneg %p118
        %p448 = pneg %p142
        %p449 = pneg %p139
        %p450 = pneg %p163
        %p451 = pneg %p160
        %p452 = pneg %p184
        %p453 = pneg %p181
        %p454 = pneg %p205
        %p455 = pneg %p202
        %p456 = pneg %p231
        %p457 = pneg %p228
        %s458 = sand.u32 %s218, 1
        %s459 = scalar_lea.sflag [#allocation6], %s458
        %s460 = sand.u32 %s218, 1
        %s461 = smul.addr %s460, 8
        %s462 = scalar_lea.vmem [#allocation13], %s461
        %p463 = pneg %p257
        %p464 = pneg %p254
        %p465 = scmp.lt.s32.totalorder %s37, 1
        %s466 = scalar_select %p465, %s37, 1
        %s467 = scalar_lea.vmem %s8, %s466
        %p468 = pneg %p283
        %p469 = pneg %p280
        %p470 = scmp.lt.s32.totalorder %s37, 1
        %s471 = scalar_select %p470, %s37, 1
        %s472 = scalar_lea.vmem %s9, %s471
        %s473 = smul.u32 %s37, 2
        %s474 = sadd.s32 %s473, %s38
        %s475 = smul.u32 64, %s474
        %s476 = ssub.s32 250, %s475
        %p477 = scmp.lt.s32.totalorder %s476, 64
        %s478 = scalar_select %p477, %s476, 64
        %s479 = smul.u32 128, %s478
        %s480 = smul.u32 %s479, 2
        %s481 = smul.u32 %s37, 2
        %s482 = sadd.s32 %s481, %s38
        %s483 = smul.u32 4, %s482
        %p484 = scmp.lt.s32.totalorder %s37, 1
        %s485 = scalar_select %p484, %s37, 1
        %s486 = scalar_lea.vmem %s8, %s485
        %p487 = scmp.lt.s32.totalorder %s37, 1
        %s488 = scalar_select %p487, %s37, 1
        %s489 = scalar_lea.vmem %s9, %s488
        %p491 = scmp.eq.s32.totalorder %s38, 0
        // Predicated region
        $region69: #{tpu_custom_call.1} parent=47 // pred_check
          %p492 = pneg %p491
        $region70: #{tpu_custom_call.1} parent=47 // pred_check_branch
          %494 = sbr.rel (%p492) target = $region72
        $region71: #{tpu_custom_call.1} parent=47 // pred_region
          %495 = vst [vmem:[%s462] sm:$0xff] 0.0
          %vm496 = vcmask 0
          %497 = vst.msk [vmem:[%s486] sm:$0x1] %vm496, -inf
          %498 = vst.msk [vmem:[%s489] sm:$0x1] %vm496, 0.0
        $region72: #{tpu_custom_call.1} parent=47 // pred_fallthru
          _
        %s499 = smul.u32 %s37, 2
        %s500 = sadd.s32 %s499, %s38
        %s501 = smul.u32 %s500, 512
        %v502 = vlaneseq
        %v503 = vshrl.u32 %v502, 7
        %v504 = vadd.s32 %v503, 8
        %v505 = vadd.s32 %v503, 16
        %v506 = vadd.s32 %v503, 24
        %v507 = vadd.s32 %v503, 32
        %v508 = vadd.s32 %v503, 40
        %v509 = vadd.s32 %v503, 48
        %v510 = vadd.s32 %v503, 56
        %v511 = vadd.s32 %v503, 64
        %v512 = vadd.s32 %v503, 72
        %v513 = vadd.s32 %v503, 80
        %v514 = vadd.s32 %v503, 88
        %v515 = vadd.s32 %v503, 96
        %v516 = vadd.s32 %v503, 104
        %v517 = vadd.s32 %v503, 112
        %v518 = vadd.s32 %v503, 120
        %v519 = vadd.s32 %v503, 128
        %v520 = vadd.s32 %v503, 136
        %v521 = vadd.s32 %v503, 144
        %v522 = vadd.s32 %v503, 152
        %v523 = vadd.s32 %v503, 160
        %v524 = vadd.s32 %v503, 168
        %v525 = vadd.s32 %v503, 176
        %v526 = vadd.s32 %v503, 184
        %v527 = vadd.s32 %v503, 192
        %v528 = vadd.s32 %v503, 200
        %v529 = vadd.s32 %v503, 208
        %v530 = vadd.s32 %v503, 216
        %v531 = vadd.s32 %v503, 224
        %v532 = vadd.s32 %v503, 232
        %v533 = vadd.s32 %v503, 240
        %v534 = vadd.s32 %v503, 248
        %v535 = vadd.s32 %v503, 256
        %v536 = vadd.s32 %v503, 264
        %v537 = vadd.s32 %v503, 272
        %v538 = vadd.s32 %v503, 280
        %v539 = vadd.s32 %v503, 288
        %v540 = vadd.s32 %v503, 296
        %v541 = vadd.s32 %v503, 304
        %v542 = vadd.s32 %v503, 312
        %v543 = vadd.s32 %v503, 320
        %v544 = vadd.s32 %v503, 328
        %v545 = vadd.s32 %v503, 336
        %v546 = vadd.s32 %v503, 344
        %v547 = vadd.s32 %v503, 352
        %v548 = vadd.s32 %v503, 360
        %v549 = vadd.s32 %v503, 368
        %v550 = vadd.s32 %v503, 376
        %v551 = vadd.s32 %v503, 384
        %v552 = vadd.s32 %v503, 392
        %v553 = vadd.s32 %v503, 400
        %v554 = vadd.s32 %v503, 408
        %v555 = vadd.s32 %v503, 416
        %v556 = vadd.s32 %v503, 424
        %v557 = vadd.s32 %v503, 432
        %v558 = vadd.s32 %v503, 440
        %v559 = vadd.s32 %v503, 448
        %v560 = vadd.s32 %v503, 456
        %v561 = vadd.s32 %v503, 464
        %v562 = vadd.s32 %v503, 472
        %v563 = vadd.s32 %v503, 480
        %v564 = vadd.s32 %v503, 488
        %v565 = vadd.s32 %v503, 496
        %v566 = vadd.s32 %v503, 504
        %v567 = vstv %s501
        %v568 = vadd.s32 %v567, %v503
        %v569 = vadd.s32 %v567, %v504
        %v570 = vadd.s32 %v567, %v505
        %v571 = vadd.s32 %v567, %v506
        %v572 = vadd.s32 %v567, %v507
        %v573 = vadd.s32 %v567, %v508
        %v574 = vadd.s32 %v567, %v509
        %v575 = vadd.s32 %v567, %v510
        %v576 = vadd.s32 %v567, %v511
        %v577 = vadd.s32 %v567, %v512
        %v578 = vadd.s32 %v567, %v513
        %v579 = vadd.s32 %v567, %v514
        %v580 = vadd.s32 %v567, %v515
        %v581 = vadd.s32 %v567, %v516
        %v582 = vadd.s32 %v567, %v517
        %v583 = vadd.s32 %v567, %v518
        %v584 = vadd.s32 %v567, %v519
        %v585 = vadd.s32 %v567, %v520
        %v586 = vadd.s32 %v567, %v521
        %v587 = vadd.s32 %v567, %v522
        %v588 = vadd.s32 %v567, %v523
        %v589 = vadd.s32 %v567, %v524
        %v590 = vadd.s32 %v567, %v525
        %v591 = vadd.s32 %v567, %v526
        %v592 = vadd.s32 %v567, %v527
        %v593 = vadd.s32 %v567, %v528
        %v594 = vadd.s32 %v567, %v529
        %v595 = vadd.s32 %v567, %v530
        %v596 = vadd.s32 %v567, %v531
        %v597 = vadd.s32 %v567, %v532
        %v598 = vadd.s32 %v567, %v533
        %v599 = vadd.s32 %v567, %v534
        %v600 = vadd.s32 %v567, %v535
        %v601 = vadd.s32 %v567, %v536
        %v602 = vadd.s32 %v567, %v537
        %v603 = vadd.s32 %v567, %v538
        %v604 = vadd.s32 %v567, %v539
        %v605 = vadd.s32 %v567, %v540
        %v606 = vadd.s32 %v567, %v541
        %v607 = vadd.s32 %v567, %v542
        %v608 = vadd.s32 %v567, %v543
        %v609 = vadd.s32 %v567, %v544
        %v610 = vadd.s32 %v567, %v545
        %v611 = vadd.s32 %v567, %v546
        %v612 = vadd.s32 %v567, %v547
        %v613 = vadd.s32 %v567, %v548
        %v614 = vadd.s32 %v567, %v549
        %v615 = vadd.s32 %v567, %v550
        %v616 = vadd.s32 %v567, %v551
        %v617 = vadd.s32 %v567, %v552
        %v618 = vadd.s32 %v567, %v553
        %v619 = vadd.s32 %v567, %v554
        %v620 = vadd.s32 %v567, %v555
        %v621 = vadd.s32 %v567, %v556
        %v622 = vadd.s32 %v567, %v557
        %v623 = vadd.s32 %v567, %v558
        %v624 = vadd.s32 %v567, %v559
        %v625 = vadd.s32 %v567, %v560
        %v626 = vadd.s32 %v567, %v561
        %v627 = vadd.s32 %v567, %v562
        %v628 = vadd.s32 %v567, %v563
        %v629 = vadd.s32 %v567, %v564
        %v630 = vadd.s32 %v567, %v565
        %v631 = vadd.s32 %v567, %v566
        %s632 = sld [smem:[#allocation3]]
        %v633 = vstv %s632
        %vm634 = vcmp.lt.s32.totalorder %v568, %v633
        %vm635 = vcmp.lt.s32.totalorder %v569, %v633
        %vm636 = vcmp.lt.s32.totalorder %v570, %v633
        %vm637 = vcmp.lt.s32.totalorder %v571, %v633
        %vm638 = vcmp.lt.s32.totalorder %v572, %v633
        %vm639 = vcmp.lt.s32.totalorder %v573, %v633
        %vm640 = vcmp.lt.s32.totalorder %v574, %v633
        %vm641 = vcmp.lt.s32.totalorder %v575, %v633
        %vm642 = vcmp.lt.s32.totalorder %v576, %v633
        %vm643 = vcmp.lt.s32.totalorder %v577, %v633
        %vm644 = vcmp.lt.s32.totalorder %v578, %v633
        %vm645 = vcmp.lt.s32.totalorder %v579, %v633
        %vm646 = vcmp.lt.s32.totalorder %v580, %v633
        %vm647 = vcmp.lt.s32.totalorder %v581, %v633
        %vm648 = vcmp.lt.s32.totalorder %v582, %v633
        %vm649 = vcmp.lt.s32.totalorder %v583, %v633
        %vm650 = vcmp.lt.s32.totalorder %v584, %v633
        %vm651 = vcmp.lt.s32.totalorder %v585, %v633
        %vm652 = vcmp.lt.s32.totalorder %v586, %v633
        %vm653 = vcmp.lt.s32.totalorder %v587, %v633
        %vm654 = vcmp.lt.s32.totalorder %v588, %v633
        %vm655 = vcmp.lt.s32.totalorder %v589, %v633
        %vm656 = vcmp.lt.s32.totalorder %v590, %v633
        %vm657 = vcmp.lt.s32.totalorder %v591, %v633
        %vm658 = vcmp.lt.s32.totalorder %v592, %v633
        %vm659 = vcmp.lt.s32.totalorder %v593, %v633
        %vm660 = vcmp.lt.s32.totalorder %v594, %v633
        %vm661 = vcmp.lt.s32.totalorder %v595, %v633
        %vm662 = vcmp.lt.s32.totalorder %v596, %v633
        %vm663 = vcmp.lt.s32.totalorder %v597, %v633
        %vm664 = vcmp.lt.s32.totalorder %v598, %v633
        %vm665 = vcmp.lt.s32.totalorder %v599, %v633
        %vm666 = vcmp.lt.s32.totalorder %v600, %v633
        %vm667 = vcmp.lt.s32.totalorder %v601, %v633
        %vm668 = vcmp.lt.s32.totalorder %v602, %v633
        %vm669 = vcmp.lt.s32.totalorder %v603, %v633
        %vm670 = vcmp.lt.s32.totalorder %v604, %v633
        %vm671 = vcmp.lt.s32.totalorder %v605, %v633
        %vm672 = vcmp.lt.s32.totalorder %v606, %v633
        %vm673 = vcmp.lt.s32.totalorder %v607, %v633
        %vm674 = vcmp.lt.s32.totalorder %v608, %v633
        %vm675 = vcmp.lt.s32.totalorder %v609, %v633
        %vm676 = vcmp.lt.s32.totalorder %v610, %v633
        %vm677 = vcmp.lt.s32.totalorder %v611, %v633
        %vm678 = vcmp.lt.s32.totalorder %v612, %v633
        %vm679 = vcmp.lt.s32.totalorder %v613, %v633
        %vm680 = vcmp.lt.s32.totalorder %v614, %v633
        %vm681 = vcmp.lt.s32.totalorder %v615, %v633
        %vm682 = vcmp.lt.s32.totalorder %v616, %v633
        %vm683 = vcmp.lt.s32.totalorder %v617, %v633
        %vm684 = vcmp.lt.s32.totalorder %v618, %v633
        %vm685 = vcmp.lt.s32.totalorder %v619, %v633
        %vm686 = vcmp.lt.s32.totalorder %v620, %v633
        %vm687 = vcmp.lt.s32.totalorder %v621, %v633
        %vm688 = vcmp.lt.s32.totalorder %v622, %v633
        %vm689 = vcmp.lt.s32.totalorder %v623, %v633
        %vm690 = vcmp.lt.s32.totalorder %v624, %v633
        %vm691 = vcmp.lt.s32.totalorder %v625, %v633
        %vm692 = vcmp.lt.s32.totalorder %v626, %v633
        %vm693 = vcmp.lt.s32.totalorder %v627, %v633
        %vm694 = vcmp.lt.s32.totalorder %v628, %v633
        %vm695 = vcmp.lt.s32.totalorder %v629, %v633
        %vm696 = vcmp.lt.s32.totalorder %v630, %v633
        %vm697 = vcmp.lt.s32.totalorder %v631, %v633
        %v698 = vld [vmem:[%s406] sm:$0xff]
        %v699 = vld [vmem:[%s406 + $0x8] sm:$0xff]
        %v700 = vld [vmem:[%s406 + $0x10] sm:$0xff]
        %v701 = vld [vmem:[%s406 + $0x18] sm:$0xff]
        %v702 = vld [vmem:[%s406 + $0x20] sm:$0xff]
        %v703 = vld [vmem:[%s406 + $0x28] sm:$0xff]
        %v704 = vld [vmem:[%s406 + $0x30] sm:$0xff]
        %v705 = vld [vmem:[%s406 + $0x38] sm:$0xff]
        %v706 = vld [vmem:[%s406 + $0x40] sm:$0xff]
        %v707 = vld [vmem:[%s406 + $0x48] sm:$0xff]
        %v708 = vld [vmem:[%s406 + $0x50] sm:$0xff]
        %v709 = vld [vmem:[%s406 + $0x58] sm:$0xff]
        %v710 = vld [vmem:[%s406 + $0x60] sm:$0xff]
        %v711 = vld [vmem:[%s406 + $0x68] sm:$0xff]
        %v712 = vld [vmem:[%s406 + $0x70] sm:$0xff]
        %v713 = vld [vmem:[%s406 + $0x78] sm:$0xff]
        %v714 = vld [vmem:[%s406 + $0x80] sm:$0xff]
        %v715 = vld [vmem:[%s406 + $0x88] sm:$0xff]
        %v716 = vld [vmem:[%s406 + $0x90] sm:$0xff]
        %v717 = vld [vmem:[%s406 + $0x98] sm:$0xff]
        %v718 = vld [vmem:[%s406 + $0xa0] sm:$0xff]
        %v719 = vld [vmem:[%s406 + $0xa8] sm:$0xff]
        %v720 = vld [vmem:[%s406 + $0xb0] sm:$0xff]
        %v721 = vld [vmem:[%s406 + $0xb8] sm:$0xff]
        %v722 = vld [vmem:[%s406 + $0xc0] sm:$0xff]
        %v723 = vld [vmem:[%s406 + $0xc8] sm:$0xff]
        %v724 = vld [vmem:[%s406 + $0xd0] sm:$0xff]
        %v725 = vld [vmem:[%s406 + $0xd8] sm:$0xff]
        %v726 = vld [vmem:[%s406 + $0xe0] sm:$0xff]
        %v727 = vld [vmem:[%s406 + $0xe8] sm:$0xff]
        %v728 = vld [vmem:[%s406 + $0xf0] sm:$0xff]
        %v729 = vld [vmem:[%s406 + $0xf8] sm:$0xff]
        %v730 = vld [vmem:[%s406 + $0x100] sm:$0xff]
        %v731 = vld [vmem:[%s406 + $0x108] sm:$0xff]
        %v732 = vld [vmem:[%s406 + $0x110] sm:$0xff]
        %v733 = vld [vmem:[%s406 + $0x118] sm:$0xff]
        %v734 = vld [vmem:[%s406 + $0x120] sm:$0xff]
        %v735 = vld [vmem:[%s406 + $0x128] sm:$0xff]
        %v736 = vld [vmem:[%s406 + $0x130] sm:$0xff]
        %v737 = vld [vmem:[%s406 + $0x138] sm:$0xff]
        %v738 = vld [vmem:[%s406 + $0x140] sm:$0xff]
        %v739 = vld [vmem:[%s406 + $0x148] sm:$0xff]
        %v740 = vld [vmem:[%s406 + $0x150] sm:$0xff]
        %v741 = vld [vmem:[%s406 + $0x158] sm:$0xff]
        %v742 = vld [vmem:[%s406 + $0x160] sm:$0xff]
        %v743 = vld [vmem:[%s406 + $0x168] sm:$0xff]
        %v744 = vld [vmem:[%s406 + $0x170] sm:$0xff]
        %v745 = vld [vmem:[%s406 + $0x178] sm:$0xff]
        %v746 = vld [vmem:[%s406 + $0x180] sm:$0xff]
        %v747 = vld [vmem:[%s406 + $0x188] sm:$0xff]
        %v748 = vld [vmem:[%s406 + $0x190] sm:$0xff]
        %v749 = vld [vmem:[%s406 + $0x198] sm:$0xff]
        %v750 = vld [vmem:[%s406 + $0x1a0] sm:$0xff]
        %v751 = vld [vmem:[%s406 + $0x1a8] sm:$0xff]
        %v752 = vld [vmem:[%s406 + $0x1b0] sm:$0xff]
        %v753 = vld [vmem:[%s406 + $0x1b8] sm:$0xff]
        %v754 = vld [vmem:[%s406 + $0x1c0] sm:$0xff]
        %v755 = vld [vmem:[%s406 + $0x1c8] sm:$0xff]
        %v756 = vld [vmem:[%s406 + $0x1d0] sm:$0xff]
        %v757 = vld [vmem:[%s406 + $0x1d8] sm:$0xff]
        %v758 = vld [vmem:[%s406 + $0x1e0] sm:$0xff]
        %v759 = vld [vmem:[%s406 + $0x1e8] sm:$0xff]
        %v760 = vld [vmem:[%s406 + $0x1f0] sm:$0xff]
        %v761 = vld [vmem:[%s406 + $0x1f8] sm:$0xff]
        %v762 = vld [vmem:[%s406 + $0x200] sm:$0xff]
        %v763 = vld [vmem:[%s406 + $0x208] sm:$0xff]
        %v764 = vld [vmem:[%s406 + $0x210] sm:$0xff]
        %v765 = vld [vmem:[%s406 + $0x218] sm:$0xff]
        %v766 = vld [vmem:[%s406 + $0x220] sm:$0xff]
        %v767 = vld [vmem:[%s406 + $0x228] sm:$0xff]
        %v768 = vld [vmem:[%s406 + $0x230] sm:$0xff]
        %v769 = vld [vmem:[%s406 + $0x238] sm:$0xff]
        %v770 = vld [vmem:[%s406 + $0x240] sm:$0xff]
        %v771 = vld [vmem:[%s406 + $0x248] sm:$0xff]
        %v772 = vld [vmem:[%s406 + $0x250] sm:$0xff]
        %v773 = vld [vmem:[%s406 + $0x258] sm:$0xff]
        %v774 = vld [vmem:[%s406 + $0x260] sm:$0xff]
        %v775 = vld [vmem:[%s406 + $0x268] sm:$0xff]
        %v776 = vld [vmem:[%s406 + $0x270] sm:$0xff]
        %v777 = vld [vmem:[%s406 + $0x278] sm:$0xff]
        %v778 = vld [vmem:[%s406 + $0x280] sm:$0xff]
        %v779 = vld [vmem:[%s406 + $0x288] sm:$0xff]
        %v780 = vld [vmem:[%s406 + $0x290] sm:$0xff]
        %v781 = vld [vmem:[%s406 + $0x298] sm:$0xff]
        %v782 = vld [vmem:[%s406 + $0x2a0] sm:$0xff]
        %v783 = vld [vmem:[%s406 + $0x2a8] sm:$0xff]
        %v784 = vld [vmem:[%s406 + $0x2b0] sm:$0xff]
        %v785 = vld [vmem:[%s406 + $0x2b8] sm:$0xff]
        %v786 = vld [vmem:[%s406 + $0x2c0] sm:$0xff]
        %v787 = vld [vmem:[%s406 + $0x2c8] sm:$0xff]
        %v788 = vld [vmem:[%s406 + $0x2d0] sm:$0xff]
        %v789 = vld [vmem:[%s406 + $0x2d8] sm:$0xff]
        %v790 = vld [vmem:[%s406 + $0x2e0] sm:$0xff]
        %v791 = vld [vmem:[%s406 + $0x2e8] sm:$0xff]
        %v792 = vld [vmem:[%s406 + $0x2f0] sm:$0xff]
        %v793 = vld [vmem:[%s406 + $0x2f8] sm:$0xff]
        %v794 = vld [vmem:[%s406 + $0x300] sm:$0xff]
        %v795 = vld [vmem:[%s406 + $0x308] sm:$0xff]
        %v796 = vld [vmem:[%s406 + $0x310] sm:$0xff]
        %v797 = vld [vmem:[%s406 + $0x318] sm:$0xff]
        %v798 = vld [vmem:[%s406 + $0x320] sm:$0xff]
        %v799 = vld [vmem:[%s406 + $0x328] sm:$0xff]
        %v800 = vld [vmem:[%s406 + $0x330] sm:$0xff]
        %v801 = vld [vmem:[%s406 + $0x338] sm:$0xff]
        %v802 = vld [vmem:[%s406 + $0x340] sm:$0xff]
        %v803 = vld [vmem:[%s406 + $0x348] sm:$0xff]
        %v804 = vld [vmem:[%s406 + $0x350] sm:$0xff]
        %v805 = vld [vmem:[%s406 + $0x358] sm:$0xff]
        %v806 = vld [vmem:[%s406 + $0x360] sm:$0xff]
        %v807 = vld [vmem:[%s406 + $0x368] sm:$0xff]
        %v808 = vld [vmem:[%s406 + $0x370] sm:$0xff]
        %v809 = vld [vmem:[%s406 + $0x378] sm:$0xff]
        %v810 = vld [vmem:[%s406 + $0x380] sm:$0xff]
        %v811 = vld [vmem:[%s406 + $0x388] sm:$0xff]
        %v812 = vld [vmem:[%s406 + $0x390] sm:$0xff]
        %v813 = vld [vmem:[%s406 + $0x398] sm:$0xff]
        %v814 = vld [vmem:[%s406 + $0x3a0] sm:$0xff]
        %v815 = vld [vmem:[%s406 + $0x3a8] sm:$0xff]
        %v816 = vld [vmem:[%s406 + $0x3b0] sm:$0xff]
        %v817 = vld [vmem:[%s406 + $0x3b8] sm:$0xff]
        %v818 = vld [vmem:[%s406 + $0x3c0] sm:$0xff]
        %v819 = vld [vmem:[%s406 + $0x3c8] sm:$0xff]
        %v820 = vld [vmem:[%s406 + $0x3d0] sm:$0xff]
        %v821 = vld [vmem:[%s406 + $0x3d8] sm:$0xff]
        %v822 = vld [vmem:[%s406 + $0x3e0] sm:$0xff]
        %v823 = vld [vmem:[%s406 + $0x3e8] sm:$0xff]
        %v824 = vld [vmem:[%s406 + $0x3f0] sm:$0xff]
        %v825 = vld [vmem:[%s406 + $0x3f8] sm:$0xff]
        %v826 = vsel %vm634, 1, 0
        %v827 = vsel %vm635, 1, 0
        %v828 = vsel %vm636, 1, 0
        %v829 = vsel %vm637, 1, 0
        %v830 = vsel %vm638, 1, 0
        %v831 = vsel %vm639, 1, 0
        %v832 = vsel %vm640, 1, 0
        %v833 = vsel %vm641, 1, 0
        %v834 = vsel %vm642, 1, 0
        %v835 = vsel %vm643, 1, 0
        %v836 = vsel %vm644, 1, 0
        %v837 = vsel %vm645, 1, 0
        %v838 = vsel %vm646, 1, 0
        %v839 = vsel %vm647, 1, 0
        %v840 = vsel %vm648, 1, 0
        %v841 = vsel %vm649, 1, 0
        %v842 = vsel %vm650, 1, 0
        %v843 = vsel %vm651, 1, 0
        %v844 = vsel %vm652, 1, 0
        %v845 = vsel %vm653, 1, 0
        %v846 = vsel %vm654, 1, 0
        %v847 = vsel %vm655, 1, 0
        %v848 = vsel %vm656, 1, 0
        %v849 = vsel %vm657, 1, 0
        %v850 = vsel %vm658, 1, 0
        %v851 = vsel %vm659, 1, 0
        %v852 = vsel %vm660, 1, 0
        %v853 = vsel %vm661, 1, 0
        %v854 = vsel %vm662, 1, 0
        %v855 = vsel %vm663, 1, 0
        %v856 = vsel %vm664, 1, 0
        %v857 = vsel %vm665, 1, 0
        %v858 = vsel %vm666, 1, 0
        %v859 = vsel %vm667, 1, 0
        %v860 = vsel %vm668, 1, 0
        %v861 = vsel %vm669, 1, 0
        %v862 = vsel %vm670, 1, 0
        %v863 = vsel %vm671, 1, 0
        %v864 = vsel %vm672, 1, 0
        %v865 = vsel %vm673, 1, 0
        %v866 = vsel %vm674, 1, 0
        %v867 = vsel %vm675, 1, 0
        %v868 = vsel %vm676, 1, 0
        %v869 = vsel %vm677, 1, 0
        %v870 = vsel %vm678, 1, 0
        %v871 = vsel %vm679, 1, 0
        %v872 = vsel %vm680, 1, 0
        %v873 = vsel %vm681, 1, 0
        %v874 = vsel %vm682, 1, 0
        %v875 = vsel %vm683, 1, 0
        %v876 = vsel %vm684, 1, 0
        %v877 = vsel %vm685, 1, 0
        %v878 = vsel %vm686, 1, 0
        %v879 = vsel %vm687, 1, 0
        %v880 = vsel %vm688, 1, 0
        %v881 = vsel %vm689, 1, 0
        %v882 = vsel %vm690, 1, 0
        %v883 = vsel %vm691, 1, 0
        %v884 = vsel %vm692, 1, 0
        %v885 = vsel %vm693, 1, 0
        %v886 = vsel %vm694, 1, 0
        %v887 = vsel %vm695, 1, 0
        %v888 = vsel %vm696, 1, 0
        %v889 = vsel %vm697, 1, 0
        %vm890 = vcmp.eq.s32.totalorder %v826, 1
        %vm891 = vcmp.eq.s32.totalorder %v827, 1
        %vm892 = vcmp.eq.s32.totalorder %v828, 1
        %vm893 = vcmp.eq.s32.totalorder %v829, 1
        %vm894 = vcmp.eq.s32.totalorder %v830, 1
        %vm895 = vcmp.eq.s32.totalorder %v831, 1
        %vm896 = vcmp.eq.s32.totalorder %v832, 1
        %vm897 = vcmp.eq.s32.totalorder %v833, 1
        %vm898 = vcmp.eq.s32.totalorder %v834, 1
        %vm899 = vcmp.eq.s32.totalorder %v835, 1
        %vm900 = vcmp.eq.s32.totalorder %v836, 1
        %vm901 = vcmp.eq.s32.totalorder %v837, 1
        %vm902 = vcmp.eq.s32.totalorder %v838, 1
        %vm903 = vcmp.eq.s32.totalorder %v839, 1
        %vm904 = vcmp.eq.s32.totalorder %v840, 1
        %vm905 = vcmp.eq.s32.totalorder %v841, 1
        %vm906 = vcmp.eq.s32.totalorder %v842, 1
        %vm907 = vcmp.eq.s32.totalorder %v843, 1
        %vm908 = vcmp.eq.s32.totalorder %v844, 1
        %vm909 = vcmp.eq.s32.totalorder %v845, 1
        %vm910 = vcmp.eq.s32.totalorder %v846, 1
        %vm911 = vcmp.eq.s32.totalorder %v847, 1
        %vm912 = vcmp.eq.s32.totalorder %v848, 1
        %vm913 = vcmp.eq.s32.totalorder %v849, 1
        %vm914 = vcmp.eq.s32.totalorder %v850, 1
        %vm915 = vcmp.eq.s32.totalorder %v851, 1
        %vm916 = vcmp.eq.s32.totalorder %v852, 1
        %vm917 = vcmp.eq.s32.totalorder %v853, 1
        %vm918 = vcmp.eq.s32.totalorder %v854, 1
        %vm919 = vcmp.eq.s32.totalorder %v855, 1
        %vm920 = vcmp.eq.s32.totalorder %v856, 1
        %vm921 = vcmp.eq.s32.totalorder %v857, 1
        %vm922 = vcmp.eq.s32.totalorder %v858, 1
        %vm923 = vcmp.eq.s32.totalorder %v859, 1
        %vm924 = vcmp.eq.s32.totalorder %v860, 1
        %vm925 = vcmp.eq.s32.totalorder %v861, 1
        %vm926 = vcmp.eq.s32.totalorder %v862, 1
        %vm927 = vcmp.eq.s32.totalorder %v863, 1
        %vm928 = vcmp.eq.s32.totalorder %v864, 1
        %vm929 = vcmp.eq.s32.totalorder %v865, 1
        %vm930 = vcmp.eq.s32.totalorder %v866, 1
        %vm931 = vcmp.eq.s32.totalorder %v867, 1
        %vm932 = vcmp.eq.s32.totalorder %v868, 1
        %vm933 = vcmp.eq.s32.totalorder %v869, 1
        %vm934 = vcmp.eq.s32.totalorder %v870, 1
        %vm935 = vcmp.eq.s32.totalorder %v871, 1
        %vm936 = vcmp.eq.s32.totalorder %v872, 1
        %vm937 = vcmp.eq.s32.totalorder %v873, 1
        %vm938 = vcmp.eq.s32.totalorder %v874, 1
        %vm939 = vcmp.eq.s32.totalorder %v875, 1
        %vm940 = vcmp.eq.s32.totalorder %v876, 1
        %vm941 = vcmp.eq.s32.totalorder %v877, 1
        %vm942 = vcmp.eq.s32.totalorder %v878, 1
        %vm943 = vcmp.eq.s32.totalorder %v879, 1
        %vm944 = vcmp.eq.s32.totalorder %v880, 1
        %vm945 = vcmp.eq.s32.totalorder %v881, 1
        %vm946 = vcmp.eq.s32.totalorder %v882, 1
        %vm947 = vcmp.eq.s32.totalorder %v883, 1
        %vm948 = vcmp.eq.s32.totalorder %v884, 1
        %vm949 = vcmp.eq.s32.totalorder %v885, 1
        %vm950 = vcmp.eq.s32.totalorder %v886, 1
        %vm951 = vcmp.eq.s32.totalorder %v887, 1
        %vm952 = vcmp.eq.s32.totalorder %v888, 1
        %vm953 = vcmp.eq.s32.totalorder %v889, 1
        %v954 = vsel %vm890, %v698, 0.0
        %v955 = vsel %vm890, %v699, 0.0
        %v956 = vsel %vm891, %v700, 0.0
        %v957 = vsel %vm891, %v701, 0.0
        %v958 = vsel %vm892, %v702, 0.0
        %v959 = vsel %vm892, %v703, 0.0
        %v960 = vsel %vm893, %v704, 0.0
        %v961 = vsel %vm893, %v705, 0.0
        %v962 = vsel %vm894, %v706, 0.0
        %v963 = vsel %vm894, %v707, 0.0
        %v964 = vsel %vm895, %v708, 0.0
        %v965 = vsel %vm895, %v709, 0.0
        %v966 = vsel %vm896, %v710, 0.0
        %v967 = vsel %vm896, %v711, 0.0
        %v968 = vsel %vm897, %v712, 0.0
        %v969 = vsel %vm897, %v713, 0.0
        %v970 = vsel %vm898, %v714, 0.0
        %v971 = vsel %vm898, %v715, 0.0
        %v972 = vsel %vm899, %v716, 0.0
        %v973 = vsel %vm899, %v717, 0.0
        %v974 = vsel %vm900, %v718, 0.0
        %v975 = vsel %vm900, %v719, 0.0
        %v976 = vsel %vm901, %v720, 0.0
        %v977 = vsel %vm901, %v721, 0.0
        %v978 = vsel %vm902, %v722, 0.0
        %v979 = vsel %vm902, %v723, 0.0
        %v980 = vsel %vm903, %v724, 0.0
        %v981 = vsel %vm903, %v725, 0.0
        %v982 = vsel %vm904, %v726, 0.0
        %v983 = vsel %vm904, %v727, 0.0
        %v984 = vsel %vm905, %v728, 0.0
        %v985 = vsel %vm905, %v729, 0.0
        %v986 = vsel %vm906, %v730, 0.0
        %v987 = vsel %vm906, %v731, 0.0
        %v988 = vsel %vm907, %v732, 0.0
        %v989 = vsel %vm907, %v733, 0.0
        %v990 = vsel %vm908, %v734, 0.0
        %v991 = vsel %vm908, %v735, 0.0
        %v992 = vsel %vm909, %v736, 0.0
        %v993 = vsel %vm909, %v737, 0.0
        %v994 = vsel %vm910, %v738, 0.0
        %v995 = vsel %vm910, %v739, 0.0
        %v996 = vsel %vm911, %v740, 0.0
        %v997 = vsel %vm911, %v741, 0.0
        %v998 = vsel %vm912, %v742, 0.0
        %v999 = vsel %vm912, %v743, 0.0
        %v1000 = vsel %vm913, %v744, 0.0
        %v1001 = vsel %vm913, %v745, 0.0
        %v1002 = vsel %vm914, %v746, 0.0
        %v1003 = vsel %vm914, %v747, 0.0
        %v1004 = vsel %vm915, %v748, 0.0
        %v1005 = vsel %vm915, %v749, 0.0
        %v1006 = vsel %vm916, %v750, 0.0
        %v1007 = vsel %vm916, %v751, 0.0
        %v1008 = vsel %vm917, %v752, 0.0
        %v1009 = vsel %vm917, %v753, 0.0
        %v1010 = vsel %vm918, %v754, 0.0
        %v1011 = vsel %vm918, %v755, 0.0
        %v1012 = vsel %vm919, %v756, 0.0
        %v1013 = vsel %vm919, %v757, 0.0
        %v1014 = vsel %vm920, %v758, 0.0
        %v1015 = vsel %vm920, %v759, 0.0
        %v1016 = vsel %vm921, %v760, 0.0
        %v1017 = vsel %vm921, %v761, 0.0
        %v1018 = vsel %vm922, %v762, 0.0
        %v1019 = vsel %vm922, %v763, 0.0
        %v1020 = vsel %vm923, %v764, 0.0
        %v1021 = vsel %vm923, %v765, 0.0
        %v1022 = vsel %vm924, %v766, 0.0
        %v1023 = vsel %vm924, %v767, 0.0
        %v1024 = vsel %vm925, %v768, 0.0
        %v1025 = vsel %vm925, %v769, 0.0
        %v1026 = vsel %vm926, %v770, 0.0
        %v1027 = vsel %vm926, %v771, 0.0
        %v1028 = vsel %vm927, %v772, 0.0
        %v1029 = vsel %vm927, %v773, 0.0
        %v1030 = vsel %vm928, %v774, 0.0
        %v1031 = vsel %vm928, %v775, 0.0
        %v1032 = vsel %vm929, %v776, 0.0
        %v1033 = vsel %vm929, %v777, 0.0
        %v1034 = vsel %vm930, %v778, 0.0
        %v1035 = vsel %vm930, %v779, 0.0
        %v1036 = vsel %vm931, %v780, 0.0
        %v1037 = vsel %vm931, %v781, 0.0
        %v1038 = vsel %vm932, %v782, 0.0
        %v1039 = vsel %vm932, %v783, 0.0
        %v1040 = vsel %vm933, %v784, 0.0
        %v1041 = vsel %vm933, %v785, 0.0
        %v1042 = vsel %vm934, %v786, 0.0
        %v1043 = vsel %vm934, %v787, 0.0
        %v1044 = vsel %vm935, %v788, 0.0
        %v1045 = vsel %vm935, %v789, 0.0
        %v1046 = vsel %vm936, %v790, 0.0
        %v1047 = vsel %vm936, %v791, 0.0
        %v1048 = vsel %vm937, %v792, 0.0
        %v1049 = vsel %vm937, %v793, 0.0
        %v1050 = vsel %vm938, %v794, 0.0
        %v1051 = vsel %vm938, %v795, 0.0
        %v1052 = vsel %vm939, %v796, 0.0
        %v1053 = vsel %vm939, %v797, 0.0
        %v1054 = vsel %vm940, %v798, 0.0
        %v1055 = vsel %vm940, %v799, 0.0
        %v1056 = vsel %vm941, %v800, 0.0
        %v1057 = vsel %vm941, %v801, 0.0
        %v1058 = vsel %vm942, %v802, 0.0
        %v1059 = vsel %vm942, %v803, 0.0
        %v1060 = vsel %vm943, %v804, 0.0
        %v1061 = vsel %vm943, %v805, 0.0
        %v1062 = vsel %vm944, %v806, 0.0
        %v1063 = vsel %vm944, %v807, 0.0
        %v1064 = vsel %vm945, %v808, 0.0
        %v1065 = vsel %vm945, %v809, 0.0
        %v1066 = vsel %vm946, %v810, 0.0
        %v1067 = vsel %vm946, %v811, 0.0
        %v1068 = vsel %vm947, %v812, 0.0
        %v1069 = vsel %vm947, %v813, 0.0
        %v1070 = vsel %vm948, %v814, 0.0
        %v1071 = vsel %vm948, %v815, 0.0
        %v1072 = vsel %vm949, %v816, 0.0
        %v1073 = vsel %vm949, %v817, 0.0
        %v1074 = vsel %vm950, %v818, 0.0
        %v1075 = vsel %vm950, %v819, 0.0
        %v1076 = vsel %vm951, %v820, 0.0
        %v1077 = vsel %vm951, %v821, 0.0
        %v1078 = vsel %vm952, %v822, 0.0
        %v1079 = vsel %vm952, %v823, 0.0
        %v1080 = vsel %vm953, %v824, 0.0
        %v1081 = vsel %vm953, %v825, 0.0
        %v1082 = vpack.c.bf16 %v956, %v954
        %v1083 = vpack.c.bf16 %v957, %v955
        %v1084 = vpack.c.bf16 %v960, %v958
        %v1085 = vpack.c.bf16 %v961, %v959
        %v1086 = vpack.c.bf16 %v964, %v962
        %v1087 = vpack.c.bf16 %v965, %v963
        %v1088 = vpack.c.bf16 %v968, %v966
        %v1089 = vpack.c.bf16 %v969, %v967
        %v1090 = vpack.c.bf16 %v972, %v970
        %v1091 = vpack.c.bf16 %v973, %v971
        %v1092 = vpack.c.bf16 %v976, %v974
        %v1093 = vpack.c.bf16 %v977, %v975
        %v1094 = vpack.c.bf16 %v980, %v978
        %v1095 = vpack.c.bf16 %v981, %v979
        %v1096 = vpack.c.bf16 %v984, %v982
        %v1097 = vpack.c.bf16 %v985, %v983
        %v1098 = vpack.c.bf16 %v988, %v986
        %v1099 = vpack.c.bf16 %v989, %v987
        %v1100 = vpack.c.bf16 %v992, %v990
        %v1101 = vpack.c.bf16 %v993, %v991
        %v1102 = vpack.c.bf16 %v996, %v994
        %v1103 = vpack.c.bf16 %v997, %v995
        %v1104 = vpack.c.bf16 %v1000, %v998
        %v1105 = vpack.c.bf16 %v1001, %v999
        %v1106 = vpack.c.bf16 %v1004, %v1002
        %v1107 = vpack.c.bf16 %v1005, %v1003
        %v1108 = vpack.c.bf16 %v1008, %v1006
        %v1109 = vpack.c.bf16 %v1009, %v1007
        %v1110 = vpack.c.bf16 %v1012, %v1010
        %v1111 = vpack.c.bf16 %v1013, %v1011
        %v1112 = vpack.c.bf16 %v1016, %v1014
        %v1113 = vpack.c.bf16 %v1017, %v1015
        %v1114 = vpack.c.bf16 %v1020, %v1018
        %v1115 = vpack.c.bf16 %v1021, %v1019
        %v1116 = vpack.c.bf16 %v1024, %v1022
        %v1117 = vpack.c.bf16 %v1025, %v1023
        %v1118 = vpack.c.bf16 %v1028, %v1026
        %v1119 = vpack.c.bf16 %v1029, %v1027
        %v1120 = vpack.c.bf16 %v1032, %v1030
        %v1121 = vpack.c.bf16 %v1033, %v1031
        %v1122 = vpack.c.bf16 %v1036, %v1034
        %v1123 = vpack.c.bf16 %v1037, %v1035
        %v1124 = vpack.c.bf16 %v1040, %v1038
        %v1125 = vpack.c.bf16 %v1041, %v1039
        %v1126 = vpack.c.bf16 %v1044, %v1042
        %v1127 = vpack.c.bf16 %v1045, %v1043
        %v1128 = vpack.c.bf16 %v1048, %v1046
        %v1129 = vpack.c.bf16 %v1049, %v1047
        %v1130 = vpack.c.bf16 %v1052, %v1050
        %v1131 = vpack.c.bf16 %v1053, %v1051
        %v1132 = vpack.c.bf16 %v1056, %v1054
        %v1133 = vpack.c.bf16 %v1057, %v1055
        %v1134 = vpack.c.bf16 %v1060, %v1058
        %v1135 = vpack.c.bf16 %v1061, %v1059
        %v1136 = vpack.c.bf16 %v1064, %v1062
        %v1137 = vpack.c.bf16 %v1065, %v1063
        %v1138 = vpack.c.bf16 %v1068, %v1066
        %v1139 = vpack.c.bf16 %v1069, %v1067
        %v1140 = vpack.c.bf16 %v1072, %v1070
        %v1141 = vpack.c.bf16 %v1073, %v1071
        %v1142 = vpack.c.bf16 %v1076, %v1074
        %v1143 = vpack.c.bf16 %v1077, %v1075
        %v1144 = vpack.c.bf16 %v1080, %v1078
        %v1145 = vpack.c.bf16 %v1081, %v1079
        %v1146 = vld [vmem:[#allocation9] sm:$0xf]
        %v1147 = vld [vmem:[#allocation9 + $0x4] sm:$0xf]
        %v1148 = vld [vmem:[#allocation9 + $0x8] sm:$0xf]
        %v1149 = vld [vmem:[#allocation9 + $0xc] sm:$0xf]
        %v1150 = vld [vmem:[#allocation9 + $0x10] sm:$0xf]
        %v1151 = vld [vmem:[#allocation9 + $0x14] sm:$0xf]
        %v1152 = vld [vmem:[#allocation9 + $0x18] sm:$0xf]
        %v1153 = vld [vmem:[#allocation9 + $0x1c] sm:$0xf]
        %v1154 = vld [vmem:[#allocation9 + $0x20] sm:$0xf]
        %v1155 = vld [vmem:[#allocation9 + $0x24] sm:$0xf]
        %v1156 = vld [vmem:[#allocation9 + $0x28] sm:$0xf]
        %v1157 = vld [vmem:[#allocation9 + $0x2c] sm:$0xf]
        %v1158 = vld [vmem:[#allocation9 + $0x30] sm:$0xf]
        %v1159 = vld [vmem:[#allocation9 + $0x34] sm:$0xf]
        %v1160 = vld [vmem:[#allocation9 + $0x38] sm:$0xf]
        %v1161 = vld [vmem:[#allocation9 + $0x3c] sm:$0xf]
        %v1162 = vld [vmem:[#allocation9 + $0x40] sm:$0xf]
        %v1163 = vld [vmem:[#allocation9 + $0x44] sm:$0xf]
        %v1164 = vld [vmem:[#allocation9 + $0x48] sm:$0xf]
        %v1165 = vld [vmem:[#allocation9 + $0x4c] sm:$0xf]
        %v1166 = vld [vmem:[#allocation9 + $0x50] sm:$0xf]
        %v1167 = vld [vmem:[#allocation9 + $0x54] sm:$0xf]
        %v1168 = vld [vmem:[#allocation9 + $0x58] sm:$0xf]
        %v1169 = vld [vmem:[#allocation9 + $0x5c] sm:$0xf]
        %v1170 = vld [vmem:[#allocation9 + $0x60] sm:$0xf]
        %v1171 = vld [vmem:[#allocation9 + $0x64] sm:$0xf]
        %v1172 = vld [vmem:[#allocation9 + $0x68] sm:$0xf]
        %v1173 = vld [vmem:[#allocation9 + $0x6c] sm:$0xf]
        %v1174 = vld [vmem:[#allocation9 + $0x70] sm:$0xf]
        %v1175 = vld [vmem:[#allocation9 + $0x74] sm:$0xf]
        %v1176 = vld [vmem:[#allocation9 + $0x78] sm:$0xf]
        %v1177 = vld [vmem:[#allocation9 + $0x7c] sm:$0xf]
        %v1178 = vld [vmem:[#allocation10] sm:$0x1]
        %v1180 = vlaneseq
        %v1181 = vshrl.u32 %v1180, 7
        %v1182 = vsub.s32 0, %v1181
        %v1183 = vrot.slane %v1178, %v1182
        %v1217 = vunpack.c.l.b16 %v1146
        %v1218 = vunpack.c.l.b16 %v1147
        %v1219 = vunpack.c.l.b16 %v1148
        %v1220 = vunpack.c.l.b16 %v1149
        %v1221 = vunpack.c.l.b16 %v1150
        %v1222 = vunpack.c.l.b16 %v1151
        %v1223 = vunpack.c.l.b16 %v1152
        %v1224 = vunpack.c.l.b16 %v1153
        %v1225 = vunpack.c.l.b16 %v1154
        %v1226 = vunpack.c.l.b16 %v1155
        %v1227 = vunpack.c.l.b16 %v1156
        %v1228 = vunpack.c.l.b16 %v1157
        %v1229 = vunpack.c.l.b16 %v1158
        %v1230 = vunpack.c.l.b16 %v1159
        %v1231 = vunpack.c.l.b16 %v1160
        %v1232 = vunpack.c.l.b16 %v1161
        %v1233 = vunpack.c.l.b16 %v1162
        %v1234 = vunpack.c.l.b16 %v1163
        %v1235 = vunpack.c.l.b16 %v1164
        %v1236 = vunpack.c.l.b16 %v1165
        %v1237 = vunpack.c.l.b16 %v1166
        %v1238 = vunpack.c.l.b16 %v1167
        %v1239 = vunpack.c.l.b16 %v1168
        %v1240 = vunpack.c.l.b16 %v1169
        %v1241 = vunpack.c.l.b16 %v1170
        %v1242 = vunpack.c.l.b16 %v1171
        %v1243 = vunpack.c.l.b16 %v1172
        %v1244 = vunpack.c.l.b16 %v1173
        %v1245 = vunpack.c.l.b16 %v1174
        %v1246 = vunpack.c.l.b16 %v1175
        %v1247 = vunpack.c.l.b16 %v1176
        %v1248 = vunpack.c.l.b16 %v1177
        %v1249 = vpack.c.b16 %v1218, %v1217
        %v1250 = vpack.c.b16 %v1220, %v1219
        %v1251 = vpack.c.b16 %v1222, %v1221
        %v1252 = vpack.c.b16 %v1224, %v1223
        %v1253 = vpack.c.b16 %v1226, %v1225
        %v1254 = vpack.c.b16 %v1228, %v1227
        %v1255 = vpack.c.b16 %v1230, %v1229
        %v1256 = vpack.c.b16 %v1232, %v1231
        %v1257 = vpack.c.b16 %v1234, %v1233
        %v1258 = vpack.c.b16 %v1236, %v1235
        %v1259 = vpack.c.b16 %v1238, %v1237
        %v1260 = vpack.c.b16 %v1240, %v1239
        %v1261 = vpack.c.b16 %v1242, %v1241
        %v1262 = vpack.c.b16 %v1244, %v1243
        %v1263 = vpack.c.b16 %v1246, %v1245
        %v1264 = vpack.c.b16 %v1248, %v1247
        %1281 = vmatprep.subr.bf16.mxu0 0
        %1282 = vmatpush1.bf16.msra.mxu0 %v1249
        %1283 = vmatprep.subr.bf16.mxu0 0
        %1284 = vmatpush1.bf16.msra.mxu0 %v1250
        %1285 = vmatprep.subr.bf16.mxu0 0
        %1286 = vmatpush1.bf16.msra.mxu0 %v1251
        %1287 = vmatprep.subr.bf16.mxu0 0
        %1288 = vmatpush1.bf16.msra.mxu0 %v1252
        %1289 = vmatprep.subr.bf16.mxu0 0
        %1290 = vmatpush1.bf16.msra.mxu0 %v1253
        %1291 = vmatprep.subr.bf16.mxu0 0
        %1292 = vmatpush1.bf16.msra.mxu0 %v1254
        %1293 = vmatprep.subr.bf16.mxu0 0
        %1294 = vmatpush1.bf16.msra.mxu0 %v1255
        %1295 = vmatprep.subr.bf16.mxu0 0
        %1296 = vmatpush1.bf16.msra.mxu0 %v1256
        %1297 = vmatprep.subr.bf16.mxu0 0
        %1298 = vmatpush1.bf16.msra.mxu0 %v1257
        %1299 = vmatprep.subr.bf16.mxu0 0
        %1300 = vmatpush1.bf16.msra.mxu0 %v1258
        %1301 = vmatprep.subr.bf16.mxu0 0
        %1302 = vmatpush1.bf16.msra.mxu0 %v1259
        %1303 = vmatprep.subr.bf16.mxu0 0
        %1304 = vmatpush1.bf16.msra.mxu0 %v1260
        %1305 = vmatprep.subr.bf16.mxu0 0
        %1306 = vmatpush1.bf16.msra.mxu0 %v1261
        %1307 = vmatprep.subr.bf16.mxu0 0
        %1308 = vmatpush1.bf16.msra.mxu0 %v1262
        %1309 = vmatprep.subr.bf16.mxu0 0
        %1310 = vmatpush1.bf16.msra.mxu0 %v1263
        %1311 = vmatprep.subr.bf16.mxu0 0
        %1312 = vmatpush1.bf16.msra.mxu0 %v1264
        %1313 = vmatprep.mubr.bf16.mxu0 %v1083
        %1314 = vmatmul.mubr.bf16.gmra.mrb[0].mxu0 %v1082
        %v1315 = vpop.f32.mrb[0].mxu0
        %v1316 = vadd.f32 %v1183, %v1315
        %v1317 = vpop.f32.mrb[0].mxu0
        %v1318 = vpop.f32.mrb[0].mxu0
        %v1319 = vadd.f32 %v1183, %v1318
        %v1320 = vpop.f32.mrb[0].mxu0
        %1321 = vmatprep.mubr.bf16.mxu0 %v1085
        %1322 = vmatmul.mubr.bf16.gmra.mrb[0].mxu0 %v1084
        %v1323 = vpop.f32.mrb[0].mxu0
        %v1324 = vadd.f32 %v1183, %v1323
        %v1325 = vpop.f32.mrb[0].mxu0
        %v1326 = vpop.f32.mrb[0].mxu0
        %v1327 = vadd.f32 %v1183, %v1326
        %v1328 = vpop.f32.mrb[0].mxu0
        %1329 = vmatprep.mubr.bf16.mxu0 %v1087
        %1330 = vmatmul.mubr.bf16.gmra.mrb[0].mxu0 %v1086
        %v1331 = vpop.f32.mrb[0].mxu0
        %v1332 = vadd.f32 %v1183, %v1331
        %v1333 = vpop.f32.mrb[0].mxu0
        %v1334 = vpop.f32.mrb[0].mxu0
        %v1335 = vadd.f32 %v1183, %v1334
        %v1336 = vpop.f32.mrb[0].mxu0
        %1337 = vmatprep.mubr.bf16.mxu0 %v1089
        %1338 = vmatmul.mubr.bf16.gmra.mrb[0].mxu0 %v1088
        %v1339 = vpop.f32.mrb[0].mxu0
        %v1340 = vadd.f32 %v1183, %v1339
        %v1341 = vpop.f32.mrb[0].mxu0
        %v1342 = vpop.f32.mrb[0].mxu0
        %v1343 = vadd.f32 %v1183, %v1342
        %v1344 = vpop.f32.mrb[0].mxu0
        %1345 = vmatprep.mubr.bf16.mxu0 %v1091
        %1346 = vmatmul.mubr.bf16.gmra.mrb[0].mxu0 %v1090
        %v1347 = vpop.f32.mrb[0].mxu0
        %v1348 = vadd.f32 %v1183, %v1347
        %v1349 = vpop.f32.mrb[0].mxu0
        %v1350 = vpop.f32.mrb[0].mxu0
        %v1351 = vadd.f32 %v1183, %v1350
        %v1352 = vpop.f32.mrb[0].mxu0
        %1353 = vmatprep.mubr.bf16.mxu0 %v1093
        %1354 = vmatmul.mubr.bf16.gmra.mrb[0].mxu0 %v1092
        %v1355 = vpop.f32.mrb[0].mxu0
        %v1356 = vadd.f32 %v1183, %v1355
        %v1357 = vpop.f32.mrb[0].mxu0
        %v1358 = vpop.f32.mrb[0].mxu0
        %v1359 = vadd.f32 %v1183, %v1358
        %v1360 = vpop.f32.mrb[0].mxu0
        %1361 = vmatprep.mubr.bf16.mxu0 %v1095
        %1362 = vmatmul.mubr.bf16.gmra.mrb[0].mxu0 %v1094
        %v1363 = vpop.f32.mrb[0].mxu0
        %v1364 = vadd.f32 %v1183, %v1363
        %v1365 = vpop.f32.mrb[0].mxu0
        %v1366 = vpop.f32.mrb[0].mxu0
        %v1367 = vadd.f32 %v1183, %v1366
        %v1368 = vpop.f32.mrb[0].mxu0
        %1369 = vmatprep.mubr.bf16.mxu0 %v1097
        %1370 = vmatmul.mubr.bf16.gmra.mrb[0].mxu0 %v1096
        %v1371 = vpop.f32.mrb[0].mxu0
        %v1372 = vadd.f32 %v1183, %v1371
        %v1373 = vpop.f32.mrb[0].mxu0
        %v1374 = vpop.f32.mrb[0].mxu0
        %v1375 = vadd.f32 %v1183, %v1374
        %v1376 = vpop.f32.mrb[0].mxu0
        %1377 = vmatprep.mubr.bf16.mxu0 %v1099
        %1378 = vmatmul.mubr.bf16.gmra.mrb[0].mxu0 %v1098
        %v1379 = vpop.f32.mrb[0].mxu0
        %v1380 = vadd.f32 %v1183, %v1379
        %v1381 = vpop.f32.mrb[0].mxu0
        %v1382 = vpop.f32.mrb[0].mxu0
        %v1383 = vadd.f32 %v1183, %v1382
        %v1384 = vpop.f32.mrb[0].mxu0
        %1385 = vmatprep.mubr.bf16.mxu0 %v1101
        %1386 = vmatmul.mubr.bf16.gmra.mrb[0].mxu0 %v1100
        %v1387 = vpop.f32.mrb[0].mxu0
        %v1388 = vadd.f32 %v1183, %v1387
        %v1389 = vpop.f32.mrb[0].mxu0
        %v1390 = vpop.f32.mrb[0].mxu0
        %v1391 = vadd.f32 %v1183, %v1390
        %v1392 = vpop.f32.mrb[0].mxu0
        %1393 = vmatprep.mubr.bf16.mxu0 %v1103
        %1394 = vmatmul.mubr.bf16.gmra.mrb[0].mxu0 %v1102
        %v1395 = vpop.f32.mrb[0].mxu0
        %v1396 = vadd.f32 %v1183, %v1395
        %v1397 = vpop.f32.mrb[0].mxu0
        %v1398 = vpop.f32.mrb[0].mxu0
        %v1399 = vadd.f32 %v1183, %v1398
        %v1400 = vpop.f32.mrb[0].mxu0
        %1401 = vmatprep.mubr.bf16.mxu0 %v1105
        %1402 = vmatmul.mubr.bf16.gmra.mrb[0].mxu0 %v1104
        %v1403 = vpop.f32.mrb[0].mxu0
        %v1404 = vadd.f32 %v1183, %v1403
        %v1405 = vpop.f32.mrb[0].mxu0
        %v1406 = vpop.f32.mrb[0].mxu0
        %v1407 = vadd.f32 %v1183, %v1406
        %v1408 = vpop.f32.mrb[0].mxu0
        %1409 = vmatprep.mubr.bf16.mxu0 %v1107
        %1410 = vmatmul.mubr.bf16.gmra.mrb[0].mxu0 %v1106
        %v1411 = vpop.f32.mrb[0].mxu0
        %v1412 = vadd.f32 %v1183, %v1411
        %v1413 = vpop.f32.mrb[0].mxu0
        %v1414 = vpop.f32.mrb[0].mxu0
        %v1415 = vadd.f32 %v1183, %v1414
        %v1416 = vpop.f32.mrb[0].mxu0
        %1417 = vmatprep.mubr.bf16.mxu0 %v1109
        %1418 = vmatmul.mubr.bf16.gmra.mrb[0].mxu0 %v1108
        %v1419 = vpop.f32.mrb[0].mxu0
        %v1420 = vadd.f32 %v1183, %v1419
        %v1421 = vpop.f32.mrb[0].mxu0
        %v1422 = vpop.f32.mrb[0].mxu0
        %v1423 = vadd.f32 %v1183, %v1422
        %v1424 = vpop.f32.mrb[0].mxu0
        %1425 = vmatprep.mubr.bf16.mxu0 %v1111
        %1426 = vmatmul.mubr.bf16.gmra.mrb[0].mxu0 %v1110
        %v1427 = vpop.f32.mrb[0].mxu0
        %v1428 = vadd.f32 %v1183, %v1427
        %v1429 = vpop.f32.mrb[0].mxu0
        %v1430 = vpop.f32.mrb[0].mxu0
        %v1431 = vadd.f32 %v1183, %v1430
        %v1432 = vpop.f32.mrb[0].mxu0
        %1433 = vmatprep.mubr.bf16.mxu0 %v1113
        %1434 = vmatmul.mubr.bf16.gmra.mrb[0].mxu0 %v1112
        %v1435 = vpop.f32.mrb[0].mxu0
        %v1436 = vadd.f32 %v1183, %v1435
        %v1437 = vpop.f32.mrb[0].mxu0
        %v1438 = vpop.f32.mrb[0].mxu0
        %v1439 = vadd.f32 %v1183, %v1438
        %v1440 = vpop.f32.mrb[0].mxu0
        %1441 = vmatprep.mubr.bf16.mxu0 %v1115
        %1442 = vmatmul.mubr.bf16.gmra.mrb[0].mxu0 %v1114
        %v1443 = vpop.f32.mrb[0].mxu0
        %v1444 = vadd.f32 %v1183, %v1443
        %v1445 = vpop.f32.mrb[0].mxu0
        %v1446 = vpop.f32.mrb[0].mxu0
        %v1447 = vadd.f32 %v1183, %v1446
        %v1448 = vpop.f32.mrb[0].mxu0
        %1449 = vmatprep.mubr.bf16.mxu0 %v1117
        %1450 = vmatmul.mubr.bf16.gmra.mrb[0].mxu0 %v1116
        %v1451 = vpop.f32.mrb[0].mxu0
        %v1452 = vadd.f32 %v1183, %v1451
        %v1453 = vpop.f32.mrb[0].mxu0
        %v1454 = vpop.f32.mrb[0].mxu0
        %v1455 = vadd.f32 %v1183, %v1454
        %v1456 = vpop.f32.mrb[0].mxu0
        %1457 = vmatprep.mubr.bf16.mxu0 %v1119
        %1458 = vmatmul.mubr.bf16.gmra.mrb[0].mxu0 %v1118
        %v1459 = vpop.f32.mrb[0].mxu0
        %v1460 = vadd.f32 %v1183, %v1459
        %v1461 = vpop.f32.mrb[0].mxu0
        %v1462 = vpop.f32.mrb[0].mxu0
        %v1463 = vadd.f32 %v1183, %v1462
        %v1464 = vpop.f32.mrb[0].mxu0
        %1465 = vmatprep.mubr.bf16.mxu0 %v1121
        %1466 = vmatmul.mubr.bf16.gmra.mrb[0].mxu0 %v1120
        %v1467 = vpop.f32.mrb[0].mxu0
        %v1468 = vadd.f32 %v1183, %v1467
        %v1469 = vpop.f32.mrb[0].mxu0
        %v1470 = vpop.f32.mrb[0].mxu0
        %v1471 = vadd.f32 %v1183, %v1470
        %v1472 = vpop.f32.mrb[0].mxu0
        %1473 = vmatprep.mubr.bf16.mxu0 %v1123
        %1474 = vmatmul.mubr.bf16.gmra.mrb[0].mxu0 %v1122
        %v1475 = vpop.f32.mrb[0].mxu0
        %v1476 = vadd.f32 %v1183, %v1475
        %v1477 = vpop.f32.mrb[0].mxu0
        %v1478 = vpop.f32.mrb[0].mxu0
        %v1479 = vadd.f32 %v1183, %v1478
        %v1480 = vpop.f32.mrb[0].mxu0
        %1481 = vmatprep.mubr.bf16.mxu0 %v1125
        %1482 = vmatmul.mubr.bf16.gmra.mrb[0].mxu0 %v1124
        %v1483 = vpop.f32.mrb[0].mxu0
        %v1484 = vadd.f32 %v1183, %v1483
        %v1485 = vpop.f32.mrb[0].mxu0
        %v1486 = vpop.f32.mrb[0].mxu0
        %v1487 = vadd.f32 %v1183, %v1486
        %v1488 = vpop.f32.mrb[0].mxu0
        %1489 = vmatprep.mubr.bf16.mxu0 %v1127
        %1490 = vmatmul.mubr.bf16.gmra.mrb[0].mxu0 %v1126
        %v1491 = vpop.f32.mrb[0].mxu0
        %v1492 = vadd.f32 %v1183, %v1491
        %v1493 = vpop.f32.mrb[0].mxu0
        %v1494 = vpop.f32.mrb[0].mxu0
        %v1495 = vadd.f32 %v1183, %v1494
        %v1496 = vpop.f32.mrb[0].mxu0
        %1497 = vmatprep.mubr.bf16.mxu0 %v1129
        %1498 = vmatmul.mubr.bf16.gmra.mrb[0].mxu0 %v1128
        %v1499 = vpop.f32.mrb[0].mxu0
        %v1500 = vadd.f32 %v1183, %v1499
        %v1501 = vpop.f32.mrb[0].mxu0
        %v1502 = vpop.f32.mrb[0].mxu0
        %v1503 = vadd.f32 %v1183, %v1502
        %v1504 = vpop.f32.mrb[0].mxu0
        %1505 = vmatprep.mubr.bf16.mxu0 %v1131
        %1506 = vmatmul.mubr.bf16.gmra.mrb[0].mxu0 %v1130
        %v1507 = vpop.f32.mrb[0].mxu0
        %v1508 = vadd.f32 %v1183, %v1507
        %v1509 = vpop.f32.mrb[0].mxu0
        %v1510 = vpop.f32.mrb[0].mxu0
        %v1511 = vadd.f32 %v1183, %v1510
        %v1512 = vpop.f32.mrb[0].mxu0
        %1513 = vmatprep.mubr.bf16.mxu0 %v1133
        %1514 = vmatmul.mubr.bf16.gmra.mrb[0].mxu0 %v1132
        %v1515 = vpop.f32.mrb[0].mxu0
        %v1516 = vadd.f32 %v1183, %v1515
        %v1517 = vpop.f32.mrb[0].mxu0
        %v1518 = vpop.f32.mrb[0].mxu0
        %v1519 = vadd.f32 %v1183, %v1518
        %v1520 = vpop.f32.mrb[0].mxu0
        %1521 = vmatprep.mubr.bf16.mxu0 %v1135
        %1522 = vmatmul.mubr.bf16.gmra.mrb[0].mxu0 %v1134
        %v1523 = vpop.f32.mrb[0].mxu0
        %v1524 = vadd.f32 %v1183, %v1523
        %v1525 = vpop.f32.mrb[0].mxu0
        %v1526 = vpop.f32.mrb[0].mxu0
        %v1527 = vadd.f32 %v1183, %v1526
        %v1528 = vpop.f32.mrb[0].mxu0
        %1529 = vmatprep.mubr.bf16.mxu0 %v1137
        %1530 = vmatmul.mubr.bf16.gmra.mrb[0].mxu0 %v1136
        %v1531 = vpop.f32.mrb[0].mxu0
        %v1532 = vadd.f32 %v1183, %v1531
        %v1533 = vpop.f32.mrb[0].mxu0
        %v1534 = vpop.f32.mrb[0].mxu0
        %v1535 = vadd.f32 %v1183, %v1534
        %v1536 = vpop.f32.mrb[0].mxu0
        %1537 = vmatprep.mubr.bf16.mxu0 %v1139
        %1538 = vmatmul.mubr.bf16.gmra.mrb[0].mxu0 %v1138
        %v1539 = vpop.f32.mrb[0].mxu0
        %v1540 = vadd.f32 %v1183, %v1539
        %v1541 = vpop.f32.mrb[0].mxu0
        %v1542 = vpop.f32.mrb[0].mxu0
        %v1543 = vadd.f32 %v1183, %v1542
        %v1544 = vpop.f32.mrb[0].mxu0
        %1545 = vmatprep.mubr.bf16.mxu0 %v1141
        %1546 = vmatmul.mubr.bf16.gmra.mrb[0].mxu0 %v1140
        %v1547 = vpop.f32.mrb[0].mxu0
        %v1548 = vadd.f32 %v1183, %v1547
        %v1549 = vpop.f32.mrb[0].mxu0
        %v1550 = vpop.f32.mrb[0].mxu0
        %v1551 = vadd.f32 %v1183, %v1550
        %v1552 = vpop.f32.mrb[0].mxu0
        %1553 = vmatprep.mubr.bf16.mxu0 %v1143
        %1554 = vmatmul.mubr.bf16.gmra.mrb[0].mxu0 %v1142
        %v1555 = vpop.f32.mrb[0].mxu0
        %v1556 = vadd.f32 %v1183, %v1555
        %v1557 = vpop.f32.mrb[0].mxu0
        %v1558 = vpop.f32.mrb[0].mxu0
        %v1559 = vadd.f32 %v1183, %v1558
        %v1560 = vpop.f32.mrb[0].mxu0
        %1561 = vmatprep.mubr.bf16.mxu0 %v1145
        %1562 = vmatmul.mubr.bf16.gmra.mrb[0].mxu0 %v1144
        %v1563 = vpop.f32.mrb[0].mxu0
        %v1564 = vadd.f32 %v1183, %v1563
        %v1565 = vpop.f32.mrb[0].mxu0
        %v1566 = vpop.f32.mrb[0].mxu0
        %v1567 = vadd.f32 %v1183, %v1566
        %v1568 = vpop.f32.mrb[0].mxu0
        %1569 = vdwg.mxu0
        %v1570 = vmax.f32 %v1316, 0.0
        %v1571 = vmax.f32 %v1319, 0.0
        %v1572 = vmax.f32 %v1324, 0.0
        %v1573 = vmax.f32 %v1327, 0.0
        %v1574 = vmax.f32 %v1332, 0.0
        %v1575 = vmax.f32 %v1335, 0.0
        %v1576 = vmax.f32 %v1340, 0.0
        %v1577 = vmax.f32 %v1343, 0.0
        %v1578 = vmax.f32 %v1348, 0.0
        %v1579 = vmax.f32 %v1351, 0.0
        %v1580 = vmax.f32 %v1356, 0.0
        %v1581 = vmax.f32 %v1359, 0.0
        %v1582 = vmax.f32 %v1364, 0.0
        %v1583 = vmax.f32 %v1367, 0.0
        %v1584 = vmax.f32 %v1372, 0.0
        %v1585 = vmax.f32 %v1375, 0.0
        %v1586 = vmax.f32 %v1380, 0.0
        %v1587 = vmax.f32 %v1383, 0.0
        %v1588 = vmax.f32 %v1388, 0.0
        %v1589 = vmax.f32 %v1391, 0.0
        %v1590 = vmax.f32 %v1396, 0.0
        %v1591 = vmax.f32 %v1399, 0.0
        %v1592 = vmax.f32 %v1404, 0.0
        %v1593 = vmax.f32 %v1407, 0.0
        %v1594 = vmax.f32 %v1412, 0.0
        %v1595 = vmax.f32 %v1415, 0.0
        %v1596 = vmax.f32 %v1420, 0.0
        %v1597 = vmax.f32 %v1423, 0.0
        %v1598 = vmax.f32 %v1428, 0.0
        %v1599 = vmax.f32 %v1431, 0.0
        %v1600 = vmax.f32 %v1436, 0.0
        %v1601 = vmax.f32 %v1439, 0.0
        %v1602 = vmax.f32 %v1444, 0.0
        %v1603 = vmax.f32 %v1447, 0.0
        %v1604 = vmax.f32 %v1452, 0.0
        %v1605 = vmax.f32 %v1455, 0.0
        %v1606 = vmax.f32 %v1460, 0.0
        %v1607 = vmax.f32 %v1463, 0.0
        %v1608 = vmax.f32 %v1468, 0.0
        %v1609 = vmax.f32 %v1471, 0.0
        %v1610 = vmax.f32 %v1476, 0.0
        %v1611 = vmax.f32 %v1479, 0.0
        %v1612 = vmax.f32 %v1484, 0.0
        %v1613 = vmax.f32 %v1487, 0.0
        %v1614 = vmax.f32 %v1492, 0.0
        %v1615 = vmax.f32 %v1495, 0.0
        %v1616 = vmax.f32 %v1500, 0.0
        %v1617 = vmax.f32 %v1503, 0.0
        %v1618 = vmax.f32 %v1508, 0.0
        %v1619 = vmax.f32 %v1511, 0.0
        %v1620 = vmax.f32 %v1516, 0.0
        %v1621 = vmax.f32 %v1519, 0.0
        %v1622 = vmax.f32 %v1524, 0.0
        %v1623 = vmax.f32 %v1527, 0.0
        %v1624 = vmax.f32 %v1532, 0.0
        %v1625 = vmax.f32 %v1535, 0.0
        %v1626 = vmax.f32 %v1540, 0.0
        %v1627 = vmax.f32 %v1543, 0.0
        %v1628 = vmax.f32 %v1548, 0.0
        %v1629 = vmax.f32 %v1551, 0.0
        %v1630 = vmax.f32 %v1556, 0.0
        %v1631 = vmax.f32 %v1559, 0.0
        %v1632 = vmax.f32 %v1564, 0.0
        %v1633 = vmax.f32 %v1567, 0.0
        %v1634 = vld [vmem:[#allocation12] sm:$0x1]
        %v1636 = vlaneseq
        %v1637 = vshrl.u32 %v1636, 7
        %v1638 = vsub.s32 0, %v1637
        %v1639 = vrot.slane %v1634, %v1638
        %v1641 = vmul.f32 %v1570, %v1639
        %v1642 = vmul.f32 %v1571, %v1639
        %v1643 = vmul.f32 %v1572, %v1639
        %v1644 = vmul.f32 %v1573, %v1639
        %v1645 = vmul.f32 %v1574, %v1639
        %v1646 = vmul.f32 %v1575, %v1639
        %v1647 = vmul.f32 %v1576, %v1639
        %v1648 = vmul.f32 %v1577, %v1639
        %v1649 = vmul.f32 %v1578, %v1639
        %v1650 = vmul.f32 %v1579, %v1639
        %v1651 = vmul.f32 %v1580, %v1639
        %v1652 = vmul.f32 %v1581, %v1639
        %v1653 = vmul.f32 %v1582, %v1639
        %v1654 = vmul.f32 %v1583, %v1639
        %v1655 = vmul.f32 %v1584, %v1639
        %v1656 = vmul.f32 %v1585, %v1639
        %v1657 = vmul.f32 %v1586, %v1639
        %v1658 = vmul.f32 %v1587, %v1639
        %v1659 = vmul.f32 %v1588, %v1639
        %v1660 = vmul.f32 %v1589, %v1639
        %v1661 = vmul.f32 %v1590, %v1639
        %v1662 = vmul.f32 %v1591, %v1639
        %v1663 = vmul.f32 %v1592, %v1639
        %v1664 = vmul.f32 %v1593, %v1639
        %v1665 = vmul.f32 %v1594, %v1639
        %v1666 = vmul.f32 %v1595, %v1639
        %v1667 = vmul.f32 %v1596, %v1639
        %v1668 = vmul.f32 %v1597, %v1639
        %v1669 = vmul.f32 %v1598, %v1639
        %v1670 = vmul.f32 %v1599, %v1639
        %v1671 = vmul.f32 %v1600, %v1639
        %v1672 = vmul.f32 %v1601, %v1639
        %v1673 = vmul.f32 %v1602, %v1639
        %v1674 = vmul.f32 %v1603, %v1639
        %v1675 = vmul.f32 %v1604, %v1639
        %v1676 = vmul.f32 %v1605, %v1639
        %v1677 = vmul.f32 %v1606, %v1639
        %v1678 = vmul.f32 %v1607, %v1639
        %v1679 = vmul.f32 %v1608, %v1639
        %v1680 = vmul.f32 %v1609, %v1639
        %v1681 = vmul.f32 %v1610, %v1639
        %v1682 = vmul.f32 %v1611, %v1639
        %v1683 = vmul.f32 %v1612, %v1639
        %v1684 = vmul.f32 %v1613, %v1639
        %v1685 = vmul.f32 %v1614, %v1639
        %v1686 = vmul.f32 %v1615, %v1639
        %v1687 = vmul.f32 %v1616, %v1639
        %v1688 = vmul.f32 %v1617, %v1639
        %v1689 = vmul.f32 %v1618, %v1639
        %v1690 = vmul.f32 %v1619, %v1639
        %v1691 = vmul.f32 %v1620, %v1639
        %v1692 = vmul.f32 %v1621, %v1639
        %v1693 = vmul.f32 %v1622, %v1639
        %v1694 = vmul.f32 %v1623, %v1639
        %v1695 = vmul.f32 %v1624, %v1639
        %v1696 = vmul.f32 %v1625, %v1639
        %v1697 = vmul.f32 %v1626, %v1639
        %v1698 = vmul.f32 %v1627, %v1639
        %v1699 = vmul.f32 %v1628, %v1639
        %v1700 = vmul.f32 %v1629, %v1639
        %v1701 = vmul.f32 %v1630, %v1639
        %v1702 = vmul.f32 %v1631, %v1639
        %v1703 = vmul.f32 %v1632, %v1639
        %v1704 = vmul.f32 %v1633, %v1639
        %1705 = vadd.xlane.f32.xlu0 %v1641
        %v1706 = vpop.xlane.xlu0 %1705
        %1707 = vadd.xlane.f32.xlu0 %v1642
        %v1708 = vpop.xlane.xlu0 %1707
        %1709 = vadd.xlane.f32.xlu0 %v1643
        %v1710 = vpop.xlane.xlu0 %1709
        %1711 = vadd.xlane.f32.xlu0 %v1644
        %v1712 = vpop.xlane.xlu0 %1711
        %1713 = vadd.xlane.f32.xlu0 %v1645
        %v1714 = vpop.xlane.xlu0 %1713
        %1715 = vadd.xlane.f32.xlu0 %v1646
        %v1716 = vpop.xlane.xlu0 %1715
        %1717 = vadd.xlane.f32.xlu0 %v1647
        %v1718 = vpop.xlane.xlu0 %1717
        %1719 = vadd.xlane.f32.xlu0 %v1648
        %v1720 = vpop.xlane.xlu0 %1719
        %1721 = vadd.xlane.f32.xlu0 %v1649
        %v1722 = vpop.xlane.xlu0 %1721
        %1723 = vadd.xlane.f32.xlu0 %v1650
        %v1724 = vpop.xlane.xlu0 %1723
        %1725 = vadd.xlane.f32.xlu0 %v1651
        %v1726 = vpop.xlane.xlu0 %1725
        %1727 = vadd.xlane.f32.xlu0 %v1652
        %v1728 = vpop.xlane.xlu0 %1727
        %1729 = vadd.xlane.f32.xlu0 %v1653
        %v1730 = vpop.xlane.xlu0 %1729
        %1731 = vadd.xlane.f32.xlu0 %v1654
        %v1732 = vpop.xlane.xlu0 %1731
        %1733 = vadd.xlane.f32.xlu0 %v1655
        %v1734 = vpop.xlane.xlu0 %1733
        %1735 = vadd.xlane.f32.xlu0 %v1656
        %v1736 = vpop.xlane.xlu0 %1735
        %1737 = vadd.xlane.f32.xlu0 %v1657
        %v1738 = vpop.xlane.xlu0 %1737
        %1739 = vadd.xlane.f32.xlu0 %v1658
        %v1740 = vpop.xlane.xlu0 %1739
        %1741 = vadd.xlane.f32.xlu0 %v1659
        %v1742 = vpop.xlane.xlu0 %1741
        %1743 = vadd.xlane.f32.xlu0 %v1660
        %v1744 = vpop.xlane.xlu0 %1743
        %1745 = vadd.xlane.f32.xlu0 %v1661
        %v1746 = vpop.xlane.xlu0 %1745
        %1747 = vadd.xlane.f32.xlu0 %v1662
        %v1748 = vpop.xlane.xlu0 %1747
        %1749 = vadd.xlane.f32.xlu0 %v1663
        %v1750 = vpop.xlane.xlu0 %1749
        %1751 = vadd.xlane.f32.xlu0 %v1664
        %v1752 = vpop.xlane.xlu0 %1751
        %1753 = vadd.xlane.f32.xlu0 %v1665
        %v1754 = vpop.xlane.xlu0 %1753
        %1755 = vadd.xlane.f32.xlu0 %v1666
        %v1756 = vpop.xlane.xlu0 %1755
        %1757 = vadd.xlane.f32.xlu0 %v1667
        %v1758 = vpop.xlane.xlu0 %1757
        %1759 = vadd.xlane.f32.xlu0 %v1668
        %v1760 = vpop.xlane.xlu0 %1759
        %1761 = vadd.xlane.f32.xlu0 %v1669
        %v1762 = vpop.xlane.xlu0 %1761
        %1763 = vadd.xlane.f32.xlu0 %v1670
        %v1764 = vpop.xlane.xlu0 %1763
        %1765 = vadd.xlane.f32.xlu0 %v1671
        %v1766 = vpop.xlane.xlu0 %1765
        %1767 = vadd.xlane.f32.xlu0 %v1672
        %v1768 = vpop.xlane.xlu0 %1767
        %1769 = vadd.xlane.f32.xlu0 %v1673
        %v1770 = vpop.xlane.xlu0 %1769
        %1771 = vadd.xlane.f32.xlu0 %v1674
        %v1772 = vpop.xlane.xlu0 %1771
        %1773 = vadd.xlane.f32.xlu0 %v1675
        %v1774 = vpop.xlane.xlu0 %1773
        %1775 = vadd.xlane.f32.xlu0 %v1676
        %v1776 = vpop.xlane.xlu0 %1775
        %1777 = vadd.xlane.f32.xlu0 %v1677
        %v1778 = vpop.xlane.xlu0 %1777
        %1779 = vadd.xlane.f32.xlu0 %v1678
        %v1780 = vpop.xlane.xlu0 %1779
        %1781 = vadd.xlane.f32.xlu0 %v1679
        %v1782 = vpop.xlane.xlu0 %1781
        %1783 = vadd.xlane.f32.xlu0 %v1680
        %v1784 = vpop.xlane.xlu0 %1783
        %1785 = vadd.xlane.f32.xlu0 %v1681
        %v1786 = vpop.xlane.xlu0 %1785
        %1787 = vadd.xlane.f32.xlu0 %v1682
        %v1788 = vpop.xlane.xlu0 %1787
        %1789 = vadd.xlane.f32.xlu0 %v1683
        %v1790 = vpop.xlane.xlu0 %1789
        %1791 = vadd.xlane.f32.xlu0 %v1684
        %v1792 = vpop.xlane.xlu0 %1791
        %1793 = vadd.xlane.f32.xlu0 %v1685
        %v1794 = vpop.xlane.xlu0 %1793
        %1795 = vadd.xlane.f32.xlu0 %v1686
        %v1796 = vpop.xlane.xlu0 %1795
        %1797 = vadd.xlane.f32.xlu0 %v1687
        %v1798 = vpop.xlane.xlu0 %1797
        %1799 = vadd.xlane.f32.xlu0 %v1688
        %v1800 = vpop.xlane.xlu0 %1799
        %1801 = vadd.xlane.f32.xlu0 %v1689
        %v1802 = vpop.xlane.xlu0 %1801
        %1803 = vadd.xlane.f32.xlu0 %v1690
        %v1804 = vpop.xlane.xlu0 %1803
        %1805 = vadd.xlane.f32.xlu0 %v1691
        %v1806 = vpop.xlane.xlu0 %1805
        %1807 = vadd.xlane.f32.xlu0 %v1692
        %v1808 = vpop.xlane.xlu0 %1807
        %1809 = vadd.xlane.f32.xlu0 %v1693
        %v1810 = vpop.xlane.xlu0 %1809
        %1811 = vadd.xlane.f32.xlu0 %v1694
        %v1812 = vpop.xlane.xlu0 %1811
        %1813 = vadd.xlane.f32.xlu0 %v1695
        %v1814 = vpop.xlane.xlu0 %1813
        %1815 = vadd.xlane.f32.xlu0 %v1696
        %v1816 = vpop.xlane.xlu0 %1815
        %1817 = vadd.xlane.f32.xlu0 %v1697
        %v1818 = vpop.xlane.xlu0 %1817
        %1819 = vadd.xlane.f32.xlu0 %v1698
        %v1820 = vpop.xlane.xlu0 %1819
        %1821 = vadd.xlane.f32.xlu0 %v1699
        %v1822 = vpop.xlane.xlu0 %1821
        %1823 = vadd.xlane.f32.xlu0 %v1700
        %v1824 = vpop.xlane.xlu0 %1823
        %1825 = vadd.xlane.f32.xlu0 %v1701
        %v1826 = vpop.xlane.xlu0 %1825
        %1827 = vadd.xlane.f32.xlu0 %v1702
        %v1828 = vpop.xlane.xlu0 %1827
        %1829 = vadd.xlane.f32.xlu0 %v1703
        %v1830 = vpop.xlane.xlu0 %1829
        %1831 = vadd.xlane.f32.xlu0 %v1704
        %v1832 = vpop.xlane.xlu0 %1831
        %s1833 = sld [smem:[#allocation2]]
        %v1834 = vstv %s1833
        %v1835 = vadd.f32 %v1706, %v1834
        %v1836 = vadd.f32 %v1708, %v1834
        %v1837 = vadd.f32 %v1710, %v1834
        %v1838 = vadd.f32 %v1712, %v1834
        %v1839 = vadd.f32 %v1714, %v1834
        %v1840 = vadd.f32 %v1716, %v1834
        %v1841 = vadd.f32 %v1718, %v1834
        %v1842 = vadd.f32 %v1720, %v1834
        %v1843 = vadd.f32 %v1722, %v1834
        %v1844 = vadd.f32 %v1724, %v1834
        %v1845 = vadd.f32 %v1726, %v1834
        %v1846 = vadd.f32 %v1728, %v1834
        %v1847 = vadd.f32 %v1730, %v1834
        %v1848 = vadd.f32 %v1732, %v1834
        %v1849 = vadd.f32 %v1734, %v1834
        %v1850 = vadd.f32 %v1736, %v1834
        %v1851 = vadd.f32 %v1738, %v1834
        %v1852 = vadd.f32 %v1740, %v1834
        %v1853 = vadd.f32 %v1742, %v1834
        %v1854 = vadd.f32 %v1744, %v1834
        %v1855 = vadd.f32 %v1746, %v1834
        %v1856 = vadd.f32 %v1748, %v1834
        %v1857 = vadd.f32 %v1750, %v1834
        %v1858 = vadd.f32 %v1752, %v1834
        %v1859 = vadd.f32 %v1754, %v1834
        %v1860 = vadd.f32 %v1756, %v1834
        %v1861 = vadd.f32 %v1758, %v1834
        %v1862 = vadd.f32 %v1760, %v1834
        %v1863 = vadd.f32 %v1762, %v1834
        %v1864 = vadd.f32 %v1764, %v1834
        %v1865 = vadd.f32 %v1766, %v1834
        %v1866 = vadd.f32 %v1768, %v1834
        %v1867 = vadd.f32 %v1770, %v1834
        %v1868 = vadd.f32 %v1772, %v1834
        %v1869 = vadd.f32 %v1774, %v1834
        %v1870 = vadd.f32 %v1776, %v1834
        %v1871 = vadd.f32 %v1778, %v1834
        %v1872 = vadd.f32 %v1780, %v1834
        %v1873 = vadd.f32 %v1782, %v1834
        %v1874 = vadd.f32 %v1784, %v1834
        %v1875 = vadd.f32 %v1786, %v1834
        %v1876 = vadd.f32 %v1788, %v1834
        %v1877 = vadd.f32 %v1790, %v1834
        %v1878 = vadd.f32 %v1792, %v1834
        %v1879 = vadd.f32 %v1794, %v1834
        %v1880 = vadd.f32 %v1796, %v1834
        %v1881 = vadd.f32 %v1798, %v1834
        %v1882 = vadd.f32 %v1800, %v1834
        %v1883 = vadd.f32 %v1802, %v1834
        %v1884 = vadd.f32 %v1804, %v1834
        %v1885 = vadd.f32 %v1806, %v1834
        %v1886 = vadd.f32 %v1808, %v1834
        %v1887 = vadd.f32 %v1810, %v1834
        %v1888 = vadd.f32 %v1812, %v1834
        %v1889 = vadd.f32 %v1814, %v1834
        %v1890 = vadd.f32 %v1816, %v1834
        %v1891 = vadd.f32 %v1818, %v1834
        %v1892 = vadd.f32 %v1820, %v1834
        %v1893 = vadd.f32 %v1822, %v1834
        %v1894 = vadd.f32 %v1824, %v1834
        %v1895 = vadd.f32 %v1826, %v1834
        %v1896 = vadd.f32 %v1828, %v1834
        %v1897 = vadd.f32 %v1830, %v1834
        %v1898 = vadd.f32 %v1832, %v1834
        %v1899 = vsel %vm634, %v1835, -inf
        %v1900 = vsel %vm635, %v1836, -inf
        %v1901 = vsel %vm636, %v1837, -inf
        %v1902 = vsel %vm637, %v1838, -inf
        %v1903 = vsel %vm638, %v1839, -inf
        %v1904 = vsel %vm639, %v1840, -inf
        %v1905 = vsel %vm640, %v1841, -inf
        %v1906 = vsel %vm641, %v1842, -inf
        %v1907 = vsel %vm642, %v1843, -inf
        %v1908 = vsel %vm643, %v1844, -inf
        %v1909 = vsel %vm644, %v1845, -inf
        %v1910 = vsel %vm645, %v1846, -inf
        %v1911 = vsel %vm646, %v1847, -inf
        %v1912 = vsel %vm647, %v1848, -inf
        %v1913 = vsel %vm648, %v1849, -inf
        %v1914 = vsel %vm649, %v1850, -inf
        %v1915 = vsel %vm650, %v1851, -inf
        %v1916 = vsel %vm651, %v1852, -inf
        %v1917 = vsel %vm652, %v1853, -inf
        %v1918 = vsel %vm653, %v1854, -inf
        %v1919 = vsel %vm654, %v1855, -inf
        %v1920 = vsel %vm655, %v1856, -inf
        %v1921 = vsel %vm656, %v1857, -inf
        %v1922 = vsel %vm657, %v1858, -inf
        %v1923 = vsel %vm658, %v1859, -inf
        %v1924 = vsel %vm659, %v1860, -inf
        %v1925 = vsel %vm660, %v1861, -inf
        %v1926 = vsel %vm661, %v1862, -inf
        %v1927 = vsel %vm662, %v1863, -inf
        %v1928 = vsel %vm663, %v1864, -inf
        %v1929 = vsel %vm664, %v1865, -inf
        %v1930 = vsel %vm665, %v1866, -inf
        %v1931 = vsel %vm666, %v1867, -inf
        %v1932 = vsel %vm667, %v1868, -inf
        %v1933 = vsel %vm668, %v1869, -inf
        %v1934 = vsel %vm669, %v1870, -inf
        %v1935 = vsel %vm670, %v1871, -inf
        %v1936 = vsel %vm671, %v1872, -inf
        %v1937 = vsel %vm672, %v1873, -inf
        %v1938 = vsel %vm673, %v1874, -inf
        %v1939 = vsel %vm674, %v1875, -inf
        %v1940 = vsel %vm675, %v1876, -inf
        %v1941 = vsel %vm676, %v1877, -inf
        %v1942 = vsel %vm677, %v1878, -inf
        %v1943 = vsel %vm678, %v1879, -inf
        %v1944 = vsel %vm679, %v1880, -inf
        %v1945 = vsel %vm680, %v1881, -inf
        %v1946 = vsel %vm681, %v1882, -inf
        %v1947 = vsel %vm682, %v1883, -inf
        %v1948 = vsel %vm683, %v1884, -inf
        %v1949 = vsel %vm684, %v1885, -inf
        %v1950 = vsel %vm685, %v1886, -inf
        %v1951 = vsel %vm686, %v1887, -inf
        %v1952 = vsel %vm687, %v1888, -inf
        %v1953 = vsel %vm688, %v1889, -inf
        %v1954 = vsel %vm689, %v1890, -inf
        %v1955 = vsel %vm690, %v1891, -inf
        %v1956 = vsel %vm691, %v1892, -inf
        %v1957 = vsel %vm692, %v1893, -inf
        %v1958 = vsel %vm693, %v1894, -inf
        %v1959 = vsel %vm694, %v1895, -inf
        %v1960 = vsel %vm695, %v1896, -inf
        %v1961 = vsel %vm696, %v1897, -inf
        %v1962 = vsel %vm697, %v1898, -inf
        %v1963 = vld [vmem:[%s486] sm:$0x1]
        %v1964 = vmax.f32 %v1899, %v1903
        %v1965 = vmax.f32 %v1900, %v1904
        %v1966 = vmax.f32 %v1901, %v1905
        %v1967 = vmax.f32 %v1902, %v1906
        %v1968 = vmax.f32 %v1964, %v1907
        %v1969 = vmax.f32 %v1965, %v1908
        %v1970 = vmax.f32 %v1966, %v1909
        %v1971 = vmax.f32 %v1967, %v1910
        %v1972 = vmax.f32 %v1968, %v1911
        %v1973 = vmax.f32 %v1969, %v1912
        %v1974 = vmax.f32 %v1970, %v1913
        %v1975 = vmax.f32 %v1971, %v1914
        %v1976 = vmax.f32 %v1972, %v1915
        %v1977 = vmax.f32 %v1973, %v1916
        %v1978 = vmax.f32 %v1974, %v1917
        %v1979 = vmax.f32 %v1975, %v1918
        %v1980 = vmax.f32 %v1976, %v1919
        %v1981 = vmax.f32 %v1977, %v1920
        %v1982 = vmax.f32 %v1978, %v1921
        %v1983 = vmax.f32 %v1979, %v1922
        %v1984 = vmax.f32 %v1980, %v1923
        %v1985 = vmax.f32 %v1981, %v1924
        %v1986 = vmax.f32 %v1982, %v1925
        %v1987 = vmax.f32 %v1983, %v1926
        %v1988 = vmax.f32 %v1984, %v1927
        %v1989 = vmax.f32 %v1985, %v1928
        %v1990 = vmax.f32 %v1986, %v1929
        %v1991 = vmax.f32 %v1987, %v1930
        %v1992 = vmax.f32 %v1988, %v1931
        %v1993 = vmax.f32 %v1989, %v1932
        %v1994 = vmax.f32 %v1990, %v1933
        %v1995 = vmax.f32 %v1991, %v1934
        %v1996 = vmax.f32 %v1992, %v1935
        %v1997 = vmax.f32 %v1993, %v1936
        %v1998 = vmax.f32 %v1994, %v1937
        %v1999 = vmax.f32 %v1995, %v1938
        %v2000 = vmax.f32 %v1996, %v1939
        %v2001 = vmax.f32 %v1997, %v1940
        %v2002 = vmax.f32 %v1998, %v1941
        %v2003 = vmax.f32 %v1999, %v1942
        %v2004 = vmax.f32 %v2000, %v1943
        %v2005 = vmax.f32 %v2001, %v1944
        %v2006 = vmax.f32 %v2002, %v1945
        %v2007 = vmax.f32 %v2003, %v1946
        %v2008 = vmax.f32 %v2004, %v1947
        %v2009 = vmax.f32 %v2005, %v1948
        %v2010 = vmax.f32 %v2006, %v1949
        %v2011 = vmax.f32 %v2007, %v1950
        %v2012 = vmax.f32 %v2008, %v1951
        %v2013 = vmax.f32 %v2009, %v1952
        %v2014 = vmax.f32 %v2010, %v1953
        %v2015 = vmax.f32 %v2011, %v1954
        %v2016 = vmax.f32 %v2012, %v1955
        %v2017 = vmax.f32 %v2013, %v1956
        %v2018 = vmax.f32 %v2014, %v1957
        %v2019 = vmax.f32 %v2015, %v1958
        %v2020 = vmax.f32 %v2016, %v1959
        %v2021 = vmax.f32 %v2017, %v1960
        %v2022 = vmax.f32 %v2018, %v1961
        %v2023 = vmax.f32 %v2019, %v1962
        %v2024 = vmax.f32 %v2020, %v2021
        %v2025 = vmax.f32 %v2022, %v2023
        %v2026 = vmax.f32 %v2024, %v2025
        %v2027 = vrot.slane %v2026, 4
        %v2028 = vmax.f32 %v2026, %v2027
        %v2029 = vrot.slane %v2028, 2
        %v2030 = vmax.f32 %v2028, %v2029
        %v2031 = vrot.slane %v2030, 1
        %v2032 = vmax.f32 %v2030, %v2031
        %v2033 = vmax.f32 %v1963, %v2032
        %vm2034 = vcmp.eq.f32.partialorder %v2033, -inf
        %v2035 = vsel %vm2034, 0.0, %v2033
        %v2036 = vsub.f32 %v1963, %v2035
        %v2037 = vmul.f32 %v2036, 1.442695
        %v2038 = vpow.pop %v2037
        %v2040 = vlaneseq
        %v2041 = vshrl.u32 %v2040, 7
        %v2042 = vsub.s32 0, %v2041
        %v2043 = vrot.slane %v2035, %v2042
        %v2045 = vsub.f32 %v1899, %v2043
        %v2046 = vsub.f32 %v1900, %v2043
        %v2047 = vsub.f32 %v1901, %v2043
        %v2048 = vsub.f32 %v1902, %v2043
        %v2049 = vsub.f32 %v1903, %v2043
        %v2050 = vsub.f32 %v1904, %v2043
        %v2051 = vsub.f32 %v1905, %v2043
        %v2052 = vsub.f32 %v1906, %v2043
        %v2053 = vsub.f32 %v1907, %v2043
        %v2054 = vsub.f32 %v1908, %v2043
        %v2055 = vsub.f32 %v1909, %v2043
        %v2056 = vsub.f32 %v1910, %v2043
        %v2057 = vsub.f32 %v1911, %v2043
        %v2058 = vsub.f32 %v1912, %v2043
        %v2059 = vsub.f32 %v1913, %v2043
        %v2060 = vsub.f32 %v1914, %v2043
        %v2061 = vsub.f32 %v1915, %v2043
        %v2062 = vsub.f32 %v1916, %v2043
        %v2063 = vsub.f32 %v1917, %v2043
        %v2064 = vsub.f32 %v1918, %v2043
        %v2065 = vsub.f32 %v1919, %v2043
        %v2066 = vsub.f32 %v1920, %v2043
        %v2067 = vsub.f32 %v1921, %v2043
        %v2068 = vsub.f32 %v1922, %v2043
        %v2069 = vsub.f32 %v1923, %v2043
        %v2070 = vsub.f32 %v1924, %v2043
        %v2071 = vsub.f32 %v1925, %v2043
        %v2072 = vsub.f32 %v1926, %v2043
        %v2073 = vsub.f32 %v1927, %v2043
        %v2074 = vsub.f32 %v1928, %v2043
        %v2075 = vsub.f32 %v1929, %v2043
        %v2076 = vsub.f32 %v1930, %v2043
        %v2077 = vsub.f32 %v1931, %v2043
        %v2078 = vsub.f32 %v1932, %v2043
        %v2079 = vsub.f32 %v1933, %v2043
        %v2080 = vsub.f32 %v1934, %v2043
        %v2081 = vsub.f32 %v1935, %v2043
        %v2082 = vsub.f32 %v1936, %v2043
        %v2083 = vsub.f32 %v1937, %v2043
        %v2084 = vsub.f32 %v1938, %v2043
        %v2085 = vsub.f32 %v1939, %v2043
        %v2086 = vsub.f32 %v1940, %v2043
        %v2087 = vsub.f32 %v1941, %v2043
        %v2088 = vsub.f32 %v1942, %v2043
        %v2089 = vsub.f32 %v1943, %v2043
        %v2090 = vsub.f32 %v1944, %v2043
        %v2091 = vsub.f32 %v1945, %v2043
        %v2092 = vsub.f32 %v1946, %v2043
        %v2093 = vsub.f32 %v1947, %v2043
        %v2094 = vsub.f32 %v1948, %v2043
        %v2095 = vsub.f32 %v1949, %v2043
        %v2096 = vsub.f32 %v1950, %v2043
        %v2097 = vsub.f32 %v1951, %v2043
        %v2098 = vsub.f32 %v1952, %v2043
        %v2099 = vsub.f32 %v1953, %v2043
        %v2100 = vsub.f32 %v1954, %v2043
        %v2101 = vsub.f32 %v1955, %v2043
        %v2102 = vsub.f32 %v1956, %v2043
        %v2103 = vsub.f32 %v1957, %v2043
        %v2104 = vsub.f32 %v1958, %v2043
        %v2105 = vsub.f32 %v1959, %v2043
        %v2106 = vsub.f32 %v1960, %v2043
        %v2107 = vsub.f32 %v1961, %v2043
        %v2108 = vsub.f32 %v1962, %v2043
        %v2109 = vmul.f32 %v2045, 1.442695
        %v2110 = vpow.pop %v2109
        %v2111 = vmul.f32 %v2046, 1.442695
        %v2112 = vpow.pop %v2111
        %v2113 = vmul.f32 %v2047, 1.442695
        %v2114 = vpow.pop %v2113
        %v2115 = vmul.f32 %v2048, 1.442695
        %v2116 = vpow.pop %v2115
        %v2117 = vmul.f32 %v2049, 1.442695
        %v2118 = vpow.pop %v2117
        %v2119 = vmul.f32 %v2050, 1.442695
        %v2120 = vpow.pop %v2119
        %v2121 = vmul.f32 %v2051, 1.442695
        %v2122 = vpow.pop %v2121
        %v2123 = vmul.f32 %v2052, 1.442695
        %v2124 = vpow.pop %v2123
        %v2125 = vmul.f32 %v2053, 1.442695
        %v2126 = vpow.pop %v2125
        %v2127 = vmul.f32 %v2054, 1.442695
        %v2128 = vpow.pop %v2127
        %v2129 = vmul.f32 %v2055, 1.442695
        %v2130 = vpow.pop %v2129
        %v2131 = vmul.f32 %v2056, 1.442695
        %v2132 = vpow.pop %v2131
        %v2133 = vmul.f32 %v2057, 1.442695
        %v2134 = vpow.pop %v2133
        %v2135 = vmul.f32 %v2058, 1.442695
        %v2136 = vpow.pop %v2135
        %v2137 = vmul.f32 %v2059, 1.442695
        %v2138 = vpow.pop %v2137
        %v2139 = vmul.f32 %v2060, 1.442695
        %v2140 = vpow.pop %v2139
        %v2141 = vmul.f32 %v2061, 1.442695
        %v2142 = vpow.pop %v2141
        %v2143 = vmul.f32 %v2062, 1.442695
        %v2144 = vpow.pop %v2143
        %v2145 = vmul.f32 %v2063, 1.442695
        %v2146 = vpow.pop %v2145
        %v2147 = vmul.f32 %v2064, 1.442695
        %v2148 = vpow.pop %v2147
        %v2149 = vmul.f32 %v2065, 1.442695
        %v2150 = vpow.pop %v2149
        %v2151 = vmul.f32 %v2066, 1.442695
        %v2152 = vpow.pop %v2151
        %v2153 = vmul.f32 %v2067, 1.442695
        %v2154 = vpow.pop %v2153
        %v2155 = vmul.f32 %v2068, 1.442695
        %v2156 = vpow.pop %v2155
        %v2157 = vmul.f32 %v2069, 1.442695
        %v2158 = vpow.pop %v2157
        %v2159 = vmul.f32 %v2070, 1.442695
        %v2160 = vpow.pop %v2159
        %v2161 = vmul.f32 %v2071, 1.442695
        %v2162 = vpow.pop %v2161
        %v2163 = vmul.f32 %v2072, 1.442695
        %v2164 = vpow.pop %v2163
        %v2165 = vmul.f32 %v2073, 1.442695
        %v2166 = vpow.pop %v2165
        %v2167 = vmul.f32 %v2074, 1.442695
        %v2168 = vpow.pop %v2167
        %v2169 = vmul.f32 %v2075, 1.442695
        %v2170 = vpow.pop %v2169
        %v2171 = vmul.f32 %v2076, 1.442695
        %v2172 = vpow.pop %v2171
        %v2173 = vmul.f32 %v2077, 1.442695
        %v2174 = vpow.pop %v2173
        %v2175 = vmul.f32 %v2078, 1.442695
        %v2176 = vpow.pop %v2175
        %v2177 = vmul.f32 %v2079, 1.442695
        %v2178 = vpow.pop %v2177
        %v2179 = vmul.f32 %v2080, 1.442695
        %v2180 = vpow.pop %v2179
        %v2181 = vmul.f32 %v2081, 1.442695
        %v2182 = vpow.pop %v2181
        %v2183 = vmul.f32 %v2082, 1.442695
        %v2184 = vpow.pop %v2183
        %v2185 = vmul.f32 %v2083, 1.442695
        %v2186 = vpow.pop %v2185
        %v2187 = vmul.f32 %v2084, 1.442695
        %v2188 = vpow.pop %v2187
        %v2189 = vmul.f32 %v2085, 1.442695
        %v2190 = vpow.pop %v2189
        %v2191 = vmul.f32 %v2086, 1.442695
        %v2192 = vpow.pop %v2191
        %v2193 = vmul.f32 %v2087, 1.442695
        %v2194 = vpow.pop %v2193
        %v2195 = vmul.f32 %v2088, 1.442695
        %v2196 = vpow.pop %v2195
        %v2197 = vmul.f32 %v2089, 1.442695
        %v2198 = vpow.pop %v2197
        %v2199 = vmul.f32 %v2090, 1.442695
        %v2200 = vpow.pop %v2199
        %v2201 = vmul.f32 %v2091, 1.442695
        %v2202 = vpow.pop %v2201
        %v2203 = vmul.f32 %v2092, 1.442695
        %v2204 = vpow.pop %v2203
        %v2205 = vmul.f32 %v2093, 1.442695
        %v2206 = vpow.pop %v2205
        %v2207 = vmul.f32 %v2094, 1.442695
        %v2208 = vpow.pop %v2207
        %v2209 = vmul.f32 %v2095, 1.442695
        %v2210 = vpow.pop %v2209
        %v2211 = vmul.f32 %v2096, 1.442695
        %v2212 = vpow.pop %v2211
        %v2213 = vmul.f32 %v2097, 1.442695
        %v2214 = vpow.pop %v2213
        %v2215 = vmul.f32 %v2098, 1.442695
        %v2216 = vpow.pop %v2215
        %v2217 = vmul.f32 %v2099, 1.442695
        %v2218 = vpow.pop %v2217
        %v2219 = vmul.f32 %v2100, 1.442695
        %v2220 = vpow.pop %v2219
        %v2221 = vmul.f32 %v2101, 1.442695
        %v2222 = vpow.pop %v2221
        %v2223 = vmul.f32 %v2102, 1.442695
        %v2224 = vpow.pop %v2223
        %v2225 = vmul.f32 %v2103, 1.442695
        %v2226 = vpow.pop %v2225
        %v2227 = vmul.f32 %v2104, 1.442695
        %v2228 = vpow.pop %v2227
        %v2229 = vmul.f32 %v2105, 1.442695
        %v2230 = vpow.pop %v2229
        %v2231 = vmul.f32 %v2106, 1.442695
        %v2232 = vpow.pop %v2231
        %v2233 = vmul.f32 %v2107, 1.442695
        %v2234 = vpow.pop %v2233
        %v2235 = vmul.f32 %v2108, 1.442695
        %v2236 = vpow.pop %v2235
        %v2237 = vld [vmem:[%s489] sm:$0x1]
        %v2238 = vmul.f32 %v2038, %v2237
        %vm2239 = vcmask 7168
        %v2240 = vsel %vm2239, %v2110, 0.0
        %v2241 = vsel %vm2239, %v2112, 0.0
        %v2242 = vadd.f32 %v2240, %v2241
        %v2243 = vsel %vm2239, %v2114, 0.0
        %v2244 = vadd.f32 %v2242, %v2243
        %v2245 = vsel %vm2239, %v2116, 0.0
        %v2246 = vadd.f32 %v2244, %v2245
        %v2247 = vsel %vm2239, %v2118, 0.0
        %v2248 = vadd.f32 %v2246, %v2247
        %v2249 = vsel %vm2239, %v2120, 0.0
        %v2250 = vadd.f32 %v2248, %v2249
        %v2251 = vsel %vm2239, %v2122, 0.0
        %v2252 = vadd.f32 %v2250, %v2251
        %v2253 = vsel %vm2239, %v2124, 0.0
        %v2254 = vadd.f32 %v2252, %v2253
        %v2255 = vsel %vm2239, %v2126, 0.0
        %v2256 = vadd.f32 %v2254, %v2255
        %v2257 = vsel %vm2239, %v2128, 0.0
        %v2258 = vadd.f32 %v2256, %v2257
        %v2259 = vsel %vm2239, %v2130, 0.0
        %v2260 = vadd.f32 %v2258, %v2259
        %v2261 = vsel %vm2239, %v2132, 0.0
        %v2262 = vadd.f32 %v2260, %v2261
        %v2263 = vsel %vm2239, %v2134, 0.0
        %v2264 = vadd.f32 %v2262, %v2263
        %v2265 = vsel %vm2239, %v2136, 0.0
        %v2266 = vadd.f32 %v2264, %v2265
        %v2267 = vsel %vm2239, %v2138, 0.0
        %v2268 = vadd.f32 %v2266, %v2267
        %v2269 = vsel %vm2239, %v2140, 0.0
        %v2270 = vadd.f32 %v2268, %v2269
        %v2271 = vsel %vm2239, %v2142, 0.0
        %v2272 = vadd.f32 %v2270, %v2271
        %v2273 = vsel %vm2239, %v2144, 0.0
        %v2274 = vadd.f32 %v2272, %v2273
        %v2275 = vsel %vm2239, %v2146, 0.0
        %v2276 = vadd.f32 %v2274, %v2275
        %v2277 = vsel %vm2239, %v2148, 0.0
        %v2278 = vadd.f32 %v2276, %v2277
        %v2279 = vsel %vm2239, %v2150, 0.0
        %v2280 = vadd.f32 %v2278, %v2279
        %v2281 = vsel %vm2239, %v2152, 0.0
        %v2282 = vadd.f32 %v2280, %v2281
        %v2283 = vsel %vm2239, %v2154, 0.0
        %v2284 = vadd.f32 %v2282, %v2283
        %v2285 = vsel %vm2239, %v2156, 0.0
        %v2286 = vadd.f32 %v2284, %v2285
        %v2287 = vsel %vm2239, %v2158, 0.0
        %v2288 = vadd.f32 %v2286, %v2287
        %v2289 = vsel %vm2239, %v2160, 0.0
        %v2290 = vadd.f32 %v2288, %v2289
        %v2291 = vsel %vm2239, %v2162, 0.0
        %v2292 = vadd.f32 %v2290, %v2291
        %v2293 = vsel %vm2239, %v2164, 0.0
        %v2294 = vadd.f32 %v2292, %v2293
        %v2295 = vsel %vm2239, %v2166, 0.0
        %v2296 = vadd.f32 %v2294, %v2295
        %v2297 = vsel %vm2239, %v2168, 0.0
        %v2298 = vadd.f32 %v2296, %v2297
        %v2299 = vsel %vm2239, %v2170, 0.0
        %v2300 = vadd.f32 %v2298, %v2299
        %v2301 = vsel %vm2239, %v2172, 0.0
        %v2302 = vadd.f32 %v2300, %v2301
        %v2303 = vsel %vm2239, %v2174, 0.0
        %v2304 = vadd.f32 %v2302, %v2303
        %v2305 = vsel %vm2239, %v2176, 0.0
        %v2306 = vadd.f32 %v2304, %v2305
        %v2307 = vsel %vm2239, %v2178, 0.0
        %v2308 = vadd.f32 %v2306, %v2307
        %v2309 = vsel %vm2239, %v2180, 0.0
        %v2310 = vadd.f32 %v2308, %v2309
        %v2311 = vsel %vm2239, %v2182, 0.0
        %v2312 = vadd.f32 %v2310, %v2311
        %v2313 = vsel %vm2239, %v2184, 0.0
        %v2314 = vadd.f32 %v2312, %v2313
        %v2315 = vsel %vm2239, %v2186, 0.0
        %v2316 = vadd.f32 %v2314, %v2315
        %v2317 = vsel %vm2239, %v2188, 0.0
        %v2318 = vadd.f32 %v2316, %v2317
        %v2319 = vsel %vm2239, %v2190, 0.0
        %v2320 = vadd.f32 %v2318, %v2319
        %v2321 = vsel %vm2239, %v2192, 0.0
        %v2322 = vadd.f32 %v2320, %v2321
        %v2323 = vsel %vm2239, %v2194, 0.0
        %v2324 = vadd.f32 %v2322, %v2323
        %v2325 = vsel %vm2239, %v2196, 0.0
        %v2326 = vadd.f32 %v2324, %v2325
        %v2327 = vsel %vm2239, %v2198, 0.0
        %v2328 = vadd.f32 %v2326, %v2327
        %v2329 = vsel %vm2239, %v2200, 0.0
        %v2330 = vadd.f32 %v2328, %v2329
        %v2331 = vsel %vm2239, %v2202, 0.0
        %v2332 = vadd.f32 %v2330, %v2331
        %v2333 = vsel %vm2239, %v2204, 0.0
        %v2334 = vadd.f32 %v2332, %v2333
        %v2335 = vsel %vm2239, %v2206, 0.0
        %v2336 = vadd.f32 %v2334, %v2335
        %v2337 = vsel %vm2239, %v2208, 0.0
        %v2338 = vadd.f32 %v2336, %v2337
        %v2339 = vsel %vm2239, %v2210, 0.0
        %v2340 = vadd.f32 %v2338, %v2339
        %v2341 = vsel %vm2239, %v2212, 0.0
        %v2342 = vadd.f32 %v2340, %v2341
        %v2343 = vsel %vm2239, %v2214, 0.0
        %v2344 = vadd.f32 %v2342, %v2343
        %v2345 = vsel %vm2239, %v2216, 0.0
        %v2346 = vadd.f32 %v2344, %v2345
        %v2347 = vsel %vm2239, %v2218, 0.0
        %v2348 = vadd.f32 %v2346, %v2347
        %v2349 = vsel %vm2239, %v2220, 0.0
        %v2350 = vadd.f32 %v2348, %v2349
        %v2351 = vsel %vm2239, %v2222, 0.0
        %v2352 = vadd.f32 %v2350, %v2351
        %v2353 = vsel %vm2239, %v2224, 0.0
        %v2354 = vadd.f32 %v2352, %v2353
        %v2355 = vsel %vm2239, %v2226, 0.0
        %v2356 = vadd.f32 %v2354, %v2355
        %v2357 = vsel %vm2239, %v2228, 0.0
        %v2358 = vadd.f32 %v2356, %v2357
        %v2359 = vsel %vm2239, %v2230, 0.0
        %v2360 = vadd.f32 %v2358, %v2359
        %v2361 = vsel %vm2239, %v2232, 0.0
        %v2362 = vadd.f32 %v2360, %v2361
        %v2363 = vsel %vm2239, %v2234, 0.0
        %v2364 = vadd.f32 %v2362, %v2363
        %v2365 = vsel %vm2239, %v2236, 0.0
        %v2366 = vadd.f32 %v2364, %v2365
        %v2367 = vrot.slane %v2366, 4
        %v2368 = vadd.f32 %v2366, %v2367
        %v2369 = vrot.slane %v2368, 2
        %v2370 = vadd.f32 %v2368, %v2369
        %v2371 = vrot.slane %v2370, 1
        %v2372 = vadd.f32 %v2370, %v2371
        %v2373 = vadd.f32 %v2238, %v2372
        %vm2374 = vcmask 0
        %2375 = vst.msk [vmem:[%s489] sm:$0x1] %vm2374, %v2373
        %2376 = vst.msk [vmem:[%s486] sm:$0x1] %vm2374, %v2033
        %v2377 = vld [vmem:[%s415] sm:$0xf]
        %v2378 = vlaneseq
        %v2379 = vshrl.u32 %v2378, 7
        %v2380 = vsub.s32 0, %v2379
        %v2381 = vrot.slane %v2377, %v2380
        %v2382 = vlaneseq
        %v2383 = vshrl.u32 %v2382, 7
        %v2384 = vsub.s32 1, %v2383
        %v2385 = vrot.slane %v2377, %v2384
        %v2386 = vlaneseq
        %v2387 = vshrl.u32 %v2386, 7
        %v2388 = vsub.s32 2, %v2387
        %v2389 = vrot.slane %v2377, %v2388
        %v2390 = vlaneseq
        %v2391 = vshrl.u32 %v2390, 7
        %v2392 = vsub.s32 3, %v2391
        %v2393 = vrot.slane %v2377, %v2392
        %vm2394 = vcmp.eq.s32.totalorder %v503, %v2381
        %vm2395 = vcmp.eq.s32.totalorder %v503, %v2385
        %vm2396 = vcmp.eq.s32.totalorder %v503, %v2389
        %vm2397 = vcmp.eq.s32.totalorder %v503, %v2393
        %v2398 = vsel %vm2394, 1, 0
        %v2399 = vsel %vm2395, 1, 0
        %v2400 = vsel %vm2396, 1, 0
        %v2401 = vsel %vm2397, 1, 0
        %v2402 = vcvt.s32.f32 %v2398
        %v2403 = vcvt.s32.f32 %v2399
        %v2404 = vcvt.s32.f32 %v2400
        %v2405 = vcvt.s32.f32 %v2401
        %v2406 = vpack.c.bf16 %v2402, %v2402
        %v2407 = vpack.c.bf16 %v2403, %v2403
        %v2408 = vpack.c.bf16 %v2404, %v2404
        %v2409 = vpack.c.bf16 %v2405, %v2405
        %2411 = vset.pattern.permute.xlu0 0
        %2412 = vperm.xlu0 %2411, %v2110
        %v2413 = vpop.permute.xlu0 %2412
        %2416 = vset.pattern.permute.xlu0 0
        %2417 = vperm.xlu0 %2416, %v2112
        %v2418 = vpop.permute.xlu0 %2417
        %2421 = vset.pattern.permute.xlu0 0
        %2422 = vperm.xlu0 %2421, %v2114
        %v2423 = vpop.permute.xlu0 %2422
        %2426 = vset.pattern.permute.xlu0 0
        %2427 = vperm.xlu0 %2426, %v2116
        %v2428 = vpop.permute.xlu0 %2427
        %2431 = vset.pattern.permute.xlu0 0
        %2432 = vperm.xlu0 %2431, %v2118
        %v2433 = vpop.permute.xlu0 %2432
        %2436 = vset.pattern.permute.xlu0 0
        %2437 = vperm.xlu0 %2436, %v2120
        %v2438 = vpop.permute.xlu0 %2437
        %2441 = vset.pattern.permute.xlu0 0
        %2442 = vperm.xlu0 %2441, %v2122
        %v2443 = vpop.permute.xlu0 %2442
        %2446 = vset.pattern.permute.xlu0 0
        %2447 = vperm.xlu0 %2446, %v2124
        %v2448 = vpop.permute.xlu0 %2447
        %2451 = vset.pattern.permute.xlu0 0
        %2452 = vperm.xlu0 %2451, %v2126
        %v2453 = vpop.permute.xlu0 %2452
        %2456 = vset.pattern.permute.xlu0 0
        %2457 = vperm.xlu0 %2456, %v2128
        %v2458 = vpop.permute.xlu0 %2457
        %2461 = vset.pattern.permute.xlu0 0
        %2462 = vperm.xlu0 %2461, %v2130
        %v2463 = vpop.permute.xlu0 %2462
        %2466 = vset.pattern.permute.xlu0 0
        %2467 = vperm.xlu0 %2466, %v2132
        %v2468 = vpop.permute.xlu0 %2467
        %2471 = vset.pattern.permute.xlu0 0
        %2472 = vperm.xlu0 %2471, %v2134
        %v2473 = vpop.permute.xlu0 %2472
        %2476 = vset.pattern.permute.xlu0 0
        %2477 = vperm.xlu0 %2476, %v2136
        %v2478 = vpop.permute.xlu0 %2477
        %2481 = vset.pattern.permute.xlu0 0
        %2482 = vperm.xlu0 %2481, %v2138
        %v2483 = vpop.permute.xlu0 %2482
        %2486 = vset.pattern.permute.xlu0 0
        %2487 = vperm.xlu0 %2486, %v2140
        %v2488 = vpop.permute.xlu0 %2487
        %2491 = vset.pattern.permute.xlu0 0
        %2492 = vperm.xlu0 %2491, %v2142
        %v2493 = vpop.permute.xlu0 %2492
        %2496 = vset.pattern.permute.xlu0 0
        %2497 = vperm.xlu0 %2496, %v2144
        %v2498 = vpop.permute.xlu0 %2497
        %2501 = vset.pattern.permute.xlu0 0
        %2502 = vperm.xlu0 %2501, %v2146
        %v2503 = vpop.permute.xlu0 %2502
        %2506 = vset.pattern.permute.xlu0 0
        %2507 = vperm.xlu0 %2506, %v2148
        %v2508 = vpop.permute.xlu0 %2507
        %2511 = vset.pattern.permute.xlu0 0
        %2512 = vperm.xlu0 %2511, %v2150
        %v2513 = vpop.permute.xlu0 %2512
        %2516 = vset.pattern.permute.xlu0 0
        %2517 = vperm.xlu0 %2516, %v2152
        %v2518 = vpop.permute.xlu0 %2517
        %2521 = vset.pattern.permute.xlu0 0
        %2522 = vperm.xlu0 %2521, %v2154
        %v2523 = vpop.permute.xlu0 %2522
        %2526 = vset.pattern.permute.xlu0 0
        %2527 = vperm.xlu0 %2526, %v2156
        %v2528 = vpop.permute.xlu0 %2527
        %2531 = vset.pattern.permute.xlu0 0
        %2532 = vperm.xlu0 %2531, %v2158
        %v2533 = vpop.permute.xlu0 %2532
        %2536 = vset.pattern.permute.xlu0 0
        %2537 = vperm.xlu0 %2536, %v2160
        %v2538 = vpop.permute.xlu0 %2537
        %2541 = vset.pattern.permute.xlu0 0
        %2542 = vperm.xlu0 %2541, %v2162
        %v2543 = vpop.permute.xlu0 %2542
        %2546 = vset.pattern.permute.xlu0 0
        %2547 = vperm.xlu0 %2546, %v2164
        %v2548 = vpop.permute.xlu0 %2547
        %2551 = vset.pattern.permute.xlu0 0
        %2552 = vperm.xlu0 %2551, %v2166
        %v2553 = vpop.permute.xlu0 %2552
        %2556 = vset.pattern.permute.xlu0 0
        %2557 = vperm.xlu0 %2556, %v2168
        %v2558 = vpop.permute.xlu0 %2557
        %2561 = vset.pattern.permute.xlu0 0
        %2562 = vperm.xlu0 %2561, %v2170
        %v2563 = vpop.permute.xlu0 %2562
        %2566 = vset.pattern.permute.xlu0 0
        %2567 = vperm.xlu0 %2566, %v2172
        %v2568 = vpop.permute.xlu0 %2567
        %2571 = vset.pattern.permute.xlu0 0
        %2572 = vperm.xlu0 %2571, %v2174
        %v2573 = vpop.permute.xlu0 %2572
        %2576 = vset.pattern.permute.xlu0 0
        %2577 = vperm.xlu0 %2576, %v2176
        %v2578 = vpop.permute.xlu0 %2577
        %2581 = vset.pattern.permute.xlu0 0
        %2582 = vperm.xlu0 %2581, %v2178
        %v2583 = vpop.permute.xlu0 %2582
        %2586 = vset.pattern.permute.xlu0 0
        %2587 = vperm.xlu0 %2586, %v2180
        %v2588 = vpop.permute.xlu0 %2587
        %2591 = vset.pattern.permute.xlu0 0
        %2592 = vperm.xlu0 %2591, %v2182
        %v2593 = vpop.permute.xlu0 %2592
        %2596 = vset.pattern.permute.xlu0 0
        %2597 = vperm.xlu0 %2596, %v2184
        %v2598 = vpop.permute.xlu0 %2597
        %2601 = vset.pattern.permute.xlu0 0
        %2602 = vperm.xlu0 %2601, %v2186
        %v2603 = vpop.permute.xlu0 %2602
        %2606 = vset.pattern.permute.xlu0 0
        %2607 = vperm.xlu0 %2606, %v2188
        %v2608 = vpop.permute.xlu0 %2607
        %2611 = vset.pattern.permute.xlu0 0
        %2612 = vperm.xlu0 %2611, %v2190
        %v2613 = vpop.permute.xlu0 %2612
        %2616 = vset.pattern.permute.xlu0 0
        %2617 = vperm.xlu0 %2616, %v2192
        %v2618 = vpop.permute.xlu0 %2617
        %2621 = vset.pattern.permute.xlu0 0
        %2622 = vperm.xlu0 %2621, %v2194
        %v2623 = vpop.permute.xlu0 %2622
        %2626 = vset.pattern.permute.xlu0 0
        %2627 = vperm.xlu0 %2626, %v2196
        %v2628 = vpop.permute.xlu0 %2627
        %2631 = vset.pattern.permute.xlu0 0
        %2632 = vperm.xlu0 %2631, %v2198
        %v2633 = vpop.permute.xlu0 %2632
        %2636 = vset.pattern.permute.xlu0 0
        %2637 = vperm.xlu0 %2636, %v2200
        %v2638 = vpop.permute.xlu0 %2637
        %2641 = vset.pattern.permute.xlu0 0
        %2642 = vperm.xlu0 %2641, %v2202
        %v2643 = vpop.permute.xlu0 %2642
        %2646 = vset.pattern.permute.xlu0 0
        %2647 = vperm.xlu0 %2646, %v2204
        %v2648 = vpop.permute.xlu0 %2647
        %2651 = vset.pattern.permute.xlu0 0
        %2652 = vperm.xlu0 %2651, %v2206
        %v2653 = vpop.permute.xlu0 %2652
        %2656 = vset.pattern.permute.xlu0 0
        %2657 = vperm.xlu0 %2656, %v2208
        %v2658 = vpop.permute.xlu0 %2657
        %2661 = vset.pattern.permute.xlu0 0
        %2662 = vperm.xlu0 %2661, %v2210
        %v2663 = vpop.permute.xlu0 %2662
        %2666 = vset.pattern.permute.xlu0 0
        %2667 = vperm.xlu0 %2666, %v2212
        %v2668 = vpop.permute.xlu0 %2667
        %2671 = vset.pattern.permute.xlu0 0
        %2672 = vperm.xlu0 %2671, %v2214
        %v2673 = vpop.permute.xlu0 %2672
        %2676 = vset.pattern.permute.xlu0 0
        %2677 = vperm.xlu0 %2676, %v2216
        %v2678 = vpop.permute.xlu0 %2677
        %2681 = vset.pattern.permute.xlu0 0
        %2682 = vperm.xlu0 %2681, %v2218
        %v2683 = vpop.permute.xlu0 %2682
        %2686 = vset.pattern.permute.xlu0 0
        %2687 = vperm.xlu0 %2686, %v2220
        %v2688 = vpop.permute.xlu0 %2687
        %2691 = vset.pattern.permute.xlu0 0
        %2692 = vperm.xlu0 %2691, %v2222
        %v2693 = vpop.permute.xlu0 %2692
        %2696 = vset.pattern.permute.xlu0 0
        %2697 = vperm.xlu0 %2696, %v2224
        %v2698 = vpop.permute.xlu0 %2697
        %2701 = vset.pattern.permute.xlu0 0
        %2702 = vperm.xlu0 %2701, %v2226
        %v2703 = vpop.permute.xlu0 %2702
        %2706 = vset.pattern.permute.xlu0 0
        %2707 = vperm.xlu0 %2706, %v2228
        %v2708 = vpop.permute.xlu0 %2707
        %2711 = vset.pattern.permute.xlu0 0
        %2712 = vperm.xlu0 %2711, %v2230
        %v2713 = vpop.permute.xlu0 %2712
        %2716 = vset.pattern.permute.xlu0 0
        %2717 = vperm.xlu0 %2716, %v2232
        %v2718 = vpop.permute.xlu0 %2717
        %2721 = vset.pattern.permute.xlu0 0
        %2722 = vperm.xlu0 %2721, %v2234
        %v2723 = vpop.permute.xlu0 %2722
        %2726 = vset.pattern.permute.xlu0 0
        %2727 = vperm.xlu0 %2726, %v2236
        %v2728 = vpop.permute.xlu0 %2727
        %v2730 = vmul.f32 %v954, %v2413
        %v2731 = vmul.f32 %v955, %v2413
        %v2732 = vmul.f32 %v956, %v2418
        %v2733 = vmul.f32 %v957, %v2418
        %v2734 = vmul.f32 %v958, %v2423
        %v2735 = vmul.f32 %v959, %v2423
        %v2736 = vmul.f32 %v960, %v2428
        %v2737 = vmul.f32 %v961, %v2428
        %v2738 = vmul.f32 %v962, %v2433
        %v2739 = vmul.f32 %v963, %v2433
        %v2740 = vmul.f32 %v964, %v2438
        %v2741 = vmul.f32 %v965, %v2438
        %v2742 = vmul.f32 %v966, %v2443
        %v2743 = vmul.f32 %v967, %v2443
        %v2744 = vmul.f32 %v968, %v2448
        %v2745 = vmul.f32 %v969, %v2448
        %v2746 = vmul.f32 %v970, %v2453
        %v2747 = vmul.f32 %v971, %v2453
        %v2748 = vmul.f32 %v972, %v2458
        %v2749 = vmul.f32 %v973, %v2458
        %v2750 = vmul.f32 %v974, %v2463
        %v2751 = vmul.f32 %v975, %v2463
        %v2752 = vmul.f32 %v976, %v2468
        %v2753 = vmul.f32 %v977, %v2468
        %v2754 = vmul.f32 %v978, %v2473
        %v2755 = vmul.f32 %v979, %v2473
        %v2756 = vmul.f32 %v980, %v2478
        %v2757 = vmul.f32 %v981, %v2478
        %v2758 = vmul.f32 %v982, %v2483
        %v2759 = vmul.f32 %v983, %v2483
        %v2760 = vmul.f32 %v984, %v2488
        %v2761 = vmul.f32 %v985, %v2488
        %v2762 = vmul.f32 %v986, %v2493
        %v2763 = vmul.f32 %v987, %v2493
        %v2764 = vmul.f32 %v988, %v2498
        %v2765 = vmul.f32 %v989, %v2498
        %v2766 = vmul.f32 %v990, %v2503
        %v2767 = vmul.f32 %v991, %v2503
        %v2768 = vmul.f32 %v992, %v2508
        %v2769 = vmul.f32 %v993, %v2508
        %v2770 = vmul.f32 %v994, %v2513
        %v2771 = vmul.f32 %v995, %v2513
        %v2772 = vmul.f32 %v996, %v2518
        %v2773 = vmul.f32 %v997, %v2518
        %v2774 = vmul.f32 %v998, %v2523
        %v2775 = vmul.f32 %v999, %v2523
        %v2776 = vmul.f32 %v1000, %v2528
        %v2777 = vmul.f32 %v1001, %v2528
        %v2778 = vmul.f32 %v1002, %v2533
        %v2779 = vmul.f32 %v1003, %v2533
        %v2780 = vmul.f32 %v1004, %v2538
        %v2781 = vmul.f32 %v1005, %v2538
        %v2782 = vmul.f32 %v1006, %v2543
        %v2783 = vmul.f32 %v1007, %v2543
        %v2784 = vmul.f32 %v1008, %v2548
        %v2785 = vmul.f32 %v1009, %v2548
        %v2786 = vmul.f32 %v1010, %v2553
        %v2787 = vmul.f32 %v1011, %v2553
        %v2788 = vmul.f32 %v1012, %v2558
        %v2789 = vmul.f32 %v1013, %v2558
        %v2790 = vmul.f32 %v1014, %v2563
        %v2791 = vmul.f32 %v1015, %v2563
        %v2792 = vmul.f32 %v1016, %v2568
        %v2793 = vmul.f32 %v1017, %v2568
        %v2794 = vmul.f32 %v1018, %v2573
        %v2795 = vmul.f32 %v1019, %v2573
        %v2796 = vmul.f32 %v1020, %v2578
        %v2797 = vmul.f32 %v1021, %v2578
        %v2798 = vmul.f32 %v1022, %v2583
        %v2799 = vmul.f32 %v1023, %v2583
        %v2800 = vmul.f32 %v1024, %v2588
        %v2801 = vmul.f32 %v1025, %v2588
        %v2802 = vmul.f32 %v1026, %v2593
        %v2803 = vmul.f32 %v1027, %v2593
        %v2804 = vmul.f32 %v1028, %v2598
        %v2805 = vmul.f32 %v1029, %v2598
        %v2806 = vmul.f32 %v1030, %v2603
        %v2807 = vmul.f32 %v1031, %v2603
        %v2808 = vmul.f32 %v1032, %v2608
        %v2809 = vmul.f32 %v1033, %v2608
        %v2810 = vmul.f32 %v1034, %v2613
        %v2811 = vmul.f32 %v1035, %v2613
        %v2812 = vmul.f32 %v1036, %v2618
        %v2813 = vmul.f32 %v1037, %v2618
        %v2814 = vmul.f32 %v1038, %v2623
        %v2815 = vmul.f32 %v1039, %v2623
        %v2816 = vmul.f32 %v1040, %v2628
        %v2817 = vmul.f32 %v1041, %v2628
        %v2818 = vmul.f32 %v1042, %v2633
        %v2819 = vmul.f32 %v1043, %v2633
        %v2820 = vmul.f32 %v1044, %v2638
        %v2821 = vmul.f32 %v1045, %v2638
        %v2822 = vmul.f32 %v1046, %v2643
        %v2823 = vmul.f32 %v1047, %v2643
        %v2824 = vmul.f32 %v1048, %v2648
        %v2825 = vmul.f32 %v1049, %v2648
        %v2826 = vmul.f32 %v1050, %v2653
        %v2827 = vmul.f32 %v1051, %v2653
        %v2828 = vmul.f32 %v1052, %v2658
        %v2829 = vmul.f32 %v1053, %v2658
        %v2830 = vmul.f32 %v1054, %v2663
        %v2831 = vmul.f32 %v1055, %v2663
        %v2832 = vmul.f32 %v1056, %v2668
        %v2833 = vmul.f32 %v1057, %v2668
        %v2834 = vmul.f32 %v1058, %v2673
        %v2835 = vmul.f32 %v1059, %v2673
        %v2836 = vmul.f32 %v1060, %v2678
        %v2837 = vmul.f32 %v1061, %v2678
        %v2838 = vmul.f32 %v1062, %v2683
        %v2839 = vmul.f32 %v1063, %v2683
        %v2840 = vmul.f32 %v1064, %v2688
        %v2841 = vmul.f32 %v1065, %v2688
        %v2842 = vmul.f32 %v1066, %v2693
        %v2843 = vmul.f32 %v1067, %v2693
        %v2844 = vmul.f32 %v1068, %v2698
        %v2845 = vmul.f32 %v1069, %v2698
        %v2846 = vmul.f32 %v1070, %v2703
        %v2847 = vmul.f32 %v1071, %v2703
        %v2848 = vmul.f32 %v1072, %v2708
        %v2849 = vmul.f32 %v1073, %v2708
        %v2850 = vmul.f32 %v1074, %v2713
        %v2851 = vmul.f32 %v1075, %v2713
        %v2852 = vmul.f32 %v1076, %v2718
        %v2853 = vmul.f32 %v1077, %v2718
        %v2854 = vmul.f32 %v1078, %v2723
        %v2855 = vmul.f32 %v1079, %v2723
        %v2856 = vmul.f32 %v1080, %v2728
        %v2857 = vmul.f32 %v1081, %v2728
        %v2858 = vpack.c.bf16 %v2732, %v2730
        %v2859 = vpack.c.bf16 %v2733, %v2731
        %v2860 = vpack.c.bf16 %v2736, %v2734
        %v2861 = vpack.c.bf16 %v2737, %v2735
        %v2862 = vpack.c.bf16 %v2740, %v2738
        %v2863 = vpack.c.bf16 %v2741, %v2739
        %v2864 = vpack.c.bf16 %v2744, %v2742
        %v2865 = vpack.c.bf16 %v2745, %v2743
        %v2866 = vpack.c.bf16 %v2748, %v2746
        %v2867 = vpack.c.bf16 %v2749, %v2747
        %v2868 = vpack.c.bf16 %v2752, %v2750
        %v2869 = vpack.c.bf16 %v2753, %v2751
        %v2870 = vpack.c.bf16 %v2756, %v2754
        %v2871 = vpack.c.bf16 %v2757, %v2755
        %v2872 = vpack.c.bf16 %v2760, %v2758
        %v2873 = vpack.c.bf16 %v2761, %v2759
        %v2874 = vpack.c.bf16 %v2764, %v2762
        %v2875 = vpack.c.bf16 %v2765, %v2763
        %v2876 = vpack.c.bf16 %v2768, %v2766
        %v2877 = vpack.c.bf16 %v2769, %v2767
        %v2878 = vpack.c.bf16 %v2772, %v2770
        %v2879 = vpack.c.bf16 %v2773, %v2771
        %v2880 = vpack.c.bf16 %v2776, %v2774
        %v2881 = vpack.c.bf16 %v2777, %v2775
        %v2882 = vpack.c.bf16 %v2780, %v2778
        %v2883 = vpack.c.bf16 %v2781, %v2779
        %v2884 = vpack.c.bf16 %v2784, %v2782
        %v2885 = vpack.c.bf16 %v2785, %v2783
        %v2886 = vpack.c.bf16 %v2788, %v2786
        %v2887 = vpack.c.bf16 %v2789, %v2787
        %v2888 = vpack.c.bf16 %v2792, %v2790
        %v2889 = vpack.c.bf16 %v2793, %v2791
        %v2890 = vpack.c.bf16 %v2796, %v2794
        %v2891 = vpack.c.bf16 %v2797, %v2795
        %v2892 = vpack.c.bf16 %v2800, %v2798
        %v2893 = vpack.c.bf16 %v2801, %v2799
        %v2894 = vpack.c.bf16 %v2804, %v2802
        %v2895 = vpack.c.bf16 %v2805, %v2803
        %v2896 = vpack.c.bf16 %v2808, %v2806
        %v2897 = vpack.c.bf16 %v2809, %v2807
        %v2898 = vpack.c.bf16 %v2812, %v2810
        %v2899 = vpack.c.bf16 %v2813, %v2811
        %v2900 = vpack.c.bf16 %v2816, %v2814
        %v2901 = vpack.c.bf16 %v2817, %v2815
        %v2902 = vpack.c.bf16 %v2820, %v2818
        %v2903 = vpack.c.bf16 %v2821, %v2819
        %v2904 = vpack.c.bf16 %v2824, %v2822
        %v2905 = vpack.c.bf16 %v2825, %v2823
        %v2906 = vpack.c.bf16 %v2828, %v2826
        %v2907 = vpack.c.bf16 %v2829, %v2827
        %v2908 = vpack.c.bf16 %v2832, %v2830
        %v2909 = vpack.c.bf16 %v2833, %v2831
        %v2910 = vpack.c.bf16 %v2836, %v2834
        %v2911 = vpack.c.bf16 %v2837, %v2835
        %v2912 = vpack.c.bf16 %v2840, %v2838
        %v2913 = vpack.c.bf16 %v2841, %v2839
        %v2914 = vpack.c.bf16 %v2844, %v2842
        %v2915 = vpack.c.bf16 %v2845, %v2843
        %v2916 = vpack.c.bf16 %v2848, %v2846
        %v2917 = vpack.c.bf16 %v2849, %v2847
        %v2918 = vpack.c.bf16 %v2852, %v2850
        %v2919 = vpack.c.bf16 %v2853, %v2851
        %v2920 = vpack.c.bf16 %v2856, %v2854
        %v2921 = vpack.c.bf16 %v2857, %v2855
        %v2922 = vld [vmem:[%s462] sm:$0xff]
        %v2924 = vlaneseq
        %v2925 = vshrl.u32 %v2924, 7
        %v2926 = vsub.s32 0, %v2925
        %v2927 = vrot.slane %v2038, %v2926
        %2928 = vset.pattern.permute.xlu0 0
        %2929 = vperm.xlu0 %2928, %v2927
        %v2930 = vpop.permute.xlu0 %2929
        %v2932 = vmul.f32 %v2930, %v2922
        %2933 = vmatprep.subr.bf16.mxu0 %v2859
        %2934 = vmatpush1.bf16.msra.mxu0 %v2858
        %2935 = vmatprep.subr.bf16.mxu0 %v2861
        %2936 = vmatpush1.bf16.msra.mxu0 %v2860
        %2937 = vmatprep.subr.bf16.mxu0 %v2863
        %2938 = vmatpush1.bf16.msra.mxu0 %v2862
        %2939 = vmatprep.subr.bf16.mxu0 %v2865
        %2940 = vmatpush1.bf16.msra.mxu0 %v2864
        %2941 = vmatprep.subr.bf16.mxu0 %v2867
        %2942 = vmatpush1.bf16.msra.mxu0 %v2866
        %2943 = vmatprep.subr.bf16.mxu0 %v2869
        %2944 = vmatpush1.bf16.msra.mxu0 %v2868
        %2945 = vmatprep.subr.bf16.mxu0 %v2871
        %2946 = vmatpush1.bf16.msra.mxu0 %v2870
        %2947 = vmatprep.subr.bf16.mxu0 %v2873
        %2948 = vmatpush1.bf16.msra.mxu0 %v2872
        %2949 = vmatprep.subr.bf16.mxu0 %v2875
        %2950 = vmatpush1.bf16.msra.mxu0 %v2874
        %2951 = vmatprep.subr.bf16.mxu0 %v2877
        %2952 = vmatpush1.bf16.msra.mxu0 %v2876
        %2953 = vmatprep.subr.bf16.mxu0 %v2879
        %2954 = vmatpush1.bf16.msra.mxu0 %v2878
        %2955 = vmatprep.subr.bf16.mxu0 %v2881
        %2956 = vmatpush1.bf16.msra.mxu0 %v2880
        %2957 = vmatprep.subr.bf16.mxu0 %v2883
        %2958 = vmatpush1.bf16.msra.mxu0 %v2882
        %2959 = vmatprep.subr.bf16.mxu0 %v2885
        %2960 = vmatpush1.bf16.msra.mxu0 %v2884
        %2961 = vmatprep.subr.bf16.mxu0 %v2887
        %2962 = vmatpush1.bf16.msra.mxu0 %v2886
        %2963 = vmatprep.subr.bf16.mxu0 %v2889
        %2964 = vmatpush1.bf16.msra.mxu0 %v2888
        %2965 = vmatprep.mubr.bf16.mxu0 %v2407
        %2966 = vmatmul.mubr.bf16.gmra.mrb[0].mxu0 %v2406
        %v2967 = vpop.f32.mrb[0].mxu0
        %v2968 = vadd.f32 0.0, %v2967
        %v2969 = vpop.f32.mrb[0].mxu0
        %v2970 = vadd.f32 0.0, %v2969
        %v2971 = vpop.f32.mrb[0].mxu0
        %v2972 = vpop.f32.mrb[0].mxu0
        %2973 = vdwg.mxu0
        %2974 = vmatprep.subr.bf16.mxu0 %v2891
        %2975 = vmatpush1.bf16.msra.mxu0 %v2890
        %2976 = vmatprep.subr.bf16.mxu0 %v2893
        %2977 = vmatpush1.bf16.msra.mxu0 %v2892
        %2978 = vmatprep.subr.bf16.mxu0 %v2895
        %2979 = vmatpush1.bf16.msra.mxu0 %v2894
        %2980 = vmatprep.subr.bf16.mxu0 %v2897
        %2981 = vmatpush1.bf16.msra.mxu0 %v2896
        %2982 = vmatprep.subr.bf16.mxu0 %v2899
        %2983 = vmatpush1.bf16.msra.mxu0 %v2898
        %2984 = vmatprep.subr.bf16.mxu0 %v2901
        %2985 = vmatpush1.bf16.msra.mxu0 %v2900
        %2986 = vmatprep.subr.bf16.mxu0 %v2903
        %2987 = vmatpush1.bf16.msra.mxu0 %v2902
        %2988 = vmatprep.subr.bf16.mxu0 %v2905
        %2989 = vmatpush1.bf16.msra.mxu0 %v2904
        %2990 = vmatprep.subr.bf16.mxu0 %v2907
        %2991 = vmatpush1.bf16.msra.mxu0 %v2906
        %2992 = vmatprep.subr.bf16.mxu0 %v2909
        %2993 = vmatpush1.bf16.msra.mxu0 %v2908
        %2994 = vmatprep.subr.bf16.mxu0 %v2911
        %2995 = vmatpush1.bf16.msra.mxu0 %v2910
        %2996 = vmatprep.subr.bf16.mxu0 %v2913
        %2997 = vmatpush1.bf16.msra.mxu0 %v2912
        %2998 = vmatprep.subr.bf16.mxu0 %v2915
        %2999 = vmatpush1.bf16.msra.mxu0 %v2914
        %3000 = vmatprep.subr.bf16.mxu0 %v2917
        %3001 = vmatpush1.bf16.msra.mxu0 %v2916
        %3002 = vmatprep.subr.bf16.mxu0 %v2919
        %3003 = vmatpush1.bf16.msra.mxu0 %v2918
        %3004 = vmatprep.subr.bf16.mxu0 %v2921
        %3005 = vmatpush1.bf16.msra.mxu0 %v2920
        %3006 = vmatprep.mubr.bf16.mxu0 %v2409
        %3007 = vmatmul.mubr.bf16.gmra.mrb[0].mxu0 %v2408
        %v3008 = vpop.f32.mrb[0].mxu0
        %v3009 = vadd.f32 %v2968, %v3008
        %v3010 = vpop.f32.mrb[0].mxu0
        %v3011 = vadd.f32 %v2970, %v3010
        %v3012 = vpop.f32.mrb[0].mxu0
        %v3013 = vpop.f32.mrb[0].mxu0
        %3014 = vdwg.mxu0
        %v3017 = vcombine.low %v3009, %v3011
        %v3019 = vadd.f32 %v2932, %v3017
        %3020 = vst [vmem:[%s462] sm:$0xff] %v3019
        %s3021 = sand.u32 %s218, 1
        %s3022 = scalar_lea.sflag [#allocation6], %s3021
        %s3023 = sand.u32 %s218, 1
        %s3024 = smul.addr %s3023, 8
        %s3025 = scalar_lea.vmem [#allocation13], %s3024
        %p3026 = scmp.lt.s32.totalorder %s37, 1
        %s3027 = scalar_select %p3026, %s37, 1
        %s3028 = scalar_lea.vmem %s8, %s3027
        %p3029 = scmp.lt.s32.totalorder %s37, 1
        %s3030 = scalar_select %p3029, %s37, 1
        %s3031 = scalar_lea.vmem %s9, %s3030
        // Predicated region
        $region73: #{tpu_custom_call.1} parent=47 // pred_check
          %p3032 = pneg %p228
        $region74: #{tpu_custom_call.1} parent=47 // pred_check_branch
          %3034 = sbr.rel (%p3032) target = $region76
        $region75: #{tpu_custom_call.1} parent=47 // pred_region
          %s3036 = ssub.s32 128, 128
          %3037 = vsyncadd %s3022, %s3036
          %s3038 = smul.addr %s37, 2
          %s3039 = smul.addr %s3038, 64
          %s3040 = scalar_lea.hbm %s7, %s3039
          %s3042 = sshll.u32 %s3025, 4
          %s3043 = int_to_ptr.vmem [resolvable:$true] %s3042
          %3045 = dma.vmem_to_hbm [thread:$0]  %s3043, 128, %s3040, %s3022
        $region76: #{tpu_custom_call.1} parent=47 // pred_fallthru
          _
        // Predicated region
        $region77: #{tpu_custom_call.1} parent=47 // pred_check
          %p3046 = pneg %p254
        $region78: #{tpu_custom_call.1} parent=47 // pred_check_branch
          %3048 = sbr.rel (%p3046) target = $region80
        $region79: #{tpu_custom_call.1} parent=47 // pred_region
          _
        $region80: #{tpu_custom_call.1} parent=47 // pred_fallthru
          _
        // Predicated region
        $region81: #{tpu_custom_call.1} parent=47 // pred_check
          %p3049 = pneg %p280
        $region82: #{tpu_custom_call.1} parent=47 // pred_check_branch
          %3051 = sbr.rel (%p3049) target = $region84
        $region83: #{tpu_custom_call.1} parent=47 // pred_region
          _
        $region84: #{tpu_custom_call.1} parent=47 // pred_fallthru
          _
      $region48: #{tpu_custom_call.1} parent=5 // pred_fallthru
        _
      %p3052 = scmp.le.s32.totalorder 2, %s28
      // Predicated region
      $region85: #{tpu_custom_call.1} parent=5 // pred_check
        %p3053 = pneg %p3052
      $region86: #{tpu_custom_call.1} parent=5 // pred_check_branch
        %3055 = sbr.rel (%p3053) target = $region88
      $region87: #{tpu_custom_call.1} parent=5 // pred_region
        %s3056 = ssub.s32 %s28, 2
        // Predicated region
        $region89: #{tpu_custom_call.1} parent=87 // pred_check
          %p3057 = pneg %p234
        $region90: #{tpu_custom_call.1} parent=87 // pred_check_branch
          %3059 = sbr.rel (%p3057) target = $region92
        $region91: #{tpu_custom_call.1} parent=87 // pred_region
          %s3060 = sand.u32 %s219, 1
          %s3061 = scalar_lea.sflag [#allocation6], %s3060
          %s3062 = sand.u32 %s219, 1
          %s3063 = smul.addr %s3062, 8
          %s3064 = scalar_lea.vmem [#allocation13], %s3063
          %3065 = dma.done %s3061, 128
        $region92: #{tpu_custom_call.1} parent=87 // pred_fallthru
          _
        // Predicated region
        $region93: #{tpu_custom_call.1} parent=87 // pred_check
          %p3066 = pneg %p260
        $region94: #{tpu_custom_call.1} parent=87 // pred_check_branch
          %3068 = sbr.rel (%p3066) target = $region96
        $region95: #{tpu_custom_call.1} parent=87 // pred_region
          %p3069 = scmp.lt.s32.totalorder %s39, 1
          %s3070 = scalar_select %p3069, %s39, 1
          %s3071 = scalar_lea.vmem %s8, %s3070
        $region96: #{tpu_custom_call.1} parent=87 // pred_fallthru
          _
        // Predicated region
        $region97: #{tpu_custom_call.1} parent=87 // pred_check
          %p3072 = pneg %p286
        $region98: #{tpu_custom_call.1} parent=87 // pred_check_branch
          %3074 = sbr.rel (%p3072) target = $region100
        $region99: #{tpu_custom_call.1} parent=87 // pred_region
          %p3075 = scmp.lt.s32.totalorder %s39, 1
          %s3076 = scalar_select %p3075, %s39, 1
          %s3077 = scalar_lea.vmem %s9, %s3076
        $region100: #{tpu_custom_call.1} parent=87 // pred_fallthru
          _
      $region88: #{tpu_custom_call.1} parent=5 // pred_fallthru
        _
    $region6: #{tpu_custom_call.1} parent=1 // loop_footer
      %s32 = sadd.s32 1, %s28
    $region7: #{tpu_custom_call.1} parent=1 // loop_footer_branch
      %27 = sbr.rel target = $region3
    $region8: #{tpu_custom_call.1} parent=1 // loop_exit
      _
    %3078 = vsyncpa [#allocation5], 1
    %s3079 = scalar_lea.sflag [#allocation5], 1
    %3080 = vsyncpa %s3079, 1
    %3081 = vsyncpa [#allocation8], 1
    %s3082 = scalar_lea.sflag [#allocation8], 1
    %3083 = vsyncpa %s3082, 1
    %3084 = vsyncpa [#allocation11], 1
    %3085 = vsyncpa [#allocation6], 1
    %s3086 = scalar_lea.sflag [#allocation6], 1
    %3087 = vsyncpa %s3086, 1

</llo_original>
